<compile_context>
chip_gen: v5e
topology: v5e:2x2
jax: 0.10.0
libtpu: 0.0.40
codegen_flags: <defaults>
</compile_context>

<pallas_src>
import functools

import jax
import jax.numpy as jnp
from jax import lax
from jax.experimental import pallas as pl
from jax.experimental.pallas import tpu as pltpu


def _combine_pool_kernel(feat_ref, w_ref, b_ref, out_ref, acc_ref, *,
                         combine_slices, n_slices, pix):
    """Single grid step; everything resident in VMEM.

    feat_ref : (F, S*P)    bf16 per-slice base-model features, slice s occupies
                           columns [s*P, (s+1)*P), P = H*W on lanes
    w_ref    : (cs, C, F)  bf16 Conv3d weights, one (C, F) matrix per tap
    b_ref    : (C, 1)      f32 Conv3d bias
    out_ref  : (C, 2*S)    f32, columns [0,S) = avg pool, [S,2S) = max pool
    acc_ref  : (C, S*P)    f32 VMEM scratch accumulator
    """
    cs, S, P = combine_slices, n_slices, pix
    pad = (cs - 1) // 2

    # ---- center tap covers every output slice: direct store (no zero-init) --
    acc_ref[...] = jnp.dot(w_ref[pad], feat_ref[...],
                           preferred_element_type=jnp.float32)

    # ---- remaining taps: shifted, partial-range accumulation ----------------
    # out[:, s] += w_k @ feat[:, s + k - pad]  for 0 <= s + k - pad < S.
    # All offsets are static multiples of P -> lane-tile aligned slices.
    for k in range(cs):
        if k == pad:
            continue
        d = k - pad
        o_lo, o_hi = max(0, -d), min(S, S - d)
        if o_lo >= o_hi:
            continue
        i_lo, i_hi = o_lo + d, o_hi + d
        acc_ref[:, o_lo * P:o_hi * P] += jnp.dot(
            w_ref[k], feat_ref[:, i_lo * P:i_hi * P],
            preferred_element_type=jnp.float32)

    # ---- pooling epilogue: ONE lane-dense (C, 2S) store ---------------------
    # Bias is added once after pooling (constant over H*W, commutes with
    # mean and max).
    avg_cols, max_cols = [], []
    for s in range(S):
        blk = acc_ref[:, s * P:(s + 1) * P]                       # (C, P) view
        avg_cols.append(jnp.sum(blk, axis=-1, keepdims=True) * (1.0 / P))
        max_cols.append(jnp.max(blk, axis=-1, keepdims=True))
    pooled = jnp.concatenate(avg_cols + max_cols, axis=-1)        # (C, 2S)
    out_ref[...] = pooled + b_ref[...]


def combine_last3d_forward(inputs, base_w, base_b, comb_w, comb_b,
                           combine_slices=5):
    """inputs: (B, S, H, W) with B == 1 (matches the PyTorch module's assert)."""
    B, S, H, W = inputs.shape
    assert B == 1
    assert combine_slices % 2 == 1, "only odd combine_slices is supported"
    F = base_w.shape[0]                 # base_model_features
    C = comb_w.shape[0]                 # combine_conv_features
    cs = combine_slices
    P = H * W

    # ---- base_model (external module in the spec): 3x3 conv + ReLU glue ----
    x = inputs.reshape(B * S, 1, H, W)                            # NCHW
    feat = lax.conv_general_dilated(
        x, base_w, window_strides=(1, 1), padding=((1, 1), (1, 1)),
        dimension_numbers=('NCHW', 'OIHW', 'NCHW'))
    feat = jax.nn.relu(feat + base_b[None, :, None, None])        # (S, F, H, W)
    # (S, F, P) -> (F, S*P); bf16 MXU operands, f32 accumulation in-kernel.
    feat = feat.reshape(S, F, P).transpose(1, 0, 2).reshape(F, S * P)
    feat = feat.astype(jnp.bfloat16)

    # ---- Conv3d weights: (C, F, cs, 1, 1) -> one (C, F) matrix per tap -----
    w_taps = comb_w[:, :, :, 0, 0].transpose(2, 0, 1).astype(jnp.bfloat16)
    b2 = comb_b[:, None].astype(jnp.float32)                      # (C, 1)

    kernel = functools.partial(_combine_pool_kernel, combine_slices=cs,
                               n_slices=S, pix=P)

    out = pl.pallas_call(
        kernel,
        out_shape=jax.ShapeDtypeStruct((C, 2 * S), jnp.float32),
        grid_spec=pltpu.PrefetchScalarGridSpec(
            num_scalar_prefetch=0,
            grid=(1,),                                            # single step
            in_specs=[
                pl.BlockSpec((F, S * P), lambda i: (0, 0)),
                pl.BlockSpec((cs, C, F), lambda i: (0, 0, 0)),
                pl.BlockSpec((C, 1), lambda i: (0, 0)),
            ],
            out_specs=pl.BlockSpec((C, 2 * S), lambda i: (0, 0)),
            scratch_shapes=[pltpu.VMEM((C, S * P), jnp.float32)],
        ),
        compiler_params=pltpu.CompilerParams(
            dimension_semantics=("arbitrary",),
            vmem_limit_bytes=32 * 1024 * 1024),
    )(feat, w_taps, b2)

    # (C, 2S) -> (1, 2C, S): first C channels = avg pool, next C = max pool.
    avg = out[:, :S]
    mx = out[:, S:]
    return jnp.concatenate([avg, mx], axis=0)[None, :, :]


def _reference(inputs, base_w, base_b, comb_w, comb_b, combine_slices=5):
    """Pure-JAX f32 reference mirroring the PyTorch forward exactly."""
    B, S, H, W = inputs.shape
    pad = (combine_slices - 1) // 2
    x = inputs.reshape(B * S, 1, H, W)
    feat = lax.conv_general_dilated(
        x, base_w, window_strides=(1, 1), padding=((1, 1), (1, 1)),
        dimension_numbers=('NCHW', 'OIHW', 'NCHW'))
    feat = jax.nn.relu(feat + base_b[None, :, None, None])        # (S, F, H, W)
    F = feat.shape[1]
    x5 = feat.reshape(B, S, F, H, W).transpose(0, 2, 1, 3, 4)     # (B, F, S, H, W)
    y = lax.conv_general_dilated(
        x5, comb_w, window_strides=(1, 1, 1),
        padding=((pad, pad), (0, 0), (0, 0)),
        dimension_numbers=('NCDHW', 'OIDHW', 'NCDHW'))
    y = y + comb_b[None, :, None, None, None]                     # (B, C, S, H, W)
    avg = jnp.mean(y, axis=(3, 4), keepdims=True)
    mx = jnp.max(y, axis=(3, 4), keepdims=True)
    return jnp.concatenate([avg, mx], axis=1)[:, :, :, 0, 0]      # (B, 2C, S)


if __name__ == "__main__":
    # Small, module-consistent shapes (batch must be 1).
    B, S, H, W = 1, 8, 16, 16
    base_model_features = 32
    combine_conv_features = 64
    combine_slices = 5

    key = jax.random.PRNGKey(0)
    k1, k2, k3, k4 = jax.random.split(key, 4)

    inputs = jax.random.normal(k1, (B, S, H, W), jnp.float32)

    # Synthetic base_model params: Conv2d(1 -> F, 3x3) + ReLU.
    base_w = 0.1 * jax.random.normal(k2, (base_model_features, 1, 3, 3),
                                     jnp.float32)
    base_b = jnp.zeros((base_model_features,), jnp.float32)

    # combine_conv = Conv3d(F -> C, kernel (cs,1,1)).  The module initializes
    # the bias to 0; use a small non-zero bias here to exercise the bias path.
    comb_w = 0.1 * jax.random.normal(
        k3, (combine_conv_features, base_model_features, combine_slices, 1, 1),
        jnp.float32)
    comb_b = 0.01 * jax.random.normal(k4, (combine_conv_features,), jnp.float32)

    fwd = jax.jit(functools.partial(combine_last3d_forward,
                                    combine_slices=combine_slices))
    out = jax.block_until_ready(fwd(inputs, base_w, base_b, comb_w, comb_b))

    ref = _reference(inputs, base_w, base_b, comb_w, comb_b, combine_slices)
    assert out.shape == (1, 2 * combine_conv_features, S), out.shape
    # bf16 MXU operands (f32 accumulation) -> slightly looser tolerance than
    # the all-f32 version.
    assert jnp.allclose(out, ref, rtol=1e-2, atol=2e-2), \
        float(jnp.max(jnp.abs(out - ref)))

    print("KERNEL_OK")
</pallas_src>

<mosaic_0001>
module attributes {stable_mosaic.version = 11 : i64} {
  func.func @_combine_pool_kernel(%arg0: i32, %arg1: memref<32x2048xbf16, #tpu.memory_space<vmem>>, %arg2: memref<5x64x32xbf16, #tpu.memory_space<vmem>>, %arg3: memref<64x1xf32, #tpu.memory_space<vmem>>, %arg4: memref<64x16xf32, #tpu.memory_space<vmem>>, %arg5: memref<64x2048xf32, #tpu.memory_space<vmem>>) attributes {dimension_semantics = [#tpu.dimension_semantics<arbitrary>], iteration_bounds = array<i64: 1>, scalar_prefetch = 0 : i64, scratch_operands = 1 : i64, tpu.core_type = #tpu.core_type<tc>, window_params = [{pipeline_mode = #tpu.pipeline_mode<synchronous>, transform_indices = @transform_0, window_bounds = array<i64: 32, 2048>}, {pipeline_mode = #tpu.pipeline_mode<synchronous>, transform_indices = @transform_1, window_bounds = array<i64: 5, 64, 32>}, {pipeline_mode = #tpu.pipeline_mode<synchronous>, transform_indices = @transform_2, window_bounds = array<i64: 64, 1>}, {pipeline_mode = #tpu.pipeline_mode<synchronous>, transform_indices = @transform_3, window_bounds = array<i64: 64, 16>}]} {
    %c2 = arith.constant 2 : index
    %c0 = arith.constant 0 : index
    %c0_0 = arith.constant 0 : index
    %0 = vector.load %arg2[%c2, %c0, %c0_0] : memref<5x64x32xbf16, #tpu.memory_space<vmem>>, vector<1x64x32xbf16>
    %1 = vector.shape_cast %0 : vector<1x64x32xbf16> to vector<64x32xbf16>
    %c0_1 = arith.constant 0 : index
    %c0_2 = arith.constant 0 : index
    %2 = vector.load %arg1[%c0_1, %c0_2] : memref<32x2048xbf16, #tpu.memory_space<vmem>>, vector<32x2048xbf16>
    %cst = arith.constant dense<0.000000e+00> : vector<64x2048xf32>
    %3 = tpu.matmul %1, %2, %cst {dimension_numbers = #tpu.dot_dimension_numbers<[1], [0], [0], [1], [0, 0, 1, 1], [], []>} : vector<64x32xbf16>, vector<32x2048xbf16>, vector<64x2048xf32> -> vector<64x2048xf32>
    %c0_3 = arith.constant 0 : index
    %c0_4 = arith.constant 0 : index
    %4 = vector.load %arg5[%c0_3, %c0_4] : memref<64x2048xf32, #tpu.memory_space<vmem>>, vector<64x2048xf32>
    tpu.vector_store %arg5[%c0_3, %c0_4], %3 {strides = array<i32>} : memref<64x2048xf32, #tpu.memory_space<vmem>>, vector<64x2048xf32>,
    %c0_5 = arith.constant 0 : index
    %c512 = arith.constant 512 : index
    %5 = vector.load %arg5[%c0_5, %c512] : memref<64x2048xf32, #tpu.memory_space<vmem>>, vector<64x1536xf32>
    %c0_6 = arith.constant 0 : index
    %c0_7 = arith.constant 0 : index
    %c0_8 = arith.constant 0 : index
    %6 = vector.load %arg2[%c0_6, %c0_7, %c0_8] : memref<5x64x32xbf16, #tpu.memory_space<vmem>>, vector<1x64x32xbf16>
    %7 = vector.shape_cast %6 : vector<1x64x32xbf16> to vector<64x32xbf16>
    %c0_9 = arith.constant 0 : index
    %c0_10 = arith.constant 0 : index
    %8 = vector.load %arg1[%c0_9, %c0_10] : memref<32x2048xbf16, #tpu.memory_space<vmem>>, vector<32x1536xbf16>
    %cst_11 = arith.constant dense<0.000000e+00> : vector<64x1536xf32>
    %9 = tpu.matmul %7, %8, %cst_11 {dimension_numbers = #tpu.dot_dimension_numbers<[1], [0], [0], [1], [0, 0, 1, 1], [], []>} : vector<64x32xbf16>, vector<32x1536xbf16>, vector<64x1536xf32> -> vector<64x1536xf32>
    %10 = arith.addf %5, %9 : vector<64x1536xf32>
    %c0_12 = arith.constant 0 : index
    %c512_13 = arith.constant 512 : index
    %11 = vector.load %arg5[%c0_12, %c512_13] : memref<64x2048xf32, #tpu.memory_space<vmem>>, vector<64x1536xf32>
    tpu.vector_store %arg5[%c0_12, %c512_13], %10 {strides = array<i32>} : memref<64x2048xf32, #tpu.memory_space<vmem>>, vector<64x1536xf32>,
    %c0_14 = arith.constant 0 : index
    %c256 = arith.constant 256 : index
    %12 = vector.load %arg5[%c0_14, %c256] : memref<64x2048xf32, #tpu.memory_space<vmem>>, vector<64x1792xf32>
    %c1 = arith.constant 1 : index
    %c0_15 = arith.constant 0 : index
    %c0_16 = arith.constant 0 : index
    %13 = vector.load %arg2[%c1, %c0_15, %c0_16] : memref<5x64x32xbf16, #tpu.memory_space<vmem>>, vector<1x64x32xbf16>
    %14 = vector.shape_cast %13 : vector<1x64x32xbf16> to vector<64x32xbf16>
    %c0_17 = arith.constant 0 : index
    %c0_18 = arith.constant 0 : index
    %15 = vector.load %arg1[%c0_17, %c0_18] : memref<32x2048xbf16, #tpu.memory_space<vmem>>, vector<32x1792xbf16>
    %cst_19 = arith.constant dense<0.000000e+00> : vector<64x1792xf32>
    %16 = tpu.matmul %14, %15, %cst_19 {dimension_numbers = #tpu.dot_dimension_numbers<[1], [0], [0], [1], [0, 0, 1, 1], [], []>} : vector<64x32xbf16>, vector<32x1792xbf16>, vector<64x1792xf32> -> vector<64x1792xf32>
    %17 = arith.addf %12, %16 : vector<64x1792xf32>
    %c0_20 = arith.constant 0 : index
    %c256_21 = arith.constant 256 : index
    %18 = vector.load %arg5[%c0_20, %c256_21] : memref<64x2048xf32, #tpu.memory_space<vmem>>, vector<64x1792xf32>
    tpu.vector_store %arg5[%c0_20, %c256_21], %17 {strides = array<i32>} : memref<64x2048xf32, #tpu.memory_space<vmem>>, vector<64x1792xf32>,
    %c0_22 = arith.constant 0 : index
    %c0_23 = arith.constant 0 : index
    %19 = vector.load %arg5[%c0_22, %c0_23] : memref<64x2048xf32, #tpu.memory_space<vmem>>, vector<64x1792xf32>
    %c3 = arith.constant 3 : index
    %c0_24 = arith.constant 0 : index
    %c0_25 = arith.constant 0 : index
    %20 = vector.load %arg2[%c3, %c0_24, %c0_25] : memref<5x64x32xbf16, #tpu.memory_space<vmem>>, vector<1x64x32xbf16>
    %21 = vector.shape_cast %20 : vector<1x64x32xbf16> to vector<64x32xbf16>
    %c0_26 = arith.constant 0 : index
    %c256_27 = arith.constant 256 : index
    %22 = vector.load %arg1[%c0_26, %c256_27] : memref<32x2048xbf16, #tpu.memory_space<vmem>>, vector<32x1792xbf16>
    %cst_28 = arith.constant dense<0.000000e+00> : vector<64x1792xf32>
    %23 = tpu.matmul %21, %22, %cst_28 {dimension_numbers = #tpu.dot_dimension_numbers<[1], [0], [0], [1], [0, 0, 1, 1], [], []>} : vector<64x32xbf16>, vector<32x1792xbf16>, vector<64x1792xf32> -> vector<64x1792xf32>
    %24 = arith.addf %19, %23 : vector<64x1792xf32>
    %c0_29 = arith.constant 0 : index
    %c0_30 = arith.constant 0 : index
    %25 = vector.load %arg5[%c0_29, %c0_30] : memref<64x2048xf32, #tpu.memory_space<vmem>>, vector<64x1792xf32>
    tpu.vector_store %arg5[%c0_29, %c0_30], %24 {strides = array<i32>} : memref<64x2048xf32, #tpu.memory_space<vmem>>, vector<64x1792xf32>,
    %c0_31 = arith.constant 0 : index
    %c0_32 = arith.constant 0 : index
    %26 = vector.load %arg5[%c0_31, %c0_32] : memref<64x2048xf32, #tpu.memory_space<vmem>>, vector<64x1536xf32>
    %c4 = arith.constant 4 : index
    %c0_33 = arith.constant 0 : index
    %c0_34 = arith.constant 0 : index
    %27 = vector.load %arg2[%c4, %c0_33, %c0_34] : memref<5x64x32xbf16, #tpu.memory_space<vmem>>, vector<1x64x32xbf16>
    %28 = vector.shape_cast %27 : vector<1x64x32xbf16> to vector<64x32xbf16>
    %c0_35 = arith.constant 0 : index
    %c512_36 = arith.constant 512 : index
    %29 = vector.load %arg1[%c0_35, %c512_36] : memref<32x2048xbf16, #tpu.memory_space<vmem>>, vector<32x1536xbf16>
    %cst_37 = arith.constant dense<0.000000e+00> : vector<64x1536xf32>
    %30 = tpu.matmul %28, %29, %cst_37 {dimension_numbers = #tpu.dot_dimension_numbers<[1], [0], [0], [1], [0, 0, 1, 1], [], []>} : vector<64x32xbf16>, vector<32x1536xbf16>, vector<64x1536xf32> -> vector<64x1536xf32>
    %31 = arith.addf %26, %30 : vector<64x1536xf32>
    %c0_38 = arith.constant 0 : index
    %c0_39 = arith.constant 0 : index
    %32 = vector.load %arg5[%c0_38, %c0_39] : memref<64x2048xf32, #tpu.memory_space<vmem>>, vector<64x1536xf32>
    tpu.vector_store %arg5[%c0_38, %c0_39], %31 {strides = array<i32>} : memref<64x2048xf32, #tpu.memory_space<vmem>>, vector<64x1536xf32>,
    %c0_40 = arith.constant 0 : index
    %c0_41 = arith.constant 0 : index
    %33 = vector.load %arg5[%c0_40, %c0_41] : memref<64x2048xf32, #tpu.memory_space<vmem>>, vector<64x256xf32>
    %cst_42 = arith.constant dense<0.000000e+00> : vector<64xf32>
    %34 = vector.multi_reduction <add>, %33, %cst_42 [1] : vector<64x256xf32> to vector<64xf32>
    %35 = vector.shape_cast %34 : vector<64xf32> to vector<64x1xf32>
    %cst_43 = arith.constant 3.906250e-03 : f32
    %36 = vector.broadcast %cst_43 : f32 to vector<64x1xf32>
    %37 = arith.mulf %35, %36 : vector<64x1xf32>
    %cst_44 = arith.constant dense<0xFF800000> : vector<64xf32>
    %38 = vector.multi_reduction <maximumf>, %33, %cst_44 [1] : vector<64x256xf32> to vector<64xf32>
    %39 = vector.shape_cast %38 : vector<64xf32> to vector<64x1xf32>
    %c0_45 = arith.constant 0 : index
    %c256_46 = arith.constant 256 : index
    %40 = vector.load %arg5[%c0_45, %c256_46] : memref<64x2048xf32, #tpu.memory_space<vmem>>, vector<64x256xf32>
    %cst_47 = arith.constant dense<0.000000e+00> : vector<64xf32>
    %41 = vector.multi_reduction <add>, %40, %cst_47 [1] : vector<64x256xf32> to vector<64xf32>
    %42 = vector.shape_cast %41 : vector<64xf32> to vector<64x1xf32>
    %cst_48 = arith.constant 3.906250e-03 : f32
    %43 = vector.broadcast %cst_48 : f32 to vector<64x1xf32>
    %44 = arith.mulf %42, %43 : vector<64x1xf32>
    %cst_49 = arith.constant dense<0xFF800000> : vector<64xf32>
    %45 = vector.multi_reduction <maximumf>, %40, %cst_49 [1] : vector<64x256xf32> to vector<64xf32>
    %46 = vector.shape_cast %45 : vector<64xf32> to vector<64x1xf32>
    %c0_50 = arith.constant 0 : index
    %c512_51 = arith.constant 512 : index
    %47 = vector.load %arg5[%c0_50, %c512_51] : memref<64x2048xf32, #tpu.memory_space<vmem>>, vector<64x256xf32>
    %cst_52 = arith.constant dense<0.000000e+00> : vector<64xf32>
    %48 = vector.multi_reduction <add>, %47, %cst_52 [1] : vector<64x256xf32> to vector<64xf32>
    %49 = vector.shape_cast %48 : vector<64xf32> to vector<64x1xf32>
    %cst_53 = arith.constant 3.906250e-03 : f32
    %50 = vector.broadcast %cst_53 : f32 to vector<64x1xf32>
    %51 = arith.mulf %49, %50 : vector<64x1xf32>
    %cst_54 = arith.constant dense<0xFF800000> : vector<64xf32>
    %52 = vector.multi_reduction <maximumf>, %47, %cst_54 [1] : vector<64x256xf32> to vector<64xf32>
    %53 = vector.shape_cast %52 : vector<64xf32> to vector<64x1xf32>
    %c0_55 = arith.constant 0 : index
    %c768 = arith.constant 768 : index
    %54 = vector.load %arg5[%c0_55, %c768] : memref<64x2048xf32, #tpu.memory_space<vmem>>, vector<64x256xf32>
    %cst_56 = arith.constant dense<0.000000e+00> : vector<64xf32>
    %55 = vector.multi_reduction <add>, %54, %cst_56 [1] : vector<64x256xf32> to vector<64xf32>
    %56 = vector.shape_cast %55 : vector<64xf32> to vector<64x1xf32>
    %cst_57 = arith.constant 3.906250e-03 : f32
    %57 = vector.broadcast %cst_57 : f32 to vector<64x1xf32>
    %58 = arith.mulf %56, %57 : vector<64x1xf32>
    %cst_58 = arith.constant dense<0xFF800000> : vector<64xf32>
    %59 = vector.multi_reduction <maximumf>, %54, %cst_58 [1] : vector<64x256xf32> to vector<64xf32>
    %60 = vector.shape_cast %59 : vector<64xf32> to vector<64x1xf32>
    %c0_59 = arith.constant 0 : index
    %c1024 = arith.constant 1024 : index
    %61 = vector.load %arg5[%c0_59, %c1024] : memref<64x2048xf32, #tpu.memory_space<vmem>>, vector<64x256xf32>
    %cst_60 = arith.constant dense<0.000000e+00> : vector<64xf32>
    %62 = vector.multi_reduction <add>, %61, %cst_60 [1] : vector<64x256xf32> to vector<64xf32>
    %63 = vector.shape_cast %62 : vector<64xf32> to vector<64x1xf32>
    %cst_61 = arith.constant 3.906250e-03 : f32
    %64 = vector.broadcast %cst_61 : f32 to vector<64x1xf32>
    %65 = arith.mulf %63, %64 : vector<64x1xf32>
    %cst_62 = arith.constant dense<0xFF800000> : vector<64xf32>
    %66 = vector.multi_reduction <maximumf>, %61, %cst_62 [1] : vector<64x256xf32> to vector<64xf32>
    %67 = vector.shape_cast %66 : vector<64xf32> to vector<64x1xf32>
    %c0_63 = arith.constant 0 : index
    %c1280 = arith.constant 1280 : index
    %68 = vector.load %arg5[%c0_63, %c1280] : memref<64x2048xf32, #tpu.memory_space<vmem>>, vector<64x256xf32>
    %cst_64 = arith.constant dense<0.000000e+00> : vector<64xf32>
    %69 = vector.multi_reduction <add>, %68, %cst_64 [1] : vector<64x256xf32> to vector<64xf32>
    %70 = vector.shape_cast %69 : vector<64xf32> to vector<64x1xf32>
    %cst_65 = arith.constant 3.906250e-03 : f32
    %71 = vector.broadcast %cst_65 : f32 to vector<64x1xf32>
    %72 = arith.mulf %70, %71 : vector<64x1xf32>
    %cst_66 = arith.constant dense<0xFF800000> : vector<64xf32>
    %73 = vector.multi_reduction <maximumf>, %68, %cst_66 [1] : vector<64x256xf32> to vector<64xf32>
    %74 = vector.shape_cast %73 : vector<64xf32> to vector<64x1xf32>
    %c0_67 = arith.constant 0 : index
    %c1536 = arith.constant 1536 : index
    %75 = vector.load %arg5[%c0_67, %c1536] : memref<64x2048xf32, #tpu.memory_space<vmem>>, vector<64x256xf32>
    %cst_68 = arith.constant dense<0.000000e+00> : vector<64xf32>
    %76 = vector.multi_reduction <add>, %75, %cst_68 [1] : vector<64x256xf32> to vector<64xf32>
    %77 = vector.shape_cast %76 : vector<64xf32> to vector<64x1xf32>
    %cst_69 = arith.constant 3.906250e-03 : f32
    %78 = vector.broadcast %cst_69 : f32 to vector<64x1xf32>
    %79 = arith.mulf %77, %78 : vector<64x1xf32>
    %cst_70 = arith.constant dense<0xFF800000> : vector<64xf32>
    %80 = vector.multi_reduction <maximumf>, %75, %cst_70 [1] : vector<64x256xf32> to vector<64xf32>
    %81 = vector.shape_cast %80 : vector<64xf32> to vector<64x1xf32>
    %c0_71 = arith.constant 0 : index
    %c1792 = arith.constant 1792 : index
    %82 = vector.load %arg5[%c0_71, %c1792] : memref<64x2048xf32, #tpu.memory_space<vmem>>, vector<64x256xf32>
    %cst_72 = arith.constant dense<0.000000e+00> : vector<64xf32>
    %83 = vector.multi_reduction <add>, %82, %cst_72 [1] : vector<64x256xf32> to vector<64xf32>
    %84 = vector.shape_cast %83 : vector<64xf32> to vector<64x1xf32>
    %cst_73 = arith.constant 3.906250e-03 : f32
    %85 = vector.broadcast %cst_73 : f32 to vector<64x1xf32>
    %86 = arith.mulf %84, %85 : vector<64x1xf32>
    %cst_74 = arith.constant dense<0xFF800000> : vector<64xf32>
    %87 = vector.multi_reduction <maximumf>, %82, %cst_74 [1] : vector<64x256xf32> to vector<64xf32>
    %88 = vector.shape_cast %87 : vector<64xf32> to vector<64x1xf32>
    %89 = tpu.concatenate %37, %44, %51, %58, %65, %72, %79, %86, %39, %46, %53, %60, %67, %74, %81, %88 in 1 : vector<64x1xf32>, vector<64x1xf32>, vector<64x1xf32>, vector<64x1xf32>, vector<64x1xf32>, vector<64x1xf32>, vector<64x1xf32>, vector<64x1xf32>, vector<64x1xf32>, vector<64x1xf32>, vector<64x1xf32>, vector<64x1xf32>, vector<64x1xf32>, vector<64x1xf32>, vector<64x1xf32>, vector<64x1xf32> -> vector<64x16xf32>
    %c0_75 = arith.constant 0 : index
    %c0_76 = arith.constant 0 : index
    %90 = vector.load %arg3[%c0_75, %c0_76] : memref<64x1xf32, #tpu.memory_space<vmem>>, vector<64x1xf32>
    %91 = vector.broadcast %90 : vector<64x1xf32> to vector<64x16xf32>
    %92 = arith.addf %89, %91 : vector<64x16xf32>
    %c0_77 = arith.constant 0 : index
    %c0_78 = arith.constant 0 : index
    %93 = vector.load %arg4[%c0_77, %c0_78] : memref<64x16xf32, #tpu.memory_space<vmem>>, vector<64x16xf32>
    tpu.vector_store %arg4[%c0_77, %c0_78], %92 {strides = array<i32>} : memref<64x16xf32, #tpu.memory_space<vmem>>, vector<64x16xf32>,
    return
  }
  func.func @transform_0(%arg0: i32) -> (i32, i32) {
    %c0_i32 = arith.constant 0 : i32
    %c0_i32_0 = arith.constant 0 : i32
    %c0_i32_1 = arith.constant 0 : i32
    return %c0_i32, %c0_i32_0 : i32, i32
  }
  func.func @transform_1(%arg0: i32) -> (i32, i32, i32) {
    %c0_i32 = arith.constant 0 : i32
    %c0_i32_0 = arith.constant 0 : i32
    %c0_i32_1 = arith.constant 0 : i32
    %c0_i32_2 = arith.constant 0 : i32
    return %c0_i32, %c0_i32_0, %c0_i32_1 : i32, i32, i32
  }
  func.func @transform_2(%arg0: i32) -> (i32, i32) {
    %c0_i32 = arith.constant 0 : i32
    %c0_i32_0 = arith.constant 0 : i32
    %c0_i32_1 = arith.constant 0 : i32
    return %c0_i32, %c0_i32_0 : i32, i32
  }
  func.func @transform_3(%arg0: i32) -> (i32, i32) {
    %c0_i32 = arith.constant 0 : i32
    %c0_i32_0 = arith.constant 0 : i32
    %c0_i32_1 = arith.constant 0 : i32
    return %c0_i32, %c0_i32_0 : i32, i32
  }
}

</mosaic_0001>

<llo_original>
// kernel: combine_last3d_forward.1
$region0: #{combine_last3d_forward.1}
  #allocation0 [shape = 'u32[]', space=smem, size = 0x4, offset = 0x4, fixed_abs, tag = 'smem constant byte address 0x4 - core index']
  #allocation1 [shape = 'u32[72,128]{1,0:T(1,128)}', space=vmem, size = 0x9000, scoped, tag = 'internal scratch']
  #allocation2 [shape = 'f32[64,2048]{1,0:T(8,128)}', space=vmem, size = 0x80000, scoped, tag = 'scratch operand']
  %s0 = inlined_call_operand.vmem [shape: bf16[32,2048], index: 0, kind: input, shape index: {}]
  %s1 = inlined_call_operand.vmem [shape: bf16[5,64,32], index: 1, kind: input, shape index: {}]
  %s2 = inlined_call_operand.vmem [shape: f32[64,1], index: 2, kind: input, shape index: {}]
  %s3 = inlined_call_operand.vmem [shape: f32[64,16], index: 3, kind: output, shape index: {}]
  %s4 = sld [smem:[#allocation0]]
  $region22: #{combine_last3d_forward.1} parent=0
    _
  %s6 = ssub.s32 1, %s4
  %s7 = scalar_select 0, %s6, %s4
  // Predicated region
  $region2: #{combine_last3d_forward.1} parent=0 // pred_check
    _
  $region3: #{combine_last3d_forward.1} parent=0 // pred_check_branch
    %9 = sbr.rel (0) target = $region5
  $region4: #{combine_last3d_forward.1} parent=0 // pred_region
    _
  $region5: #{combine_last3d_forward.1} parent=0 // pred_fallthru
    _
  // Predicated region
  $region6: #{combine_last3d_forward.1} parent=0 // pred_check
    _
  $region7: #{combine_last3d_forward.1} parent=0 // pred_check_branch
    %11 = sbr.rel (0) target = $region9
  $region8: #{combine_last3d_forward.1} parent=0 // pred_region
    _
  $region9: #{combine_last3d_forward.1} parent=0 // pred_fallthru
    _
  // Predicated region
  $region10: #{combine_last3d_forward.1} parent=0 // pred_check
    _
  $region11: #{combine_last3d_forward.1} parent=0 // pred_check_branch
    %13 = sbr.rel (0) target = $region13
  $region12: #{combine_last3d_forward.1} parent=0 // pred_region
    _
  $region13: #{combine_last3d_forward.1} parent=0 // pred_fallthru
    _
  %s15 = scalar_lea.vmem %s1, 64
  %v16 = vld [vmem:[%s15] sm:$0xf]
  %v17 = vld [vmem:[%s15 + $0x4] sm:$0xf]
  %v18 = vld [vmem:[%s15 + $0x8] sm:$0xf]
  %v19 = vld [vmem:[%s15 + $0xc] sm:$0xf]
  %v20 = vld [vmem:[%s15 + $0x10] sm:$0xf]
  %v21 = vld [vmem:[%s15 + $0x14] sm:$0xf]
  %v22 = vld [vmem:[%s15 + $0x18] sm:$0xf]
  %v23 = vld [vmem:[%s15 + $0x1c] sm:$0xf]
  %v24 = vld [vmem:[%s0] sm:$0xff]
  %v25 = vld [vmem:[%s0 + $0x8] sm:$0xff]
  %v26 = vld [vmem:[%s0 + $0x10] sm:$0xff]
  %v27 = vld [vmem:[%s0 + $0x18] sm:$0xff]
  %v28 = vld [vmem:[%s0 + $0x20] sm:$0xff]
  %v29 = vld [vmem:[%s0 + $0x28] sm:$0xff]
  %v30 = vld [vmem:[%s0 + $0x30] sm:$0xff]
  %v31 = vld [vmem:[%s0 + $0x38] sm:$0xff]
  %v32 = vld [vmem:[%s0 + $0x40] sm:$0xff]
  %v33 = vld [vmem:[%s0 + $0x48] sm:$0xff]
  %v34 = vld [vmem:[%s0 + $0x50] sm:$0xff]
  %v35 = vld [vmem:[%s0 + $0x58] sm:$0xff]
  %v36 = vld [vmem:[%s0 + $0x60] sm:$0xff]
  %v37 = vld [vmem:[%s0 + $0x68] sm:$0xff]
  %v38 = vld [vmem:[%s0 + $0x70] sm:$0xff]
  %v39 = vld [vmem:[%s0 + $0x78] sm:$0xff]
  %v40 = vld [vmem:[%s0 + $0x80] sm:$0xff]
  %v41 = vld [vmem:[%s0 + $0x88] sm:$0xff]
  %v42 = vld [vmem:[%s0 + $0x90] sm:$0xff]
  %v43 = vld [vmem:[%s0 + $0x98] sm:$0xff]
  %v44 = vld [vmem:[%s0 + $0xa0] sm:$0xff]
  %v45 = vld [vmem:[%s0 + $0xa8] sm:$0xff]
  %v46 = vld [vmem:[%s0 + $0xb0] sm:$0xff]
  %v47 = vld [vmem:[%s0 + $0xb8] sm:$0xff]
  %v48 = vld [vmem:[%s0 + $0xc0] sm:$0xff]
  %v49 = vld [vmem:[%s0 + $0xc8] sm:$0xff]
  %v50 = vld [vmem:[%s0 + $0xd0] sm:$0xff]
  %v51 = vld [vmem:[%s0 + $0xd8] sm:$0xff]
  %v52 = vld [vmem:[%s0 + $0xe0] sm:$0xff]
  %v53 = vld [vmem:[%s0 + $0xe8] sm:$0xff]
  %v54 = vld [vmem:[%s0 + $0xf0] sm:$0xff]
  %v55 = vld [vmem:[%s0 + $0xf8] sm:$0xff]
  %v64 = vunpack.c.l.b16 %v16
  %v65 = vunpack.c.l.b16 %v17
  %v66 = vunpack.c.l.b16 %v18
  %v67 = vunpack.c.l.b16 %v19
  %v68 = vunpack.c.l.b16 %v20
  %v69 = vunpack.c.l.b16 %v21
  %v70 = vunpack.c.l.b16 %v22
  %v71 = vunpack.c.l.b16 %v23
  %v72 = vpack.c.b16 %v65, %v64
  %v73 = vpack.c.b16 %v67, %v66
  %v74 = vpack.c.b16 %v69, %v68
  %v75 = vpack.c.b16 %v71, %v70
  %v108 = vunpack.c.l.b16 %v24
  %v109 = vunpack.c.h.b16 %v24
  %v110 = vunpack.c.l.b16 %v25
  %v111 = vunpack.c.h.b16 %v25
  %v112 = vunpack.c.l.b16 %v26
  %v113 = vunpack.c.h.b16 %v26
  %v114 = vunpack.c.l.b16 %v27
  %v115 = vunpack.c.h.b16 %v27
  %v116 = vunpack.c.l.b16 %v28
  %v117 = vunpack.c.h.b16 %v28
  %v118 = vunpack.c.l.b16 %v29
  %v119 = vunpack.c.h.b16 %v29
  %v120 = vunpack.c.l.b16 %v30
  %v121 = vunpack.c.h.b16 %v30
  %v122 = vunpack.c.l.b16 %v31
  %v123 = vunpack.c.h.b16 %v31
  %v124 = vunpack.c.l.b16 %v32
  %v125 = vunpack.c.h.b16 %v32
  %v126 = vunpack.c.l.b16 %v33
  %v127 = vunpack.c.h.b16 %v33
  %v128 = vunpack.c.l.b16 %v34
  %v129 = vunpack.c.h.b16 %v34
  %v130 = vunpack.c.l.b16 %v35
  %v131 = vunpack.c.h.b16 %v35
  %v132 = vunpack.c.l.b16 %v36
  %v133 = vunpack.c.h.b16 %v36
  %v134 = vunpack.c.l.b16 %v37
  %v135 = vunpack.c.h.b16 %v37
  %v136 = vunpack.c.l.b16 %v38
  %v137 = vunpack.c.h.b16 %v38
  %v138 = vunpack.c.l.b16 %v39
  %v139 = vunpack.c.h.b16 %v39
  %v140 = vunpack.c.l.b16 %v40
  %v141 = vunpack.c.h.b16 %v40
  %v142 = vunpack.c.l.b16 %v41
  %v143 = vunpack.c.h.b16 %v41
  %v144 = vunpack.c.l.b16 %v42
  %v145 = vunpack.c.h.b16 %v42
  %v146 = vunpack.c.l.b16 %v43
  %v147 = vunpack.c.h.b16 %v43
  %v148 = vunpack.c.l.b16 %v44
  %v149 = vunpack.c.h.b16 %v44
  %v150 = vunpack.c.l.b16 %v45
  %v151 = vunpack.c.h.b16 %v45
  %v152 = vunpack.c.l.b16 %v46
  %v153 = vunpack.c.h.b16 %v46
  %v154 = vunpack.c.l.b16 %v47
  %v155 = vunpack.c.h.b16 %v47
  %v156 = vunpack.c.l.b16 %v48
  %v157 = vunpack.c.h.b16 %v48
  %v158 = vunpack.c.l.b16 %v49
  %v159 = vunpack.c.h.b16 %v49
  %v160 = vunpack.c.l.b16 %v50
  %v161 = vunpack.c.h.b16 %v50
  %v162 = vunpack.c.l.b16 %v51
  %v163 = vunpack.c.h.b16 %v51
  %v164 = vunpack.c.l.b16 %v52
  %v165 = vunpack.c.h.b16 %v52
  %v166 = vunpack.c.l.b16 %v53
  %v167 = vunpack.c.h.b16 %v53
  %v168 = vunpack.c.l.b16 %v54
  %v169 = vunpack.c.h.b16 %v54
  %v170 = vunpack.c.l.b16 %v55
  %v171 = vunpack.c.h.b16 %v55
  %v172 = vpack.c.b16 %v124, %v108
  %v173 = vpack.c.b16 %v125, %v109
  %v174 = vpack.c.b16 %v126, %v110
  %v175 = vpack.c.b16 %v127, %v111
  %v176 = vpack.c.b16 %v128, %v112
  %v177 = vpack.c.b16 %v129, %v113
  %v178 = vpack.c.b16 %v130, %v114
  %v179 = vpack.c.b16 %v131, %v115
  %v180 = vpack.c.b16 %v132, %v116
  %v181 = vpack.c.b16 %v133, %v117
  %v182 = vpack.c.b16 %v134, %v118
  %v183 = vpack.c.b16 %v135, %v119
  %v184 = vpack.c.b16 %v136, %v120
  %v185 = vpack.c.b16 %v137, %v121
  %v186 = vpack.c.b16 %v138, %v122
  %v187 = vpack.c.b16 %v139, %v123
  %v188 = vpack.c.b16 %v156, %v140
  %v189 = vpack.c.b16 %v157, %v141
  %v190 = vpack.c.b16 %v158, %v142
  %v191 = vpack.c.b16 %v159, %v143
  %v192 = vpack.c.b16 %v160, %v144
  %v193 = vpack.c.b16 %v161, %v145
  %v194 = vpack.c.b16 %v162, %v146
  %v195 = vpack.c.b16 %v163, %v147
  %v196 = vpack.c.b16 %v164, %v148
  %v197 = vpack.c.b16 %v165, %v149
  %v198 = vpack.c.b16 %v166, %v150
  %v199 = vpack.c.b16 %v167, %v151
  %v200 = vpack.c.b16 %v168, %v152
  %v201 = vpack.c.b16 %v169, %v153
  %v202 = vpack.c.b16 %v170, %v154
  %v203 = vpack.c.b16 %v171, %v155
  %vm236 = vcmask 261120
  %v238 = vsel %vm236, %v72, 0
  %v241 = vsel %vm236, %v73, 0
  %v244 = vsel %vm236, %v74, 0
  %v247 = vsel %vm236, %v75, 0
  %249 = vmatpush.bf16.msra.mxu0 0
  %250 = vmatpush.bf16.msra.mxu0 0
  %251 = vmatpush.bf16.msra.mxu0 0
  %252 = vmatpush.bf16.msra.mxu0 0
  %253 = vmatpush.bf16.msra.mxu0 0
  %254 = vmatpush.bf16.msra.mxu0 0
  %255 = vmatpush.bf16.msra.mxu0 %v188
  %256 = vmatpush.bf16.msra.mxu0 %v172
  %257 = vmatmul.bf16.gmra.mxu0 %v238
  %v258 = vpop.f32.mrf.mxu0
  %v259 = vadd.f32 0.0, %v258
  %v260 = vpop.f32.mrf.mxu0
  %v261 = vadd.f32 0.0, %v260
  %262 = vmatmul.bf16.gmra.mxu0 %v241
  %v263 = vpop.f32.mrf.mxu0
  %v264 = vadd.f32 0.0, %v263
  %v265 = vpop.f32.mrf.mxu0
  %v266 = vadd.f32 0.0, %v265
  %267 = vmatmul.bf16.gmra.mxu0 %v244
  %v268 = vpop.f32.mrf.mxu0
  %v269 = vadd.f32 0.0, %v268
  %v270 = vpop.f32.mrf.mxu0
  %v271 = vadd.f32 0.0, %v270
  %272 = vmatmul.bf16.gmra.mxu0 %v247
  %v273 = vpop.f32.mrf.mxu0
  %v274 = vadd.f32 0.0, %v273
  %v275 = vpop.f32.mrf.mxu0
  %v276 = vadd.f32 0.0, %v275
  %277 = vdwg.mxu0
  %278 = vmatpush.bf16.msra.mxu0 0
  %279 = vmatpush.bf16.msra.mxu0 0
  %280 = vmatpush.bf16.msra.mxu0 0
  %281 = vmatpush.bf16.msra.mxu0 0
  %282 = vmatpush.bf16.msra.mxu0 0
  %283 = vmatpush.bf16.msra.mxu0 0
  %284 = vmatpush.bf16.msra.mxu0 %v189
  %285 = vmatpush.bf16.msra.mxu0 %v173
  %286 = vmatmul.bf16.gmra.mxu0 %v238
  %v287 = vpop.f32.mrf.mxu0
  %v288 = vadd.f32 0.0, %v287
  %v289 = vpop.f32.mrf.mxu0
  %v290 = vadd.f32 0.0, %v289
  %291 = vmatmul.bf16.gmra.mxu0 %v241
  %v292 = vpop.f32.mrf.mxu0
  %v293 = vadd.f32 0.0, %v292
  %v294 = vpop.f32.mrf.mxu0
  %v295 = vadd.f32 0.0, %v294
  %296 = vmatmul.bf16.gmra.mxu0 %v244
  %v297 = vpop.f32.mrf.mxu0
  %v298 = vadd.f32 0.0, %v297
  %v299 = vpop.f32.mrf.mxu0
  %v300 = vadd.f32 0.0, %v299
  %301 = vmatmul.bf16.gmra.mxu0 %v247
  %v302 = vpop.f32.mrf.mxu0
  %v303 = vadd.f32 0.0, %v302
  %v304 = vpop.f32.mrf.mxu0
  %v305 = vadd.f32 0.0, %v304
  %306 = vdwg.mxu0
  %307 = vmatpush.bf16.msra.mxu0 0
  %308 = vmatpush.bf16.msra.mxu0 0
  %309 = vmatpush.bf16.msra.mxu0 0
  %310 = vmatpush.bf16.msra.mxu0 0
  %311 = vmatpush.bf16.msra.mxu0 0
  %312 = vmatpush.bf16.msra.mxu0 0
  %313 = vmatpush.bf16.msra.mxu0 %v190
  %314 = vmatpush.bf16.msra.mxu0 %v174
  %315 = vmatmul.bf16.gmra.mxu0 %v238
  %v316 = vpop.f32.mrf.mxu0
  %v317 = vadd.f32 0.0, %v316
  %v318 = vpop.f32.mrf.mxu0
  %v319 = vadd.f32 0.0, %v318
  %320 = vmatmul.bf16.gmra.mxu0 %v241
  %v321 = vpop.f32.mrf.mxu0
  %v322 = vadd.f32 0.0, %v321
  %v323 = vpop.f32.mrf.mxu0
  %v324 = vadd.f32 0.0, %v323
  %325 = vmatmul.bf16.gmra.mxu0 %v244
  %v326 = vpop.f32.mrf.mxu0
  %v327 = vadd.f32 0.0, %v326
  %v328 = vpop.f32.mrf.mxu0
  %v329 = vadd.f32 0.0, %v328
  %330 = vmatmul.bf16.gmra.mxu0 %v247
  %v331 = vpop.f32.mrf.mxu0
  %v332 = vadd.f32 0.0, %v331
  %v333 = vpop.f32.mrf.mxu0
  %v334 = vadd.f32 0.0, %v333
  %335 = vdwg.mxu0
  %336 = vmatpush.bf16.msra.mxu0 0
  %337 = vmatpush.bf16.msra.mxu0 0
  %338 = vmatpush.bf16.msra.mxu0 0
  %339 = vmatpush.bf16.msra.mxu0 0
  %340 = vmatpush.bf16.msra.mxu0 0
  %341 = vmatpush.bf16.msra.mxu0 0
  %342 = vmatpush.bf16.msra.mxu0 %v191
  %343 = vmatpush.bf16.msra.mxu0 %v175
  %344 = vmatmul.bf16.gmra.mxu0 %v238
  %v345 = vpop.f32.mrf.mxu0
  %v346 = vadd.f32 0.0, %v345
  %v347 = vpop.f32.mrf.mxu0
  %v348 = vadd.f32 0.0, %v347
  %349 = vmatmul.bf16.gmra.mxu0 %v241
  %v350 = vpop.f32.mrf.mxu0
  %v351 = vadd.f32 0.0, %v350
  %v352 = vpop.f32.mrf.mxu0
  %v353 = vadd.f32 0.0, %v352
  %354 = vmatmul.bf16.gmra.mxu0 %v244
  %v355 = vpop.f32.mrf.mxu0
  %v356 = vadd.f32 0.0, %v355
  %v357 = vpop.f32.mrf.mxu0
  %v358 = vadd.f32 0.0, %v357
  %359 = vmatmul.bf16.gmra.mxu0 %v247
  %v360 = vpop.f32.mrf.mxu0
  %v361 = vadd.f32 0.0, %v360
  %v362 = vpop.f32.mrf.mxu0
  %v363 = vadd.f32 0.0, %v362
  %364 = vdwg.mxu0
  %365 = vmatpush.bf16.msra.mxu0 0
  %366 = vmatpush.bf16.msra.mxu0 0
  %367 = vmatpush.bf16.msra.mxu0 0
  %368 = vmatpush.bf16.msra.mxu0 0
  %369 = vmatpush.bf16.msra.mxu0 0
  %370 = vmatpush.bf16.msra.mxu0 0
  %371 = vmatpush.bf16.msra.mxu0 %v192
  %372 = vmatpush.bf16.msra.mxu0 %v176
  %373 = vmatmul.bf16.gmra.mxu0 %v238
  %v374 = vpop.f32.mrf.mxu0
  %v375 = vadd.f32 0.0, %v374
  %v376 = vpop.f32.mrf.mxu0
  %v377 = vadd.f32 0.0, %v376
  %378 = vmatmul.bf16.gmra.mxu0 %v241
  %v379 = vpop.f32.mrf.mxu0
  %v380 = vadd.f32 0.0, %v379
  %v381 = vpop.f32.mrf.mxu0
  %v382 = vadd.f32 0.0, %v381
  %383 = vmatmul.bf16.gmra.mxu0 %v244
  %v384 = vpop.f32.mrf.mxu0
  %v385 = vadd.f32 0.0, %v384
  %v386 = vpop.f32.mrf.mxu0
  %v387 = vadd.f32 0.0, %v386
  %388 = vmatmul.bf16.gmra.mxu0 %v247
  %v389 = vpop.f32.mrf.mxu0
  %v390 = vadd.f32 0.0, %v389
  %v391 = vpop.f32.mrf.mxu0
  %v392 = vadd.f32 0.0, %v391
  %393 = vdwg.mxu0
  %394 = vmatpush.bf16.msra.mxu0 0
  %395 = vmatpush.bf16.msra.mxu0 0
  %396 = vmatpush.bf16.msra.mxu0 0
  %397 = vmatpush.bf16.msra.mxu0 0
  %398 = vmatpush.bf16.msra.mxu0 0
  %399 = vmatpush.bf16.msra.mxu0 0
  %400 = vmatpush.bf16.msra.mxu0 %v193
  %401 = vmatpush.bf16.msra.mxu0 %v177
  %402 = vmatmul.bf16.gmra.mxu0 %v238
  %v403 = vpop.f32.mrf.mxu0
  %v404 = vadd.f32 0.0, %v403
  %v405 = vpop.f32.mrf.mxu0
  %v406 = vadd.f32 0.0, %v405
  %407 = vmatmul.bf16.gmra.mxu0 %v241
  %v408 = vpop.f32.mrf.mxu0
  %v409 = vadd.f32 0.0, %v408
  %v410 = vpop.f32.mrf.mxu0
  %v411 = vadd.f32 0.0, %v410
  %412 = vmatmul.bf16.gmra.mxu0 %v244
  %v413 = vpop.f32.mrf.mxu0
  %v414 = vadd.f32 0.0, %v413
  %v415 = vpop.f32.mrf.mxu0
  %v416 = vadd.f32 0.0, %v415
  %417 = vmatmul.bf16.gmra.mxu0 %v247
  %v418 = vpop.f32.mrf.mxu0
  %v419 = vadd.f32 0.0, %v418
  %v420 = vpop.f32.mrf.mxu0
  %v421 = vadd.f32 0.0, %v420
  %422 = vdwg.mxu0
  %423 = vmatpush.bf16.msra.mxu0 0
  %424 = vmatpush.bf16.msra.mxu0 0
  %425 = vmatpush.bf16.msra.mxu0 0
  %426 = vmatpush.bf16.msra.mxu0 0
  %427 = vmatpush.bf16.msra.mxu0 0
  %428 = vmatpush.bf16.msra.mxu0 0
  %429 = vmatpush.bf16.msra.mxu0 %v194
  %430 = vmatpush.bf16.msra.mxu0 %v178
  %431 = vmatmul.bf16.gmra.mxu0 %v238
  %v432 = vpop.f32.mrf.mxu0
  %v433 = vadd.f32 0.0, %v432
  %v434 = vpop.f32.mrf.mxu0
  %v435 = vadd.f32 0.0, %v434
  %436 = vmatmul.bf16.gmra.mxu0 %v241
  %v437 = vpop.f32.mrf.mxu0
  %v438 = vadd.f32 0.0, %v437
  %v439 = vpop.f32.mrf.mxu0
  %v440 = vadd.f32 0.0, %v439
  %441 = vmatmul.bf16.gmra.mxu0 %v244
  %v442 = vpop.f32.mrf.mxu0
  %v443 = vadd.f32 0.0, %v442
  %v444 = vpop.f32.mrf.mxu0
  %v445 = vadd.f32 0.0, %v444
  %446 = vmatmul.bf16.gmra.mxu0 %v247
  %v447 = vpop.f32.mrf.mxu0
  %v448 = vadd.f32 0.0, %v447
  %v449 = vpop.f32.mrf.mxu0
  %v450 = vadd.f32 0.0, %v449
  %451 = vdwg.mxu0
  %452 = vmatpush.bf16.msra.mxu0 0
  %453 = vmatpush.bf16.msra.mxu0 0
  %454 = vmatpush.bf16.msra.mxu0 0
  %455 = vmatpush.bf16.msra.mxu0 0
  %456 = vmatpush.bf16.msra.mxu0 0
  %457 = vmatpush.bf16.msra.mxu0 0
  %458 = vmatpush.bf16.msra.mxu0 %v195
  %459 = vmatpush.bf16.msra.mxu0 %v179
  %460 = vmatmul.bf16.gmra.mxu0 %v238
  %v461 = vpop.f32.mrf.mxu0
  %v462 = vadd.f32 0.0, %v461
  %v463 = vpop.f32.mrf.mxu0
  %v464 = vadd.f32 0.0, %v463
  %465 = vmatmul.bf16.gmra.mxu0 %v241
  %v466 = vpop.f32.mrf.mxu0
  %v467 = vadd.f32 0.0, %v466
  %v468 = vpop.f32.mrf.mxu0
  %v469 = vadd.f32 0.0, %v468
  %470 = vmatmul.bf16.gmra.mxu0 %v244
  %v471 = vpop.f32.mrf.mxu0
  %v472 = vadd.f32 0.0, %v471
  %v473 = vpop.f32.mrf.mxu0
  %v474 = vadd.f32 0.0, %v473
  %475 = vmatmul.bf16.gmra.mxu0 %v247
  %v476 = vpop.f32.mrf.mxu0
  %v477 = vadd.f32 0.0, %v476
  %v478 = vpop.f32.mrf.mxu0
  %v479 = vadd.f32 0.0, %v478
  %480 = vdwg.mxu0
  %481 = vmatpush.bf16.msra.mxu0 0
  %482 = vmatpush.bf16.msra.mxu0 0
  %483 = vmatpush.bf16.msra.mxu0 0
  %484 = vmatpush.bf16.msra.mxu0 0
  %485 = vmatpush.bf16.msra.mxu0 0
  %486 = vmatpush.bf16.msra.mxu0 0
  %487 = vmatpush.bf16.msra.mxu0 %v196
  %488 = vmatpush.bf16.msra.mxu0 %v180
  %489 = vmatmul.bf16.gmra.mxu0 %v238
  %v490 = vpop.f32.mrf.mxu0
  %v491 = vadd.f32 0.0, %v490
  %v492 = vpop.f32.mrf.mxu0
  %v493 = vadd.f32 0.0, %v492
  %494 = vmatmul.bf16.gmra.mxu0 %v241
  %v495 = vpop.f32.mrf.mxu0
  %v496 = vadd.f32 0.0, %v495
  %v497 = vpop.f32.mrf.mxu0
  %v498 = vadd.f32 0.0, %v497
  %499 = vmatmul.bf16.gmra.mxu0 %v244
  %v500 = vpop.f32.mrf.mxu0
  %v501 = vadd.f32 0.0, %v500
  %v502 = vpop.f32.mrf.mxu0
  %v503 = vadd.f32 0.0, %v502
  %504 = vmatmul.bf16.gmra.mxu0 %v247
  %v505 = vpop.f32.mrf.mxu0
  %v506 = vadd.f32 0.0, %v505
  %v507 = vpop.f32.mrf.mxu0
  %v508 = vadd.f32 0.0, %v507
  %509 = vdwg.mxu0
  %510 = vmatpush.bf16.msra.mxu0 0
  %511 = vmatpush.bf16.msra.mxu0 0
  %512 = vmatpush.bf16.msra.mxu0 0
  %513 = vmatpush.bf16.msra.mxu0 0
  %514 = vmatpush.bf16.msra.mxu0 0
  %515 = vmatpush.bf16.msra.mxu0 0
  %516 = vmatpush.bf16.msra.mxu0 %v197
  %517 = vmatpush.bf16.msra.mxu0 %v181
  %518 = vmatmul.bf16.gmra.mxu0 %v238
  %v519 = vpop.f32.mrf.mxu0
  %v520 = vadd.f32 0.0, %v519
  %v521 = vpop.f32.mrf.mxu0
  %v522 = vadd.f32 0.0, %v521
  %523 = vmatmul.bf16.gmra.mxu0 %v241
  %v524 = vpop.f32.mrf.mxu0
  %v525 = vadd.f32 0.0, %v524
  %v526 = vpop.f32.mrf.mxu0
  %v527 = vadd.f32 0.0, %v526
  %528 = vmatmul.bf16.gmra.mxu0 %v244
  %v529 = vpop.f32.mrf.mxu0
  %v530 = vadd.f32 0.0, %v529
  %v531 = vpop.f32.mrf.mxu0
  %v532 = vadd.f32 0.0, %v531
  %533 = vmatmul.bf16.gmra.mxu0 %v247
  %v534 = vpop.f32.mrf.mxu0
  %v535 = vadd.f32 0.0, %v534
  %v536 = vpop.f32.mrf.mxu0
  %v537 = vadd.f32 0.0, %v536
  %538 = vdwg.mxu0
  %539 = vmatpush.bf16.msra.mxu0 0
  %540 = vmatpush.bf16.msra.mxu0 0
  %541 = vmatpush.bf16.msra.mxu0 0
  %542 = vmatpush.bf16.msra.mxu0 0
  %543 = vmatpush.bf16.msra.mxu0 0
  %544 = vmatpush.bf16.msra.mxu0 0
  %545 = vmatpush.bf16.msra.mxu0 %v198
  %546 = vmatpush.bf16.msra.mxu0 %v182
  %547 = vmatmul.bf16.gmra.mxu0 %v238
  %v548 = vpop.f32.mrf.mxu0
  %v549 = vadd.f32 0.0, %v548
  %v550 = vpop.f32.mrf.mxu0
  %v551 = vadd.f32 0.0, %v550
  %552 = vmatmul.bf16.gmra.mxu0 %v241
  %v553 = vpop.f32.mrf.mxu0
  %v554 = vadd.f32 0.0, %v553
  %v555 = vpop.f32.mrf.mxu0
  %v556 = vadd.f32 0.0, %v555
  %557 = vmatmul.bf16.gmra.mxu0 %v244
  %v558 = vpop.f32.mrf.mxu0
  %v559 = vadd.f32 0.0, %v558
  %v560 = vpop.f32.mrf.mxu0
  %v561 = vadd.f32 0.0, %v560
  %562 = vmatmul.bf16.gmra.mxu0 %v247
  %v563 = vpop.f32.mrf.mxu0
  %v564 = vadd.f32 0.0, %v563
  %v565 = vpop.f32.mrf.mxu0
  %v566 = vadd.f32 0.0, %v565
  %567 = vdwg.mxu0
  %568 = vmatpush.bf16.msra.mxu0 0
  %569 = vmatpush.bf16.msra.mxu0 0
  %570 = vmatpush.bf16.msra.mxu0 0
  %571 = vmatpush.bf16.msra.mxu0 0
  %572 = vmatpush.bf16.msra.mxu0 0
  %573 = vmatpush.bf16.msra.mxu0 0
  %574 = vmatpush.bf16.msra.mxu0 %v199
  %575 = vmatpush.bf16.msra.mxu0 %v183
  %576 = vmatmul.bf16.gmra.mxu0 %v238
  %v577 = vpop.f32.mrf.mxu0
  %v578 = vadd.f32 0.0, %v577
  %v579 = vpop.f32.mrf.mxu0
  %v580 = vadd.f32 0.0, %v579
  %581 = vmatmul.bf16.gmra.mxu0 %v241
  %v582 = vpop.f32.mrf.mxu0
  %v583 = vadd.f32 0.0, %v582
  %v584 = vpop.f32.mrf.mxu0
  %v585 = vadd.f32 0.0, %v584
  %586 = vmatmul.bf16.gmra.mxu0 %v244
  %v587 = vpop.f32.mrf.mxu0
  %v588 = vadd.f32 0.0, %v587
  %v589 = vpop.f32.mrf.mxu0
  %v590 = vadd.f32 0.0, %v589
  %591 = vmatmul.bf16.gmra.mxu0 %v247
  %v592 = vpop.f32.mrf.mxu0
  %v593 = vadd.f32 0.0, %v592
  %v594 = vpop.f32.mrf.mxu0
  %v595 = vadd.f32 0.0, %v594
  %596 = vdwg.mxu0
  %597 = vmatpush.bf16.msra.mxu0 0
  %598 = vmatpush.bf16.msra.mxu0 0
  %599 = vmatpush.bf16.msra.mxu0 0
  %600 = vmatpush.bf16.msra.mxu0 0
  %601 = vmatpush.bf16.msra.mxu0 0
  %602 = vmatpush.bf16.msra.mxu0 0
  %603 = vmatpush.bf16.msra.mxu0 %v200
  %604 = vmatpush.bf16.msra.mxu0 %v184
  %605 = vmatmul.bf16.gmra.mxu0 %v238
  %v606 = vpop.f32.mrf.mxu0
  %v607 = vadd.f32 0.0, %v606
  %v608 = vpop.f32.mrf.mxu0
  %v609 = vadd.f32 0.0, %v608
  %610 = vmatmul.bf16.gmra.mxu0 %v241
  %v611 = vpop.f32.mrf.mxu0
  %v612 = vadd.f32 0.0, %v611
  %v613 = vpop.f32.mrf.mxu0
  %v614 = vadd.f32 0.0, %v613
  %615 = vmatmul.bf16.gmra.mxu0 %v244
  %v616 = vpop.f32.mrf.mxu0
  %v617 = vadd.f32 0.0, %v616
  %v618 = vpop.f32.mrf.mxu0
  %v619 = vadd.f32 0.0, %v618
  %620 = vmatmul.bf16.gmra.mxu0 %v247
  %v621 = vpop.f32.mrf.mxu0
  %v622 = vadd.f32 0.0, %v621
  %v623 = vpop.f32.mrf.mxu0
  %v624 = vadd.f32 0.0, %v623
  %625 = vdwg.mxu0
  %626 = vmatpush.bf16.msra.mxu0 0
  %627 = vmatpush.bf16.msra.mxu0 0
  %628 = vmatpush.bf16.msra.mxu0 0
  %629 = vmatpush.bf16.msra.mxu0 0
  %630 = vmatpush.bf16.msra.mxu0 0
  %631 = vmatpush.bf16.msra.mxu0 0
  %632 = vmatpush.bf16.msra.mxu0 %v201
  %633 = vmatpush.bf16.msra.mxu0 %v185
  %634 = vmatmul.bf16.gmra.mxu0 %v238
  %v635 = vpop.f32.mrf.mxu0
  %v636 = vadd.f32 0.0, %v635
  %v637 = vpop.f32.mrf.mxu0
  %v638 = vadd.f32 0.0, %v637
  %639 = vmatmul.bf16.gmra.mxu0 %v241
  %v640 = vpop.f32.mrf.mxu0
  %v641 = vadd.f32 0.0, %v640
  %v642 = vpop.f32.mrf.mxu0
  %v643 = vadd.f32 0.0, %v642
  %644 = vmatmul.bf16.gmra.mxu0 %v244
  %v645 = vpop.f32.mrf.mxu0
  %v646 = vadd.f32 0.0, %v645
  %v647 = vpop.f32.mrf.mxu0
  %v648 = vadd.f32 0.0, %v647
  %649 = vmatmul.bf16.gmra.mxu0 %v247
  %v650 = vpop.f32.mrf.mxu0
  %v651 = vadd.f32 0.0, %v650
  %v652 = vpop.f32.mrf.mxu0
  %v653 = vadd.f32 0.0, %v652
  %654 = vdwg.mxu0
  %655 = vmatpush.bf16.msra.mxu0 0
  %656 = vmatpush.bf16.msra.mxu0 0
  %657 = vmatpush.bf16.msra.mxu0 0
  %658 = vmatpush.bf16.msra.mxu0 0
  %659 = vmatpush.bf16.msra.mxu0 0
  %660 = vmatpush.bf16.msra.mxu0 0
  %661 = vmatpush.bf16.msra.mxu0 %v202
  %662 = vmatpush.bf16.msra.mxu0 %v186
  %663 = vmatmul.bf16.gmra.mxu0 %v238
  %v664 = vpop.f32.mrf.mxu0
  %v665 = vadd.f32 0.0, %v664
  %v666 = vpop.f32.mrf.mxu0
  %v667 = vadd.f32 0.0, %v666
  %668 = vmatmul.bf16.gmra.mxu0 %v241
  %v669 = vpop.f32.mrf.mxu0
  %v670 = vadd.f32 0.0, %v669
  %v671 = vpop.f32.mrf.mxu0
  %v672 = vadd.f32 0.0, %v671
  %673 = vmatmul.bf16.gmra.mxu0 %v244
  %v674 = vpop.f32.mrf.mxu0
  %v675 = vadd.f32 0.0, %v674
  %v676 = vpop.f32.mrf.mxu0
  %v677 = vadd.f32 0.0, %v676
  %678 = vmatmul.bf16.gmra.mxu0 %v247
  %v679 = vpop.f32.mrf.mxu0
  %v680 = vadd.f32 0.0, %v679
  %v681 = vpop.f32.mrf.mxu0
  %v682 = vadd.f32 0.0, %v681
  %683 = vdwg.mxu0
  %684 = vmatpush.bf16.msra.mxu0 0
  %685 = vmatpush.bf16.msra.mxu0 0
  %686 = vmatpush.bf16.msra.mxu0 0
  %687 = vmatpush.bf16.msra.mxu0 0
  %688 = vmatpush.bf16.msra.mxu0 0
  %689 = vmatpush.bf16.msra.mxu0 0
  %690 = vmatpush.bf16.msra.mxu0 %v203
  %691 = vmatpush.bf16.msra.mxu0 %v187
  %692 = vmatmul.bf16.gmra.mxu0 %v238
  %v693 = vpop.f32.mrf.mxu0
  %v694 = vadd.f32 0.0, %v693
  %v695 = vpop.f32.mrf.mxu0
  %v696 = vadd.f32 0.0, %v695
  %697 = vmatmul.bf16.gmra.mxu0 %v241
  %v698 = vpop.f32.mrf.mxu0
  %v699 = vadd.f32 0.0, %v698
  %v700 = vpop.f32.mrf.mxu0
  %v701 = vadd.f32 0.0, %v700
  %702 = vmatmul.bf16.gmra.mxu0 %v244
  %v703 = vpop.f32.mrf.mxu0
  %v704 = vadd.f32 0.0, %v703
  %v705 = vpop.f32.mrf.mxu0
  %v706 = vadd.f32 0.0, %v705
  %707 = vmatmul.bf16.gmra.mxu0 %v247
  %v708 = vpop.f32.mrf.mxu0
  %v709 = vadd.f32 0.0, %v708
  %v710 = vpop.f32.mrf.mxu0
  %v711 = vadd.f32 0.0, %v710
  %712 = vdwg.mxu0
  %713 = vst [vmem:[#allocation2] sm:$0xff] %v259
  %714 = vst [vmem:[#allocation2 + $0x8] sm:$0xff] %v288
  %715 = vst [vmem:[#allocation2 + $0x10] sm:$0xff] %v317
  %716 = vst [vmem:[#allocation2 + $0x18] sm:$0xff] %v346
  %717 = vst [vmem:[#allocation2 + $0x20] sm:$0xff] %v375
  %718 = vst [vmem:[#allocation2 + $0x28] sm:$0xff] %v404
  %719 = vst [vmem:[#allocation2 + $0x30] sm:$0xff] %v433
  %720 = vst [vmem:[#allocation2 + $0x38] sm:$0xff] %v462
  %721 = vst [vmem:[#allocation2 + $0x40] sm:$0xff] %v491
  %722 = vst [vmem:[#allocation2 + $0x48] sm:$0xff] %v520
  %723 = vst [vmem:[#allocation2 + $0x50] sm:$0xff] %v549
  %724 = vst [vmem:[#allocation2 + $0x58] sm:$0xff] %v578
  %725 = vst [vmem:[#allocation2 + $0x60] sm:$0xff] %v607
  %726 = vst [vmem:[#allocation2 + $0x68] sm:$0xff] %v636
  %727 = vst [vmem:[#allocation2 + $0x70] sm:$0xff] %v665
  %728 = vst [vmem:[#allocation2 + $0x78] sm:$0xff] %v694
  %729 = vst [vmem:[#allocation2 + $0x80] sm:$0xff] %v261
  %730 = vst [vmem:[#allocation2 + $0x88] sm:$0xff] %v290
  %731 = vst [vmem:[#allocation2 + $0x90] sm:$0xff] %v319
  %732 = vst [vmem:[#allocation2 + $0x98] sm:$0xff] %v348
  %733 = vst [vmem:[#allocation2 + $0xa0] sm:$0xff] %v377
  %734 = vst [vmem:[#allocation2 + $0xa8] sm:$0xff] %v406
  %735 = vst [vmem:[#allocation2 + $0xb0] sm:$0xff] %v435
  %736 = vst [vmem:[#allocation2 + $0xb8] sm:$0xff] %v464
  %737 = vst [vmem:[#allocation2 + $0xc0] sm:$0xff] %v493
  %738 = vst [vmem:[#allocation2 + $0xc8] sm:$0xff] %v522
  %739 = vst [vmem:[#allocation2 + $0xd0] sm:$0xff] %v551
  %740 = vst [vmem:[#allocation2 + $0xd8] sm:$0xff] %v580
  %741 = vst [vmem:[#allocation2 + $0xe0] sm:$0xff] %v609
  %742 = vst [vmem:[#allocation2 + $0xe8] sm:$0xff] %v638
  %743 = vst [vmem:[#allocation2 + $0xf0] sm:$0xff] %v667
  %744 = vst [vmem:[#allocation2 + $0xf8] sm:$0xff] %v696
  %745 = vst [vmem:[#allocation2 + $0x100] sm:$0xff] %v264
  %746 = vst [vmem:[#allocation2 + $0x108] sm:$0xff] %v293
  %747 = vst [vmem:[#allocation2 + $0x110] sm:$0xff] %v322
  %748 = vst [vmem:[#allocation2 + $0x118] sm:$0xff] %v351
  %749 = vst [vmem:[#allocation2 + $0x120] sm:$0xff] %v380
  %750 = vst [vmem:[#allocation2 + $0x128] sm:$0xff] %v409
  %751 = vst [vmem:[#allocation2 + $0x130] sm:$0xff] %v438
  %752 = vst [vmem:[#allocation2 + $0x138] sm:$0xff] %v467
  %753 = vst [vmem:[#allocation2 + $0x140] sm:$0xff] %v496
  %754 = vst [vmem:[#allocation2 + $0x148] sm:$0xff] %v525
  %755 = vst [vmem:[#allocation2 + $0x150] sm:$0xff] %v554
  %756 = vst [vmem:[#allocation2 + $0x158] sm:$0xff] %v583
  %757 = vst [vmem:[#allocation2 + $0x160] sm:$0xff] %v612
  %758 = vst [vmem:[#allocation2 + $0x168] sm:$0xff] %v641
  %759 = vst [vmem:[#allocation2 + $0x170] sm:$0xff] %v670
  %760 = vst [vmem:[#allocation2 + $0x178] sm:$0xff] %v699
  %761 = vst [vmem:[#allocation2 + $0x180] sm:$0xff] %v266
  %762 = vst [vmem:[#allocation2 + $0x188] sm:$0xff] %v295
  %763 = vst [vmem:[#allocation2 + $0x190] sm:$0xff] %v324
  %764 = vst [vmem:[#allocation2 + $0x198] sm:$0xff] %v353
  %765 = vst [vmem:[#allocation2 + $0x1a0] sm:$0xff] %v382
  %766 = vst [vmem:[#allocation2 + $0x1a8] sm:$0xff] %v411
  %767 = vst [vmem:[#allocation2 + $0x1b0] sm:$0xff] %v440
  %768 = vst [vmem:[#allocation2 + $0x1b8] sm:$0xff] %v469
  %769 = vst [vmem:[#allocation2 + $0x1c0] sm:$0xff] %v498
  %770 = vst [vmem:[#allocation2 + $0x1c8] sm:$0xff] %v527
  %771 = vst [vmem:[#allocation2 + $0x1d0] sm:$0xff] %v556
  %772 = vst [vmem:[#allocation2 + $0x1d8] sm:$0xff] %v585
  %773 = vst [vmem:[#allocation2 + $0x1e0] sm:$0xff] %v614
  %774 = vst [vmem:[#allocation2 + $0x1e8] sm:$0xff] %v643
  %775 = vst [vmem:[#allocation2 + $0x1f0] sm:$0xff] %v672
  %776 = vst [vmem:[#allocation2 + $0x1f8] sm:$0xff] %v701
  %777 = vst [vmem:[#allocation2 + $0x200] sm:$0xff] %v269
  %778 = vst [vmem:[#allocation2 + $0x208] sm:$0xff] %v298
  %779 = vst [vmem:[#allocation2 + $0x210] sm:$0xff] %v327
  %780 = vst [vmem:[#allocation2 + $0x218] sm:$0xff] %v356
  %781 = vst [vmem:[#allocation2 + $0x220] sm:$0xff] %v385
  %782 = vst [vmem:[#allocation2 + $0x228] sm:$0xff] %v414
  %783 = vst [vmem:[#allocation2 + $0x230] sm:$0xff] %v443
  %784 = vst [vmem:[#allocation2 + $0x238] sm:$0xff] %v472
  %785 = vst [vmem:[#allocation2 + $0x240] sm:$0xff] %v501
  %786 = vst [vmem:[#allocation2 + $0x248] sm:$0xff] %v530
  %787 = vst [vmem:[#allocation2 + $0x250] sm:$0xff] %v559
  %788 = vst [vmem:[#allocation2 + $0x258] sm:$0xff] %v588
  %789 = vst [vmem:[#allocation2 + $0x260] sm:$0xff] %v617
  %790 = vst [vmem:[#allocation2 + $0x268] sm:$0xff] %v646
  %791 = vst [vmem:[#allocation2 + $0x270] sm:$0xff] %v675
  %792 = vst [vmem:[#allocation2 + $0x278] sm:$0xff] %v704
  %793 = vst [vmem:[#allocation2 + $0x280] sm:$0xff] %v271
  %794 = vst [vmem:[#allocation2 + $0x288] sm:$0xff] %v300
  %795 = vst [vmem:[#allocation2 + $0x290] sm:$0xff] %v329
  %796 = vst [vmem:[#allocation2 + $0x298] sm:$0xff] %v358
  %797 = vst [vmem:[#allocation2 + $0x2a0] sm:$0xff] %v387
  %798 = vst [vmem:[#allocation2 + $0x2a8] sm:$0xff] %v416
  %799 = vst [vmem:[#allocation2 + $0x2b0] sm:$0xff] %v445
  %800 = vst [vmem:[#allocation2 + $0x2b8] sm:$0xff] %v474
  %801 = vst [vmem:[#allocation2 + $0x2c0] sm:$0xff] %v503
  %802 = vst [vmem:[#allocation2 + $0x2c8] sm:$0xff] %v532
  %803 = vst [vmem:[#allocation2 + $0x2d0] sm:$0xff] %v561
  %804 = vst [vmem:[#allocation2 + $0x2d8] sm:$0xff] %v590
  %805 = vst [vmem:[#allocation2 + $0x2e0] sm:$0xff] %v619
  %806 = vst [vmem:[#allocation2 + $0x2e8] sm:$0xff] %v648
  %807 = vst [vmem:[#allocation2 + $0x2f0] sm:$0xff] %v677
  %808 = vst [vmem:[#allocation2 + $0x2f8] sm:$0xff] %v706
  %809 = vst [vmem:[#allocation2 + $0x300] sm:$0xff] %v274
  %810 = vst [vmem:[#allocation2 + $0x308] sm:$0xff] %v303
  %811 = vst [vmem:[#allocation2 + $0x310] sm:$0xff] %v332
  %812 = vst [vmem:[#allocation2 + $0x318] sm:$0xff] %v361
  %813 = vst [vmem:[#allocation2 + $0x320] sm:$0xff] %v390
  %814 = vst [vmem:[#allocation2 + $0x328] sm:$0xff] %v419
  %815 = vst [vmem:[#allocation2 + $0x330] sm:$0xff] %v448
  %816 = vst [vmem:[#allocation2 + $0x338] sm:$0xff] %v477
  %817 = vst [vmem:[#allocation2 + $0x340] sm:$0xff] %v506
  %818 = vst [vmem:[#allocation2 + $0x348] sm:$0xff] %v535
  %819 = vst [vmem:[#allocation2 + $0x350] sm:$0xff] %v564
  %820 = vst [vmem:[#allocation2 + $0x358] sm:$0xff] %v593
  %821 = vst [vmem:[#allocation2 + $0x360] sm:$0xff] %v622
  %822 = vst [vmem:[#allocation2 + $0x368] sm:$0xff] %v651
  %823 = vst [vmem:[#allocation2 + $0x370] sm:$0xff] %v680
  %824 = vst [vmem:[#allocation2 + $0x378] sm:$0xff] %v709
  %825 = vst [vmem:[#allocation2 + $0x380] sm:$0xff] %v276
  %826 = vst [vmem:[#allocation2 + $0x388] sm:$0xff] %v305
  %827 = vst [vmem:[#allocation2 + $0x390] sm:$0xff] %v334
  %828 = vst [vmem:[#allocation2 + $0x398] sm:$0xff] %v363
  %829 = vst [vmem:[#allocation2 + $0x3a0] sm:$0xff] %v392
  %830 = vst [vmem:[#allocation2 + $0x3a8] sm:$0xff] %v421
  %831 = vst [vmem:[#allocation2 + $0x3b0] sm:$0xff] %v450
  %832 = vst [vmem:[#allocation2 + $0x3b8] sm:$0xff] %v479
  %833 = vst [vmem:[#allocation2 + $0x3c0] sm:$0xff] %v508
  %834 = vst [vmem:[#allocation2 + $0x3c8] sm:$0xff] %v537
  %835 = vst [vmem:[#allocation2 + $0x3d0] sm:$0xff] %v566
  %836 = vst [vmem:[#allocation2 + $0x3d8] sm:$0xff] %v595
  %837 = vst [vmem:[#allocation2 + $0x3e0] sm:$0xff] %v624
  %838 = vst [vmem:[#allocation2 + $0x3e8] sm:$0xff] %v653
  %839 = vst [vmem:[#allocation2 + $0x3f0] sm:$0xff] %v682
  %840 = vst [vmem:[#allocation2 + $0x3f8] sm:$0xff] %v711
  %v841 = vld [vmem:[#allocation2 + $0x20] sm:$0xff]
  %v842 = vld [vmem:[#allocation2 + $0x28] sm:$0xff]
  %v843 = vld [vmem:[#allocation2 + $0x30] sm:$0xff]
  %v844 = vld [vmem:[#allocation2 + $0x38] sm:$0xff]
  %v845 = vld [vmem:[#allocation2 + $0x40] sm:$0xff]
  %v846 = vld [vmem:[#allocation2 + $0x48] sm:$0xff]
  %v847 = vld [vmem:[#allocation2 + $0x50] sm:$0xff]
  %v848 = vld [vmem:[#allocation2 + $0x58] sm:$0xff]
  %v849 = vld [vmem:[#allocation2 + $0x60] sm:$0xff]
  %v850 = vld [vmem:[#allocation2 + $0x68] sm:$0xff]
  %v851 = vld [vmem:[#allocation2 + $0x70] sm:$0xff]
  %v852 = vld [vmem:[#allocation2 + $0x78] sm:$0xff]
  %v853 = vld [vmem:[#allocation2 + $0xa0] sm:$0xff]
  %v854 = vld [vmem:[#allocation2 + $0xa8] sm:$0xff]
  %v855 = vld [vmem:[#allocation2 + $0xb0] sm:$0xff]
  %v856 = vld [vmem:[#allocation2 + $0xb8] sm:$0xff]
  %v857 = vld [vmem:[#allocation2 + $0xc0] sm:$0xff]
  %v858 = vld [vmem:[#allocation2 + $0xc8] sm:$0xff]
  %v859 = vld [vmem:[#allocation2 + $0xd0] sm:$0xff]
  %v860 = vld [vmem:[#allocation2 + $0xd8] sm:$0xff]
  %v861 = vld [vmem:[#allocation2 + $0xe0] sm:$0xff]
  %v862 = vld [vmem:[#allocation2 + $0xe8] sm:$0xff]
  %v863 = vld [vmem:[#allocation2 + $0xf0] sm:$0xff]
  %v864 = vld [vmem:[#allocation2 + $0xf8] sm:$0xff]
  %v865 = vld [vmem:[#allocation2 + $0x120] sm:$0xff]
  %v866 = vld [vmem:[#allocation2 + $0x128] sm:$0xff]
  %v867 = vld [vmem:[#allocation2 + $0x130] sm:$0xff]
  %v868 = vld [vmem:[#allocation2 + $0x138] sm:$0xff]
  %v869 = vld [vmem:[#allocation2 + $0x140] sm:$0xff]
  %v870 = vld [vmem:[#allocation2 + $0x148] sm:$0xff]
  %v871 = vld [vmem:[#allocation2 + $0x150] sm:$0xff]
  %v872 = vld [vmem:[#allocation2 + $0x158] sm:$0xff]
  %v873 = vld [vmem:[#allocation2 + $0x160] sm:$0xff]
  %v874 = vld [vmem:[#allocation2 + $0x168] sm:$0xff]
  %v875 = vld [vmem:[#allocation2 + $0x170] sm:$0xff]
  %v876 = vld [vmem:[#allocation2 + $0x178] sm:$0xff]
  %v877 = vld [vmem:[#allocation2 + $0x1a0] sm:$0xff]
  %v878 = vld [vmem:[#allocation2 + $0x1a8] sm:$0xff]
  %v879 = vld [vmem:[#allocation2 + $0x1b0] sm:$0xff]
  %v880 = vld [vmem:[#allocation2 + $0x1b8] sm:$0xff]
  %v881 = vld [vmem:[#allocation2 + $0x1c0] sm:$0xff]
  %v882 = vld [vmem:[#allocation2 + $0x1c8] sm:$0xff]
  %v883 = vld [vmem:[#allocation2 + $0x1d0] sm:$0xff]
  %v884 = vld [vmem:[#allocation2 + $0x1d8] sm:$0xff]
  %v885 = vld [vmem:[#allocation2 + $0x1e0] sm:$0xff]
  %v886 = vld [vmem:[#allocation2 + $0x1e8] sm:$0xff]
  %v887 = vld [vmem:[#allocation2 + $0x1f0] sm:$0xff]
  %v888 = vld [vmem:[#allocation2 + $0x1f8] sm:$0xff]
  %v889 = vld [vmem:[#allocation2 + $0x220] sm:$0xff]
  %v890 = vld [vmem:[#allocation2 + $0x228] sm:$0xff]
  %v891 = vld [vmem:[#allocation2 + $0x230] sm:$0xff]
  %v892 = vld [vmem:[#allocation2 + $0x238] sm:$0xff]
  %v893 = vld [vmem:[#allocation2 + $0x240] sm:$0xff]
  %v894 = vld [vmem:[#allocation2 + $0x248] sm:$0xff]
  %v895 = vld [vmem:[#allocation2 + $0x250] sm:$0xff]
  %v896 = vld [vmem:[#allocation2 + $0x258] sm:$0xff]
  %v897 = vld [vmem:[#allocation2 + $0x260] sm:$0xff]
  %v898 = vld [vmem:[#allocation2 + $0x268] sm:$0xff]
  %v899 = vld [vmem:[#allocation2 + $0x270] sm:$0xff]
  %v900 = vld [vmem:[#allocation2 + $0x278] sm:$0xff]
  %v901 = vld [vmem:[#allocation2 + $0x2a0] sm:$0xff]
  %v902 = vld [vmem:[#allocation2 + $0x2a8] sm:$0xff]
  %v903 = vld [vmem:[#allocation2 + $0x2b0] sm:$0xff]
  %v904 = vld [vmem:[#allocation2 + $0x2b8] sm:$0xff]
  %v905 = vld [vmem:[#allocation2 + $0x2c0] sm:$0xff]
  %v906 = vld [vmem:[#allocation2 + $0x2c8] sm:$0xff]
  %v907 = vld [vmem:[#allocation2 + $0x2d0] sm:$0xff]
  %v908 = vld [vmem:[#allocation2 + $0x2d8] sm:$0xff]
  %v909 = vld [vmem:[#allocation2 + $0x2e0] sm:$0xff]
  %v910 = vld [vmem:[#allocation2 + $0x2e8] sm:$0xff]
  %v911 = vld [vmem:[#allocation2 + $0x2f0] sm:$0xff]
  %v912 = vld [vmem:[#allocation2 + $0x2f8] sm:$0xff]
  %v913 = vld [vmem:[#allocation2 + $0x320] sm:$0xff]
  %v914 = vld [vmem:[#allocation2 + $0x328] sm:$0xff]
  %v915 = vld [vmem:[#allocation2 + $0x330] sm:$0xff]
  %v916 = vld [vmem:[#allocation2 + $0x338] sm:$0xff]
  %v917 = vld [vmem:[#allocation2 + $0x340] sm:$0xff]
  %v918 = vld [vmem:[#allocation2 + $0x348] sm:$0xff]
  %v919 = vld [vmem:[#allocation2 + $0x350] sm:$0xff]
  %v920 = vld [vmem:[#allocation2 + $0x358] sm:$0xff]
  %v921 = vld [vmem:[#allocation2 + $0x360] sm:$0xff]
  %v922 = vld [vmem:[#allocation2 + $0x368] sm:$0xff]
  %v923 = vld [vmem:[#allocation2 + $0x370] sm:$0xff]
  %v924 = vld [vmem:[#allocation2 + $0x378] sm:$0xff]
  %v925 = vld [vmem:[#allocation2 + $0x3a0] sm:$0xff]
  %v926 = vld [vmem:[#allocation2 + $0x3a8] sm:$0xff]
  %v927 = vld [vmem:[#allocation2 + $0x3b0] sm:$0xff]
  %v928 = vld [vmem:[#allocation2 + $0x3b8] sm:$0xff]
  %v929 = vld [vmem:[#allocation2 + $0x3c0] sm:$0xff]
  %v930 = vld [vmem:[#allocation2 + $0x3c8] sm:$0xff]
  %v931 = vld [vmem:[#allocation2 + $0x3d0] sm:$0xff]
  %v932 = vld [vmem:[#allocation2 + $0x3d8] sm:$0xff]
  %v933 = vld [vmem:[#allocation2 + $0x3e0] sm:$0xff]
  %v934 = vld [vmem:[#allocation2 + $0x3e8] sm:$0xff]
  %v935 = vld [vmem:[#allocation2 + $0x3f0] sm:$0xff]
  %v936 = vld [vmem:[#allocation2 + $0x3f8] sm:$0xff]
  %v937 = vld [vmem:[%s1] sm:$0xf]
  %v938 = vld [vmem:[%s1 + $0x4] sm:$0xf]
  %v939 = vld [vmem:[%s1 + $0x8] sm:$0xf]
  %v940 = vld [vmem:[%s1 + $0xc] sm:$0xf]
  %v941 = vld [vmem:[%s1 + $0x10] sm:$0xf]
  %v942 = vld [vmem:[%s1 + $0x14] sm:$0xf]
  %v943 = vld [vmem:[%s1 + $0x18] sm:$0xf]
  %v944 = vld [vmem:[%s1 + $0x1c] sm:$0xf]
  %v945 = vld [vmem:[%s0] sm:$0xff]
  %v946 = vld [vmem:[%s0 + $0x8] sm:$0xff]
  %v947 = vld [vmem:[%s0 + $0x10] sm:$0xff]
  %v948 = vld [vmem:[%s0 + $0x18] sm:$0xff]
  %v949 = vld [vmem:[%s0 + $0x20] sm:$0xff]
  %v950 = vld [vmem:[%s0 + $0x28] sm:$0xff]
  %v951 = vld [vmem:[%s0 + $0x40] sm:$0xff]
  %v952 = vld [vmem:[%s0 + $0x48] sm:$0xff]
  %v953 = vld [vmem:[%s0 + $0x50] sm:$0xff]
  %v954 = vld [vmem:[%s0 + $0x58] sm:$0xff]
  %v955 = vld [vmem:[%s0 + $0x60] sm:$0xff]
  %v956 = vld [vmem:[%s0 + $0x68] sm:$0xff]
  %v957 = vld [vmem:[%s0 + $0x80] sm:$0xff]
  %v958 = vld [vmem:[%s0 + $0x88] sm:$0xff]
  %v959 = vld [vmem:[%s0 + $0x90] sm:$0xff]
  %v960 = vld [vmem:[%s0 + $0x98] sm:$0xff]
  %v961 = vld [vmem:[%s0 + $0xa0] sm:$0xff]
  %v962 = vld [vmem:[%s0 + $0xa8] sm:$0xff]
  %v963 = vld [vmem:[%s0 + $0xc0] sm:$0xff]
  %v964 = vld [vmem:[%s0 + $0xc8] sm:$0xff]
  %v965 = vld [vmem:[%s0 + $0xd0] sm:$0xff]
  %v966 = vld [vmem:[%s0 + $0xd8] sm:$0xff]
  %v967 = vld [vmem:[%s0 + $0xe0] sm:$0xff]
  %v968 = vld [vmem:[%s0 + $0xe8] sm:$0xff]
  %v977 = vunpack.c.l.b16 %v937
  %v978 = vunpack.c.l.b16 %v938
  %v979 = vunpack.c.l.b16 %v939
  %v980 = vunpack.c.l.b16 %v940
  %v981 = vunpack.c.l.b16 %v941
  %v982 = vunpack.c.l.b16 %v942
  %v983 = vunpack.c.l.b16 %v943
  %v984 = vunpack.c.l.b16 %v944
  %v985 = vpack.c.b16 %v978, %v977
  %v986 = vpack.c.b16 %v980, %v979
  %v987 = vpack.c.b16 %v982, %v981
  %v988 = vpack.c.b16 %v984, %v983
  %v1013 = vunpack.c.l.b16 %v945
  %v1014 = vunpack.c.h.b16 %v945
  %v1015 = vunpack.c.l.b16 %v946
  %v1016 = vunpack.c.h.b16 %v946
  %v1017 = vunpack.c.l.b16 %v947
  %v1018 = vunpack.c.h.b16 %v947
  %v1019 = vunpack.c.l.b16 %v948
  %v1020 = vunpack.c.h.b16 %v948
  %v1021 = vunpack.c.l.b16 %v949
  %v1022 = vunpack.c.h.b16 %v949
  %v1023 = vunpack.c.l.b16 %v950
  %v1024 = vunpack.c.h.b16 %v950
  %v1025 = vunpack.c.l.b16 %v951
  %v1026 = vunpack.c.h.b16 %v951
  %v1027 = vunpack.c.l.b16 %v952
  %v1028 = vunpack.c.h.b16 %v952
  %v1029 = vunpack.c.l.b16 %v953
  %v1030 = vunpack.c.h.b16 %v953
  %v1031 = vunpack.c.l.b16 %v954
  %v1032 = vunpack.c.h.b16 %v954
  %v1033 = vunpack.c.l.b16 %v955
  %v1034 = vunpack.c.h.b16 %v955
  %v1035 = vunpack.c.l.b16 %v956
  %v1036 = vunpack.c.h.b16 %v956
  %v1037 = vunpack.c.l.b16 %v957
  %v1038 = vunpack.c.h.b16 %v957
  %v1039 = vunpack.c.l.b16 %v958
  %v1040 = vunpack.c.h.b16 %v958
  %v1041 = vunpack.c.l.b16 %v959
  %v1042 = vunpack.c.h.b16 %v959
  %v1043 = vunpack.c.l.b16 %v960
  %v1044 = vunpack.c.h.b16 %v960
  %v1045 = vunpack.c.l.b16 %v961
  %v1046 = vunpack.c.h.b16 %v961
  %v1047 = vunpack.c.l.b16 %v962
  %v1048 = vunpack.c.h.b16 %v962
  %v1049 = vunpack.c.l.b16 %v963
  %v1050 = vunpack.c.h.b16 %v963
  %v1051 = vunpack.c.l.b16 %v964
  %v1052 = vunpack.c.h.b16 %v964
  %v1053 = vunpack.c.l.b16 %v965
  %v1054 = vunpack.c.h.b16 %v965
  %v1055 = vunpack.c.l.b16 %v966
  %v1056 = vunpack.c.h.b16 %v966
  %v1057 = vunpack.c.l.b16 %v967
  %v1058 = vunpack.c.h.b16 %v967
  %v1059 = vunpack.c.l.b16 %v968
  %v1060 = vunpack.c.h.b16 %v968
  %v1061 = vpack.c.b16 %v1025, %v1013
  %v1062 = vpack.c.b16 %v1026, %v1014
  %v1063 = vpack.c.b16 %v1027, %v1015
  %v1064 = vpack.c.b16 %v1028, %v1016
  %v1065 = vpack.c.b16 %v1029, %v1017
  %v1066 = vpack.c.b16 %v1030, %v1018
  %v1067 = vpack.c.b16 %v1031, %v1019
  %v1068 = vpack.c.b16 %v1032, %v1020
  %v1069 = vpack.c.b16 %v1033, %v1021
  %v1070 = vpack.c.b16 %v1034, %v1022
  %v1071 = vpack.c.b16 %v1035, %v1023
  %v1072 = vpack.c.b16 %v1036, %v1024
  %v1073 = vpack.c.b16 %v1049, %v1037
  %v1074 = vpack.c.b16 %v1050, %v1038
  %v1075 = vpack.c.b16 %v1051, %v1039
  %v1076 = vpack.c.b16 %v1052, %v1040
  %v1077 = vpack.c.b16 %v1053, %v1041
  %v1078 = vpack.c.b16 %v1054, %v1042
  %v1079 = vpack.c.b16 %v1055, %v1043
  %v1080 = vpack.c.b16 %v1056, %v1044
  %v1081 = vpack.c.b16 %v1057, %v1045
  %v1082 = vpack.c.b16 %v1058, %v1046
  %v1083 = vpack.c.b16 %v1059, %v1047
  %v1084 = vpack.c.b16 %v1060, %v1048
  %v1110 = vsel %vm236, %v985, 0
  %v1113 = vsel %vm236, %v986, 0
  %v1116 = vsel %vm236, %v987, 0
  %v1119 = vsel %vm236, %v988, 0
  %1121 = vmatpush.bf16.msra.mxu0 0
  %1122 = vmatpush.bf16.msra.mxu0 0
  %1123 = vmatpush.bf16.msra.mxu0 0
  %1124 = vmatpush.bf16.msra.mxu0 0
  %1125 = vmatpush.bf16.msra.mxu0 0
  %1126 = vmatpush.bf16.msra.mxu0 0
  %1127 = vmatpush.bf16.msra.mxu0 %v1073
  %1128 = vmatpush.bf16.msra.mxu0 %v1061
  %1129 = vmatmul.bf16.gmra.mxu0 %v1110
  %v1130 = vpop.f32.mrf.mxu0
  %v1131 = vadd.f32 0.0, %v1130
  %v1132 = vpop.f32.mrf.mxu0
  %v1133 = vadd.f32 0.0, %v1132
  %1134 = vmatmul.bf16.gmra.mxu0 %v1113
  %v1135 = vpop.f32.mrf.mxu0
  %v1136 = vadd.f32 0.0, %v1135
  %v1137 = vpop.f32.mrf.mxu0
  %v1138 = vadd.f32 0.0, %v1137
  %1139 = vmatmul.bf16.gmra.mxu0 %v1116
  %v1140 = vpop.f32.mrf.mxu0
  %v1141 = vadd.f32 0.0, %v1140
  %v1142 = vpop.f32.mrf.mxu0
  %v1143 = vadd.f32 0.0, %v1142
  %1144 = vmatmul.bf16.gmra.mxu0 %v1119
  %v1145 = vpop.f32.mrf.mxu0
  %v1146 = vadd.f32 0.0, %v1145
  %v1147 = vpop.f32.mrf.mxu0
  %v1148 = vadd.f32 0.0, %v1147
  %1149 = vdwg.mxu0
  %1150 = vmatpush.bf16.msra.mxu0 0
  %1151 = vmatpush.bf16.msra.mxu0 0
  %1152 = vmatpush.bf16.msra.mxu0 0
  %1153 = vmatpush.bf16.msra.mxu0 0
  %1154 = vmatpush.bf16.msra.mxu0 0
  %1155 = vmatpush.bf16.msra.mxu0 0
  %1156 = vmatpush.bf16.msra.mxu0 %v1074
  %1157 = vmatpush.bf16.msra.mxu0 %v1062
  %1158 = vmatmul.bf16.gmra.mxu0 %v1110
  %v1159 = vpop.f32.mrf.mxu0
  %v1160 = vadd.f32 0.0, %v1159
  %v1161 = vpop.f32.mrf.mxu0
  %v1162 = vadd.f32 0.0, %v1161
  %1163 = vmatmul.bf16.gmra.mxu0 %v1113
  %v1164 = vpop.f32.mrf.mxu0
  %v1165 = vadd.f32 0.0, %v1164
  %v1166 = vpop.f32.mrf.mxu0
  %v1167 = vadd.f32 0.0, %v1166
  %1168 = vmatmul.bf16.gmra.mxu0 %v1116
  %v1169 = vpop.f32.mrf.mxu0
  %v1170 = vadd.f32 0.0, %v1169
  %v1171 = vpop.f32.mrf.mxu0
  %v1172 = vadd.f32 0.0, %v1171
  %1173 = vmatmul.bf16.gmra.mxu0 %v1119
  %v1174 = vpop.f32.mrf.mxu0
  %v1175 = vadd.f32 0.0, %v1174
  %v1176 = vpop.f32.mrf.mxu0
  %v1177 = vadd.f32 0.0, %v1176
  %1178 = vdwg.mxu0
  %1179 = vmatpush.bf16.msra.mxu0 0
  %1180 = vmatpush.bf16.msra.mxu0 0
  %1181 = vmatpush.bf16.msra.mxu0 0
  %1182 = vmatpush.bf16.msra.mxu0 0
  %1183 = vmatpush.bf16.msra.mxu0 0
  %1184 = vmatpush.bf16.msra.mxu0 0
  %1185 = vmatpush.bf16.msra.mxu0 %v1075
  %1186 = vmatpush.bf16.msra.mxu0 %v1063
  %1187 = vmatmul.bf16.gmra.mxu0 %v1110
  %v1188 = vpop.f32.mrf.mxu0
  %v1189 = vadd.f32 0.0, %v1188
  %v1190 = vpop.f32.mrf.mxu0
  %v1191 = vadd.f32 0.0, %v1190
  %1192 = vmatmul.bf16.gmra.mxu0 %v1113
  %v1193 = vpop.f32.mrf.mxu0
  %v1194 = vadd.f32 0.0, %v1193
  %v1195 = vpop.f32.mrf.mxu0
  %v1196 = vadd.f32 0.0, %v1195
  %1197 = vmatmul.bf16.gmra.mxu0 %v1116
  %v1198 = vpop.f32.mrf.mxu0
  %v1199 = vadd.f32 0.0, %v1198
  %v1200 = vpop.f32.mrf.mxu0
  %v1201 = vadd.f32 0.0, %v1200
  %1202 = vmatmul.bf16.gmra.mxu0 %v1119
  %v1203 = vpop.f32.mrf.mxu0
  %v1204 = vadd.f32 0.0, %v1203
  %v1205 = vpop.f32.mrf.mxu0
  %v1206 = vadd.f32 0.0, %v1205
  %1207 = vdwg.mxu0
  %1208 = vmatpush.bf16.msra.mxu0 0
  %1209 = vmatpush.bf16.msra.mxu0 0
  %1210 = vmatpush.bf16.msra.mxu0 0
  %1211 = vmatpush.bf16.msra.mxu0 0
  %1212 = vmatpush.bf16.msra.mxu0 0
  %1213 = vmatpush.bf16.msra.mxu0 0
  %1214 = vmatpush.bf16.msra.mxu0 %v1076
  %1215 = vmatpush.bf16.msra.mxu0 %v1064
  %1216 = vmatmul.bf16.gmra.mxu0 %v1110
  %v1217 = vpop.f32.mrf.mxu0
  %v1218 = vadd.f32 0.0, %v1217
  %v1219 = vpop.f32.mrf.mxu0
  %v1220 = vadd.f32 0.0, %v1219
  %1221 = vmatmul.bf16.gmra.mxu0 %v1113
  %v1222 = vpop.f32.mrf.mxu0
  %v1223 = vadd.f32 0.0, %v1222
  %v1224 = vpop.f32.mrf.mxu0
  %v1225 = vadd.f32 0.0, %v1224
  %1226 = vmatmul.bf16.gmra.mxu0 %v1116
  %v1227 = vpop.f32.mrf.mxu0
  %v1228 = vadd.f32 0.0, %v1227
  %v1229 = vpop.f32.mrf.mxu0
  %v1230 = vadd.f32 0.0, %v1229
  %1231 = vmatmul.bf16.gmra.mxu0 %v1119
  %v1232 = vpop.f32.mrf.mxu0
  %v1233 = vadd.f32 0.0, %v1232
  %v1234 = vpop.f32.mrf.mxu0
  %v1235 = vadd.f32 0.0, %v1234
  %1236 = vdwg.mxu0
  %1237 = vmatpush.bf16.msra.mxu0 0
  %1238 = vmatpush.bf16.msra.mxu0 0
  %1239 = vmatpush.bf16.msra.mxu0 0
  %1240 = vmatpush.bf16.msra.mxu0 0
  %1241 = vmatpush.bf16.msra.mxu0 0
  %1242 = vmatpush.bf16.msra.mxu0 0
  %1243 = vmatpush.bf16.msra.mxu0 %v1077
  %1244 = vmatpush.bf16.msra.mxu0 %v1065
  %1245 = vmatmul.bf16.gmra.mxu0 %v1110
  %v1246 = vpop.f32.mrf.mxu0
  %v1247 = vadd.f32 0.0, %v1246
  %v1248 = vpop.f32.mrf.mxu0
  %v1249 = vadd.f32 0.0, %v1248
  %1250 = vmatmul.bf16.gmra.mxu0 %v1113
  %v1251 = vpop.f32.mrf.mxu0
  %v1252 = vadd.f32 0.0, %v1251
  %v1253 = vpop.f32.mrf.mxu0
  %v1254 = vadd.f32 0.0, %v1253
  %1255 = vmatmul.bf16.gmra.mxu0 %v1116
  %v1256 = vpop.f32.mrf.mxu0
  %v1257 = vadd.f32 0.0, %v1256
  %v1258 = vpop.f32.mrf.mxu0
  %v1259 = vadd.f32 0.0, %v1258
  %1260 = vmatmul.bf16.gmra.mxu0 %v1119
  %v1261 = vpop.f32.mrf.mxu0
  %v1262 = vadd.f32 0.0, %v1261
  %v1263 = vpop.f32.mrf.mxu0
  %v1264 = vadd.f32 0.0, %v1263
  %1265 = vdwg.mxu0
  %1266 = vmatpush.bf16.msra.mxu0 0
  %1267 = vmatpush.bf16.msra.mxu0 0
  %1268 = vmatpush.bf16.msra.mxu0 0
  %1269 = vmatpush.bf16.msra.mxu0 0
  %1270 = vmatpush.bf16.msra.mxu0 0
  %1271 = vmatpush.bf16.msra.mxu0 0
  %1272 = vmatpush.bf16.msra.mxu0 %v1078
  %1273 = vmatpush.bf16.msra.mxu0 %v1066
  %1274 = vmatmul.bf16.gmra.mxu0 %v1110
  %v1275 = vpop.f32.mrf.mxu0
  %v1276 = vadd.f32 0.0, %v1275
  %v1277 = vpop.f32.mrf.mxu0
  %v1278 = vadd.f32 0.0, %v1277
  %1279 = vmatmul.bf16.gmra.mxu0 %v1113
  %v1280 = vpop.f32.mrf.mxu0
  %v1281 = vadd.f32 0.0, %v1280
  %v1282 = vpop.f32.mrf.mxu0
  %v1283 = vadd.f32 0.0, %v1282
  %1284 = vmatmul.bf16.gmra.mxu0 %v1116
  %v1285 = vpop.f32.mrf.mxu0
  %v1286 = vadd.f32 0.0, %v1285
  %v1287 = vpop.f32.mrf.mxu0
  %v1288 = vadd.f32 0.0, %v1287
  %1289 = vmatmul.bf16.gmra.mxu0 %v1119
  %v1290 = vpop.f32.mrf.mxu0
  %v1291 = vadd.f32 0.0, %v1290
  %v1292 = vpop.f32.mrf.mxu0
  %v1293 = vadd.f32 0.0, %v1292
  %1294 = vdwg.mxu0
  %1295 = vmatpush.bf16.msra.mxu0 0
  %1296 = vmatpush.bf16.msra.mxu0 0
  %1297 = vmatpush.bf16.msra.mxu0 0
  %1298 = vmatpush.bf16.msra.mxu0 0
  %1299 = vmatpush.bf16.msra.mxu0 0
  %1300 = vmatpush.bf16.msra.mxu0 0
  %1301 = vmatpush.bf16.msra.mxu0 %v1079
  %1302 = vmatpush.bf16.msra.mxu0 %v1067
  %1303 = vmatmul.bf16.gmra.mxu0 %v1110
  %v1304 = vpop.f32.mrf.mxu0
  %v1305 = vadd.f32 0.0, %v1304
  %v1306 = vpop.f32.mrf.mxu0
  %v1307 = vadd.f32 0.0, %v1306
  %1308 = vmatmul.bf16.gmra.mxu0 %v1113
  %v1309 = vpop.f32.mrf.mxu0
  %v1310 = vadd.f32 0.0, %v1309
  %v1311 = vpop.f32.mrf.mxu0
  %v1312 = vadd.f32 0.0, %v1311
  %1313 = vmatmul.bf16.gmra.mxu0 %v1116
  %v1314 = vpop.f32.mrf.mxu0
  %v1315 = vadd.f32 0.0, %v1314
  %v1316 = vpop.f32.mrf.mxu0
  %v1317 = vadd.f32 0.0, %v1316
  %1318 = vmatmul.bf16.gmra.mxu0 %v1119
  %v1319 = vpop.f32.mrf.mxu0
  %v1320 = vadd.f32 0.0, %v1319
  %v1321 = vpop.f32.mrf.mxu0
  %v1322 = vadd.f32 0.0, %v1321
  %1323 = vdwg.mxu0
  %1324 = vmatpush.bf16.msra.mxu0 0
  %1325 = vmatpush.bf16.msra.mxu0 0
  %1326 = vmatpush.bf16.msra.mxu0 0
  %1327 = vmatpush.bf16.msra.mxu0 0
  %1328 = vmatpush.bf16.msra.mxu0 0
  %1329 = vmatpush.bf16.msra.mxu0 0
  %1330 = vmatpush.bf16.msra.mxu0 %v1080
  %1331 = vmatpush.bf16.msra.mxu0 %v1068
  %1332 = vmatmul.bf16.gmra.mxu0 %v1110
  %v1333 = vpop.f32.mrf.mxu0
  %v1334 = vadd.f32 0.0, %v1333
  %v1335 = vpop.f32.mrf.mxu0
  %v1336 = vadd.f32 0.0, %v1335
  %1337 = vmatmul.bf16.gmra.mxu0 %v1113
  %v1338 = vpop.f32.mrf.mxu0
  %v1339 = vadd.f32 0.0, %v1338
  %v1340 = vpop.f32.mrf.mxu0
  %v1341 = vadd.f32 0.0, %v1340
  %1342 = vmatmul.bf16.gmra.mxu0 %v1116
  %v1343 = vpop.f32.mrf.mxu0
  %v1344 = vadd.f32 0.0, %v1343
  %v1345 = vpop.f32.mrf.mxu0
  %v1346 = vadd.f32 0.0, %v1345
  %1347 = vmatmul.bf16.gmra.mxu0 %v1119
  %v1348 = vpop.f32.mrf.mxu0
  %v1349 = vadd.f32 0.0, %v1348
  %v1350 = vpop.f32.mrf.mxu0
  %v1351 = vadd.f32 0.0, %v1350
  %1352 = vdwg.mxu0
  %1353 = vmatpush.bf16.msra.mxu0 0
  %1354 = vmatpush.bf16.msra.mxu0 0
  %1355 = vmatpush.bf16.msra.mxu0 0
  %1356 = vmatpush.bf16.msra.mxu0 0
  %1357 = vmatpush.bf16.msra.mxu0 0
  %1358 = vmatpush.bf16.msra.mxu0 0
  %1359 = vmatpush.bf16.msra.mxu0 %v1081
  %1360 = vmatpush.bf16.msra.mxu0 %v1069
  %1361 = vmatmul.bf16.gmra.mxu0 %v1110
  %v1362 = vpop.f32.mrf.mxu0
  %v1363 = vadd.f32 0.0, %v1362
  %v1364 = vpop.f32.mrf.mxu0
  %v1365 = vadd.f32 0.0, %v1364
  %1366 = vmatmul.bf16.gmra.mxu0 %v1113
  %v1367 = vpop.f32.mrf.mxu0
  %v1368 = vadd.f32 0.0, %v1367
  %v1369 = vpop.f32.mrf.mxu0
  %v1370 = vadd.f32 0.0, %v1369
  %1371 = vmatmul.bf16.gmra.mxu0 %v1116
  %v1372 = vpop.f32.mrf.mxu0
  %v1373 = vadd.f32 0.0, %v1372
  %v1374 = vpop.f32.mrf.mxu0
  %v1375 = vadd.f32 0.0, %v1374
  %1376 = vmatmul.bf16.gmra.mxu0 %v1119
  %v1377 = vpop.f32.mrf.mxu0
  %v1378 = vadd.f32 0.0, %v1377
  %v1379 = vpop.f32.mrf.mxu0
  %v1380 = vadd.f32 0.0, %v1379
  %1381 = vdwg.mxu0
  %1382 = vmatpush.bf16.msra.mxu0 0
  %1383 = vmatpush.bf16.msra.mxu0 0
  %1384 = vmatpush.bf16.msra.mxu0 0
  %1385 = vmatpush.bf16.msra.mxu0 0
  %1386 = vmatpush.bf16.msra.mxu0 0
  %1387 = vmatpush.bf16.msra.mxu0 0
  %1388 = vmatpush.bf16.msra.mxu0 %v1082
  %1389 = vmatpush.bf16.msra.mxu0 %v1070
  %1390 = vmatmul.bf16.gmra.mxu0 %v1110
  %v1391 = vpop.f32.mrf.mxu0
  %v1392 = vadd.f32 0.0, %v1391
  %v1393 = vpop.f32.mrf.mxu0
  %v1394 = vadd.f32 0.0, %v1393
  %1395 = vmatmul.bf16.gmra.mxu0 %v1113
  %v1396 = vpop.f32.mrf.mxu0
  %v1397 = vadd.f32 0.0, %v1396
  %v1398 = vpop.f32.mrf.mxu0
  %v1399 = vadd.f32 0.0, %v1398
  %1400 = vmatmul.bf16.gmra.mxu0 %v1116
  %v1401 = vpop.f32.mrf.mxu0
  %v1402 = vadd.f32 0.0, %v1401
  %v1403 = vpop.f32.mrf.mxu0
  %v1404 = vadd.f32 0.0, %v1403
  %1405 = vmatmul.bf16.gmra.mxu0 %v1119
  %v1406 = vpop.f32.mrf.mxu0
  %v1407 = vadd.f32 0.0, %v1406
  %v1408 = vpop.f32.mrf.mxu0
  %v1409 = vadd.f32 0.0, %v1408
  %1410 = vdwg.mxu0
  %1411 = vmatpush.bf16.msra.mxu0 0
  %1412 = vmatpush.bf16.msra.mxu0 0
  %1413 = vmatpush.bf16.msra.mxu0 0
  %1414 = vmatpush.bf16.msra.mxu0 0
  %1415 = vmatpush.bf16.msra.mxu0 0
  %1416 = vmatpush.bf16.msra.mxu0 0
  %1417 = vmatpush.bf16.msra.mxu0 %v1083
  %1418 = vmatpush.bf16.msra.mxu0 %v1071
  %1419 = vmatmul.bf16.gmra.mxu0 %v1110
  %v1420 = vpop.f32.mrf.mxu0
  %v1421 = vadd.f32 0.0, %v1420
  %v1422 = vpop.f32.mrf.mxu0
  %v1423 = vadd.f32 0.0, %v1422
  %1424 = vmatmul.bf16.gmra.mxu0 %v1113
  %v1425 = vpop.f32.mrf.mxu0
  %v1426 = vadd.f32 0.0, %v1425
  %v1427 = vpop.f32.mrf.mxu0
  %v1428 = vadd.f32 0.0, %v1427
  %1429 = vmatmul.bf16.gmra.mxu0 %v1116
  %v1430 = vpop.f32.mrf.mxu0
  %v1431 = vadd.f32 0.0, %v1430
  %v1432 = vpop.f32.mrf.mxu0
  %v1433 = vadd.f32 0.0, %v1432
  %1434 = vmatmul.bf16.gmra.mxu0 %v1119
  %v1435 = vpop.f32.mrf.mxu0
  %v1436 = vadd.f32 0.0, %v1435
  %v1437 = vpop.f32.mrf.mxu0
  %v1438 = vadd.f32 0.0, %v1437
  %1439 = vdwg.mxu0
  %1440 = vmatpush.bf16.msra.mxu0 0
  %1441 = vmatpush.bf16.msra.mxu0 0
  %1442 = vmatpush.bf16.msra.mxu0 0
  %1443 = vmatpush.bf16.msra.mxu0 0
  %1444 = vmatpush.bf16.msra.mxu0 0
  %1445 = vmatpush.bf16.msra.mxu0 0
  %1446 = vmatpush.bf16.msra.mxu0 %v1084
  %1447 = vmatpush.bf16.msra.mxu0 %v1072
  %1448 = vmatmul.bf16.gmra.mxu0 %v1110
  %v1449 = vpop.f32.mrf.mxu0
  %v1450 = vadd.f32 0.0, %v1449
  %v1451 = vpop.f32.mrf.mxu0
  %v1452 = vadd.f32 0.0, %v1451
  %1453 = vmatmul.bf16.gmra.mxu0 %v1113
  %v1454 = vpop.f32.mrf.mxu0
  %v1455 = vadd.f32 0.0, %v1454
  %v1456 = vpop.f32.mrf.mxu0
  %v1457 = vadd.f32 0.0, %v1456
  %1458 = vmatmul.bf16.gmra.mxu0 %v1116
  %v1459 = vpop.f32.mrf.mxu0
  %v1460 = vadd.f32 0.0, %v1459
  %v1461 = vpop.f32.mrf.mxu0
  %v1462 = vadd.f32 0.0, %v1461
  %1463 = vmatmul.bf16.gmra.mxu0 %v1119
  %v1464 = vpop.f32.mrf.mxu0
  %v1465 = vadd.f32 0.0, %v1464
  %v1466 = vpop.f32.mrf.mxu0
  %v1467 = vadd.f32 0.0, %v1466
  %1468 = vdwg.mxu0
  %v1469 = vadd.f32 %v841, %v1131
  %v1470 = vadd.f32 %v842, %v1160
  %v1471 = vadd.f32 %v843, %v1189
  %v1472 = vadd.f32 %v844, %v1218
  %v1473 = vadd.f32 %v845, %v1247
  %v1474 = vadd.f32 %v846, %v1276
  %v1475 = vadd.f32 %v847, %v1305
  %v1476 = vadd.f32 %v848, %v1334
  %v1477 = vadd.f32 %v849, %v1363
  %v1478 = vadd.f32 %v850, %v1392
  %v1479 = vadd.f32 %v851, %v1421
  %v1480 = vadd.f32 %v852, %v1450
  %v1481 = vadd.f32 %v853, %v1133
  %v1482 = vadd.f32 %v854, %v1162
  %v1483 = vadd.f32 %v855, %v1191
  %v1484 = vadd.f32 %v856, %v1220
  %v1485 = vadd.f32 %v857, %v1249
  %v1486 = vadd.f32 %v858, %v1278
  %v1487 = vadd.f32 %v859, %v1307
  %v1488 = vadd.f32 %v860, %v1336
  %v1489 = vadd.f32 %v861, %v1365
  %v1490 = vadd.f32 %v862, %v1394
  %v1491 = vadd.f32 %v863, %v1423
  %v1492 = vadd.f32 %v864, %v1452
  %v1493 = vadd.f32 %v865, %v1136
  %v1494 = vadd.f32 %v866, %v1165
  %v1495 = vadd.f32 %v867, %v1194
  %v1496 = vadd.f32 %v868, %v1223
  %v1497 = vadd.f32 %v869, %v1252
  %v1498 = vadd.f32 %v870, %v1281
  %v1499 = vadd.f32 %v871, %v1310
  %v1500 = vadd.f32 %v872, %v1339
  %v1501 = vadd.f32 %v873, %v1368
  %v1502 = vadd.f32 %v874, %v1397
  %v1503 = vadd.f32 %v875, %v1426
  %v1504 = vadd.f32 %v876, %v1455
  %v1505 = vadd.f32 %v877, %v1138
  %v1506 = vadd.f32 %v878, %v1167
  %v1507 = vadd.f32 %v879, %v1196
  %v1508 = vadd.f32 %v880, %v1225
  %v1509 = vadd.f32 %v881, %v1254
  %v1510 = vadd.f32 %v882, %v1283
  %v1511 = vadd.f32 %v883, %v1312
  %v1512 = vadd.f32 %v884, %v1341
  %v1513 = vadd.f32 %v885, %v1370
  %v1514 = vadd.f32 %v886, %v1399
  %v1515 = vadd.f32 %v887, %v1428
  %v1516 = vadd.f32 %v888, %v1457
  %v1517 = vadd.f32 %v889, %v1141
  %v1518 = vadd.f32 %v890, %v1170
  %v1519 = vadd.f32 %v891, %v1199
  %v1520 = vadd.f32 %v892, %v1228
  %v1521 = vadd.f32 %v893, %v1257
  %v1522 = vadd.f32 %v894, %v1286
  %v1523 = vadd.f32 %v895, %v1315
  %v1524 = vadd.f32 %v896, %v1344
  %v1525 = vadd.f32 %v897, %v1373
  %v1526 = vadd.f32 %v898, %v1402
  %v1527 = vadd.f32 %v899, %v1431
  %v1528 = vadd.f32 %v900, %v1460
  %v1529 = vadd.f32 %v901, %v1143
  %v1530 = vadd.f32 %v902, %v1172
  %v1531 = vadd.f32 %v903, %v1201
  %v1532 = vadd.f32 %v904, %v1230
  %v1533 = vadd.f32 %v905, %v1259
  %v1534 = vadd.f32 %v906, %v1288
  %v1535 = vadd.f32 %v907, %v1317
  %v1536 = vadd.f32 %v908, %v1346
  %v1537 = vadd.f32 %v909, %v1375
  %v1538 = vadd.f32 %v910, %v1404
  %v1539 = vadd.f32 %v911, %v1433
  %v1540 = vadd.f32 %v912, %v1462
  %v1541 = vadd.f32 %v913, %v1146
  %v1542 = vadd.f32 %v914, %v1175
  %v1543 = vadd.f32 %v915, %v1204
  %v1544 = vadd.f32 %v916, %v1233
  %v1545 = vadd.f32 %v917, %v1262
  %v1546 = vadd.f32 %v918, %v1291
  %v1547 = vadd.f32 %v919, %v1320
  %v1548 = vadd.f32 %v920, %v1349
  %v1549 = vadd.f32 %v921, %v1378
  %v1550 = vadd.f32 %v922, %v1407
  %v1551 = vadd.f32 %v923, %v1436
  %v1552 = vadd.f32 %v924, %v1465
  %v1553 = vadd.f32 %v925, %v1148
  %v1554 = vadd.f32 %v926, %v1177
  %v1555 = vadd.f32 %v927, %v1206
  %v1556 = vadd.f32 %v928, %v1235
  %v1557 = vadd.f32 %v929, %v1264
  %v1558 = vadd.f32 %v930, %v1293
  %v1559 = vadd.f32 %v931, %v1322
  %v1560 = vadd.f32 %v932, %v1351
  %v1561 = vadd.f32 %v933, %v1380
  %v1562 = vadd.f32 %v934, %v1409
  %v1563 = vadd.f32 %v935, %v1438
  %v1564 = vadd.f32 %v936, %v1467
  %1565 = vst [vmem:[#allocation2 + $0x20] sm:$0xff] %v1469
  %1566 = vst [vmem:[#allocation2 + $0x28] sm:$0xff] %v1470
  %1567 = vst [vmem:[#allocation2 + $0x30] sm:$0xff] %v1471
  %1568 = vst [vmem:[#allocation2 + $0x38] sm:$0xff] %v1472
  %1569 = vst [vmem:[#allocation2 + $0x40] sm:$0xff] %v1473
  %1570 = vst [vmem:[#allocation2 + $0x48] sm:$0xff] %v1474
  %1571 = vst [vmem:[#allocation2 + $0x50] sm:$0xff] %v1475
  %1572 = vst [vmem:[#allocation2 + $0x58] sm:$0xff] %v1476
  %1573 = vst [vmem:[#allocation2 + $0x60] sm:$0xff] %v1477
  %1574 = vst [vmem:[#allocation2 + $0x68] sm:$0xff] %v1478
  %1575 = vst [vmem:[#allocation2 + $0x70] sm:$0xff] %v1479
  %1576 = vst [vmem:[#allocation2 + $0x78] sm:$0xff] %v1480
  %1577 = vst [vmem:[#allocation2 + $0xa0] sm:$0xff] %v1481
  %1578 = vst [vmem:[#allocation2 + $0xa8] sm:$0xff] %v1482
  %1579 = vst [vmem:[#allocation2 + $0xb0] sm:$0xff] %v1483
  %1580 = vst [vmem:[#allocation2 + $0xb8] sm:$0xff] %v1484
  %1581 = vst [vmem:[#allocation2 + $0xc0] sm:$0xff] %v1485
  %1582 = vst [vmem:[#allocation2 + $0xc8] sm:$0xff] %v1486
  %1583 = vst [vmem:[#allocation2 + $0xd0] sm:$0xff] %v1487
  %1584 = vst [vmem:[#allocation2 + $0xd8] sm:$0xff] %v1488
  %1585 = vst [vmem:[#allocation2 + $0xe0] sm:$0xff] %v1489
  %1586 = vst [vmem:[#allocation2 + $0xe8] sm:$0xff] %v1490
  %1587 = vst [vmem:[#allocation2 + $0xf0] sm:$0xff] %v1491
  %1588 = vst [vmem:[#allocation2 + $0xf8] sm:$0xff] %v1492
  %1589 = vst [vmem:[#allocation2 + $0x120] sm:$0xff] %v1493
  %1590 = vst [vmem:[#allocation2 + $0x128] sm:$0xff] %v1494
  %1591 = vst [vmem:[#allocation2 + $0x130] sm:$0xff] %v1495
  %1592 = vst [vmem:[#allocation2 + $0x138] sm:$0xff] %v1496
  %1593 = vst [vmem:[#allocation2 + $0x140] sm:$0xff] %v1497
  %1594 = vst [vmem:[#allocation2 + $0x148] sm:$0xff] %v1498
  %1595 = vst [vmem:[#allocation2 + $0x150] sm:$0xff] %v1499
  %1596 = vst [vmem:[#allocation2 + $0x158] sm:$0xff] %v1500
  %1597 = vst [vmem:[#allocation2 + $0x160] sm:$0xff] %v1501
  %1598 = vst [vmem:[#allocation2 + $0x168] sm:$0xff] %v1502
  %1599 = vst [vmem:[#allocation2 + $0x170] sm:$0xff] %v1503
  %1600 = vst [vmem:[#allocation2 + $0x178] sm:$0xff] %v1504
  %1601 = vst [vmem:[#allocation2 + $0x1a0] sm:$0xff] %v1505
  %1602 = vst [vmem:[#allocation2 + $0x1a8] sm:$0xff] %v1506
  %1603 = vst [vmem:[#allocation2 + $0x1b0] sm:$0xff] %v1507
  %1604 = vst [vmem:[#allocation2 + $0x1b8] sm:$0xff] %v1508
  %1605 = vst [vmem:[#allocation2 + $0x1c0] sm:$0xff] %v1509
  %1606 = vst [vmem:[#allocation2 + $0x1c8] sm:$0xff] %v1510
  %1607 = vst [vmem:[#allocation2 + $0x1d0] sm:$0xff] %v1511
  %1608 = vst [vmem:[#allocation2 + $0x1d8] sm:$0xff] %v1512
  %1609 = vst [vmem:[#allocation2 + $0x1e0] sm:$0xff] %v1513
  %1610 = vst [vmem:[#allocation2 + $0x1e8] sm:$0xff] %v1514
  %1611 = vst [vmem:[#allocation2 + $0x1f0] sm:$0xff] %v1515
  %1612 = vst [vmem:[#allocation2 + $0x1f8] sm:$0xff] %v1516
  %1613 = vst [vmem:[#allocation2 + $0x220] sm:$0xff] %v1517
  %1614 = vst [vmem:[#allocation2 + $0x228] sm:$0xff] %v1518
  %1615 = vst [vmem:[#allocation2 + $0x230] sm:$0xff] %v1519
  %1616 = vst [vmem:[#allocation2 + $0x238] sm:$0xff] %v1520
  %1617 = vst [vmem:[#allocation2 + $0x240] sm:$0xff] %v1521
  %1618 = vst [vmem:[#allocation2 + $0x248] sm:$0xff] %v1522
  %1619 = vst [vmem:[#allocation2 + $0x250] sm:$0xff] %v1523
  %1620 = vst [vmem:[#allocation2 + $0x258] sm:$0xff] %v1524
  %1621 = vst [vmem:[#allocation2 + $0x260] sm:$0xff] %v1525
  %1622 = vst [vmem:[#allocation2 + $0x268] sm:$0xff] %v1526
  %1623 = vst [vmem:[#allocation2 + $0x270] sm:$0xff] %v1527
  %1624 = vst [vmem:[#allocation2 + $0x278] sm:$0xff] %v1528
  %1625 = vst [vmem:[#allocation2 + $0x2a0] sm:$0xff] %v1529
  %1626 = vst [vmem:[#allocation2 + $0x2a8] sm:$0xff] %v1530
  %1627 = vst [vmem:[#allocation2 + $0x2b0] sm:$0xff] %v1531
  %1628 = vst [vmem:[#allocation2 + $0x2b8] sm:$0xff] %v1532
  %1629 = vst [vmem:[#allocation2 + $0x2c0] sm:$0xff] %v1533
  %1630 = vst [vmem:[#allocation2 + $0x2c8] sm:$0xff] %v1534
  %1631 = vst [vmem:[#allocation2 + $0x2d0] sm:$0xff] %v1535
  %1632 = vst [vmem:[#allocation2 + $0x2d8] sm:$0xff] %v1536
  %1633 = vst [vmem:[#allocation2 + $0x2e0] sm:$0xff] %v1537
  %1634 = vst [vmem:[#allocation2 + $0x2e8] sm:$0xff] %v1538
  %1635 = vst [vmem:[#allocation2 + $0x2f0] sm:$0xff] %v1539
  %1636 = vst [vmem:[#allocation2 + $0x2f8] sm:$0xff] %v1540
  %1637 = vst [vmem:[#allocation2 + $0x320] sm:$0xff] %v1541
  %1638 = vst [vmem:[#allocation2 + $0x328] sm:$0xff] %v1542
  %1639 = vst [vmem:[#allocation2 + $0x330] sm:$0xff] %v1543
  %1640 = vst [vmem:[#allocation2 + $0x338] sm:$0xff] %v1544
  %1641 = vst [vmem:[#allocation2 + $0x340] sm:$0xff] %v1545
  %1642 = vst [vmem:[#allocation2 + $0x348] sm:$0xff] %v1546
  %1643 = vst [vmem:[#allocation2 + $0x350] sm:$0xff] %v1547
  %1644 = vst [vmem:[#allocation2 + $0x358] sm:$0xff] %v1548
  %1645 = vst [vmem:[#allocation2 + $0x360] sm:$0xff] %v1549
  %1646 = vst [vmem:[#allocation2 + $0x368] sm:$0xff] %v1550
  %1647 = vst [vmem:[#allocation2 + $0x370] sm:$0xff] %v1551
  %1648 = vst [vmem:[#allocation2 + $0x378] sm:$0xff] %v1552
  %1649 = vst [vmem:[#allocation2 + $0x3a0] sm:$0xff] %v1553
  %1650 = vst [vmem:[#allocation2 + $0x3a8] sm:$0xff] %v1554
  %1651 = vst [vmem:[#allocation2 + $0x3b0] sm:$0xff] %v1555
  %1652 = vst [vmem:[#allocation2 + $0x3b8] sm:$0xff] %v1556
  %1653 = vst [vmem:[#allocation2 + $0x3c0] sm:$0xff] %v1557
  %1654 = vst [vmem:[#allocation2 + $0x3c8] sm:$0xff] %v1558
  %1655 = vst [vmem:[#allocation2 + $0x3d0] sm:$0xff] %v1559
  %1656 = vst [vmem:[#allocation2 + $0x3d8] sm:$0xff] %v1560
  %1657 = vst [vmem:[#allocation2 + $0x3e0] sm:$0xff] %v1561
  %1658 = vst [vmem:[#allocation2 + $0x3e8] sm:$0xff] %v1562
  %1659 = vst [vmem:[#allocation2 + $0x3f0] sm:$0xff] %v1563
  %1660 = vst [vmem:[#allocation2 + $0x3f8] sm:$0xff] %v1564
  %v1661 = vld [vmem:[#allocation2 + $0x10] sm:$0xff]
  %v1662 = vld [vmem:[#allocation2 + $0x18] sm:$0xff]
  %v1663 = vld [vmem:[#allocation2 + $0x20] sm:$0xff]
  %v1664 = vld [vmem:[#allocation2 + $0x28] sm:$0xff]
  %v1665 = vld [vmem:[#allocation2 + $0x30] sm:$0xff]
  %v1666 = vld [vmem:[#allocation2 + $0x38] sm:$0xff]
  %v1667 = vld [vmem:[#allocation2 + $0x40] sm:$0xff]
  %v1668 = vld [vmem:[#allocation2 + $0x48] sm:$0xff]
  %v1669 = vld [vmem:[#allocation2 + $0x50] sm:$0xff]
  %v1670 = vld [vmem:[#allocation2 + $0x58] sm:$0xff]
  %v1671 = vld [vmem:[#allocation2 + $0x60] sm:$0xff]
  %v1672 = vld [vmem:[#allocation2 + $0x68] sm:$0xff]
  %v1673 = vld [vmem:[#allocation2 + $0x70] sm:$0xff]
  %v1674 = vld [vmem:[#allocation2 + $0x78] sm:$0xff]
  %v1675 = vld [vmem:[#allocation2 + $0x90] sm:$0xff]
  %v1676 = vld [vmem:[#allocation2 + $0x98] sm:$0xff]
  %v1677 = vld [vmem:[#allocation2 + $0xa0] sm:$0xff]
  %v1678 = vld [vmem:[#allocation2 + $0xa8] sm:$0xff]
  %v1679 = vld [vmem:[#allocation2 + $0xb0] sm:$0xff]
  %v1680 = vld [vmem:[#allocation2 + $0xb8] sm:$0xff]
  %v1681 = vld [vmem:[#allocation2 + $0xc0] sm:$0xff]
  %v1682 = vld [vmem:[#allocation2 + $0xc8] sm:$0xff]
  %v1683 = vld [vmem:[#allocation2 + $0xd0] sm:$0xff]
  %v1684 = vld [vmem:[#allocation2 + $0xd8] sm:$0xff]
  %v1685 = vld [vmem:[#allocation2 + $0xe0] sm:$0xff]
  %v1686 = vld [vmem:[#allocation2 + $0xe8] sm:$0xff]
  %v1687 = vld [vmem:[#allocation2 + $0xf0] sm:$0xff]
  %v1688 = vld [vmem:[#allocation2 + $0xf8] sm:$0xff]
  %v1689 = vld [vmem:[#allocation2 + $0x110] sm:$0xff]
  %v1690 = vld [vmem:[#allocation2 + $0x118] sm:$0xff]
  %v1691 = vld [vmem:[#allocation2 + $0x120] sm:$0xff]
  %v1692 = vld [vmem:[#allocation2 + $0x128] sm:$0xff]
  %v1693 = vld [vmem:[#allocation2 + $0x130] sm:$0xff]
  %v1694 = vld [vmem:[#allocation2 + $0x138] sm:$0xff]
  %v1695 = vld [vmem:[#allocation2 + $0x140] sm:$0xff]
  %v1696 = vld [vmem:[#allocation2 + $0x148] sm:$0xff]
  %v1697 = vld [vmem:[#allocation2 + $0x150] sm:$0xff]
  %v1698 = vld [vmem:[#allocation2 + $0x158] sm:$0xff]
  %v1699 = vld [vmem:[#allocation2 + $0x160] sm:$0xff]
  %v1700 = vld [vmem:[#allocation2 + $0x168] sm:$0xff]
  %v1701 = vld [vmem:[#allocation2 + $0x170] sm:$0xff]
  %v1702 = vld [vmem:[#allocation2 + $0x178] sm:$0xff]
  %v1703 = vld [vmem:[#allocation2 + $0x190] sm:$0xff]
  %v1704 = vld [vmem:[#allocation2 + $0x198] sm:$0xff]
  %v1705 = vld [vmem:[#allocation2 + $0x1a0] sm:$0xff]
  %v1706 = vld [vmem:[#allocation2 + $0x1a8] sm:$0xff]
  %v1707 = vld [vmem:[#allocation2 + $0x1b0] sm:$0xff]
  %v1708 = vld [vmem:[#allocation2 + $0x1b8] sm:$0xff]
  %v1709 = vld [vmem:[#allocation2 + $0x1c0] sm:$0xff]
  %v1710 = vld [vmem:[#allocation2 + $0x1c8] sm:$0xff]
  %v1711 = vld [vmem:[#allocation2 + $0x1d0] sm:$0xff]
  %v1712 = vld [vmem:[#allocation2 + $0x1d8] sm:$0xff]
  %v1713 = vld [vmem:[#allocation2 + $0x1e0] sm:$0xff]
  %v1714 = vld [vmem:[#allocation2 + $0x1e8] sm:$0xff]
  %v1715 = vld [vmem:[#allocation2 + $0x1f0] sm:$0xff]
  %v1716 = vld [vmem:[#allocation2 + $0x1f8] sm:$0xff]
  %v1717 = vld [vmem:[#allocation2 + $0x210] sm:$0xff]
  %v1718 = vld [vmem:[#allocation2 + $0x218] sm:$0xff]
  %v1719 = vld [vmem:[#allocation2 + $0x220] sm:$0xff]
  %v1720 = vld [vmem:[#allocation2 + $0x228] sm:$0xff]
  %v1721 = vld [vmem:[#allocation2 + $0x230] sm:$0xff]
  %v1722 = vld [vmem:[#allocation2 + $0x238] sm:$0xff]
  %v1723 = vld [vmem:[#allocation2 + $0x240] sm:$0xff]
  %v1724 = vld [vmem:[#allocation2 + $0x248] sm:$0xff]
  %v1725 = vld [vmem:[#allocation2 + $0x250] sm:$0xff]
  %v1726 = vld [vmem:[#allocation2 + $0x258] sm:$0xff]
  %v1727 = vld [vmem:[#allocation2 + $0x260] sm:$0xff]
  %v1728 = vld [vmem:[#allocation2 + $0x268] sm:$0xff]
  %v1729 = vld [vmem:[#allocation2 + $0x270] sm:$0xff]
  %v1730 = vld [vmem:[#allocation2 + $0x278] sm:$0xff]
  %v1731 = vld [vmem:[#allocation2 + $0x290] sm:$0xff]
  %v1732 = vld [vmem:[#allocation2 + $0x298] sm:$0xff]
  %v1733 = vld [vmem:[#allocation2 + $0x2a0] sm:$0xff]
  %v1734 = vld [vmem:[#allocation2 + $0x2a8] sm:$0xff]
  %v1735 = vld [vmem:[#allocation2 + $0x2b0] sm:$0xff]
  %v1736 = vld [vmem:[#allocation2 + $0x2b8] sm:$0xff]
  %v1737 = vld [vmem:[#allocation2 + $0x2c0] sm:$0xff]
  %v1738 = vld [vmem:[#allocation2 + $0x2c8] sm:$0xff]
  %v1739 = vld [vmem:[#allocation2 + $0x2d0] sm:$0xff]
  %v1740 = vld [vmem:[#allocation2 + $0x2d8] sm:$0xff]
  %v1741 = vld [vmem:[#allocation2 + $0x2e0] sm:$0xff]
  %v1742 = vld [vmem:[#allocation2 + $0x2e8] sm:$0xff]
  %v1743 = vld [vmem:[#allocation2 + $0x2f0] sm:$0xff]
  %v1744 = vld [vmem:[#allocation2 + $0x2f8] sm:$0xff]
  %v1745 = vld [vmem:[#allocation2 + $0x310] sm:$0xff]
  %v1746 = vld [vmem:[#allocation2 + $0x318] sm:$0xff]
  %v1747 = vld [vmem:[#allocation2 + $0x320] sm:$0xff]
  %v1748 = vld [vmem:[#allocation2 + $0x328] sm:$0xff]
  %v1749 = vld [vmem:[#allocation2 + $0x330] sm:$0xff]
  %v1750 = vld [vmem:[#allocation2 + $0x338] sm:$0xff]
  %v1751 = vld [vmem:[#allocation2 + $0x340] sm:$0xff]
  %v1752 = vld [vmem:[#allocation2 + $0x348] sm:$0xff]
  %v1753 = vld [vmem:[#allocation2 + $0x350] sm:$0xff]
  %v1754 = vld [vmem:[#allocation2 + $0x358] sm:$0xff]
  %v1755 = vld [vmem:[#allocation2 + $0x360] sm:$0xff]
  %v1756 = vld [vmem:[#allocation2 + $0x368] sm:$0xff]
  %v1757 = vld [vmem:[#allocation2 + $0x370] sm:$0xff]
  %v1758 = vld [vmem:[#allocation2 + $0x378] sm:$0xff]
  %v1759 = vld [vmem:[#allocation2 + $0x390] sm:$0xff]
  %v1760 = vld [vmem:[#allocation2 + $0x398] sm:$0xff]
  %v1761 = vld [vmem:[#allocation2 + $0x3a0] sm:$0xff]
  %v1762 = vld [vmem:[#allocation2 + $0x3a8] sm:$0xff]
  %v1763 = vld [vmem:[#allocation2 + $0x3b0] sm:$0xff]
  %v1764 = vld [vmem:[#allocation2 + $0x3b8] sm:$0xff]
  %v1765 = vld [vmem:[#allocation2 + $0x3c0] sm:$0xff]
  %v1766 = vld [vmem:[#allocation2 + $0x3c8] sm:$0xff]
  %v1767 = vld [vmem:[#allocation2 + $0x3d0] sm:$0xff]
  %v1768 = vld [vmem:[#allocation2 + $0x3d8] sm:$0xff]
  %v1769 = vld [vmem:[#allocation2 + $0x3e0] sm:$0xff]
  %v1770 = vld [vmem:[#allocation2 + $0x3e8] sm:$0xff]
  %v1771 = vld [vmem:[#allocation2 + $0x3f0] sm:$0xff]
  %v1772 = vld [vmem:[#allocation2 + $0x3f8] sm:$0xff]
  %s1773 = scalar_lea.vmem %s1, 32
  %v1774 = vld [vmem:[%s1773] sm:$0xf]
  %v1775 = vld [vmem:[%s1773 + $0x4] sm:$0xf]
  %v1776 = vld [vmem:[%s1773 + $0x8] sm:$0xf]
  %v1777 = vld [vmem:[%s1773 + $0xc] sm:$0xf]
  %v1778 = vld [vmem:[%s1773 + $0x10] sm:$0xf]
  %v1779 = vld [vmem:[%s1773 + $0x14] sm:$0xf]
  %v1780 = vld [vmem:[%s1773 + $0x18] sm:$0xf]
  %v1781 = vld [vmem:[%s1773 + $0x1c] sm:$0xf]
  %v1782 = vld [vmem:[%s0] sm:$0xff]
  %v1783 = vld [vmem:[%s0 + $0x8] sm:$0xff]
  %v1784 = vld [vmem:[%s0 + $0x10] sm:$0xff]
  %v1785 = vld [vmem:[%s0 + $0x18] sm:$0xff]
  %v1786 = vld [vmem:[%s0 + $0x20] sm:$0xff]
  %v1787 = vld [vmem:[%s0 + $0x28] sm:$0xff]
  %v1788 = vld [vmem:[%s0 + $0x30] sm:$0xff]
  %v1789 = vld [vmem:[%s0 + $0x40] sm:$0xff]
  %v1790 = vld [vmem:[%s0 + $0x48] sm:$0xff]
  %v1791 = vld [vmem:[%s0 + $0x50] sm:$0xff]
  %v1792 = vld [vmem:[%s0 + $0x58] sm:$0xff]
  %v1793 = vld [vmem:[%s0 + $0x60] sm:$0xff]
  %v1794 = vld [vmem:[%s0 + $0x68] sm:$0xff]
  %v1795 = vld [vmem:[%s0 + $0x70] sm:$0xff]
  %v1796 = vld [vmem:[%s0 + $0x80] sm:$0xff]
  %v1797 = vld [vmem:[%s0 + $0x88] sm:$0xff]
  %v1798 = vld [vmem:[%s0 + $0x90] sm:$0xff]
  %v1799 = vld [vmem:[%s0 + $0x98] sm:$0xff]
  %v1800 = vld [vmem:[%s0 + $0xa0] sm:$0xff]
  %v1801 = vld [vmem:[%s0 + $0xa8] sm:$0xff]
  %v1802 = vld [vmem:[%s0 + $0xb0] sm:$0xff]
  %v1803 = vld [vmem:[%s0 + $0xc0] sm:$0xff]
  %v1804 = vld [vmem:[%s0 + $0xc8] sm:$0xff]
  %v1805 = vld [vmem:[%s0 + $0xd0] sm:$0xff]
  %v1806 = vld [vmem:[%s0 + $0xd8] sm:$0xff]
  %v1807 = vld [vmem:[%s0 + $0xe0] sm:$0xff]
  %v1808 = vld [vmem:[%s0 + $0xe8] sm:$0xff]
  %v1809 = vld [vmem:[%s0 + $0xf0] sm:$0xff]
  %v1818 = vunpack.c.l.b16 %v1774
  %v1819 = vunpack.c.l.b16 %v1775
  %v1820 = vunpack.c.l.b16 %v1776
  %v1821 = vunpack.c.l.b16 %v1777
  %v1822 = vunpack.c.l.b16 %v1778
  %v1823 = vunpack.c.l.b16 %v1779
  %v1824 = vunpack.c.l.b16 %v1780
  %v1825 = vunpack.c.l.b16 %v1781
  %v1826 = vpack.c.b16 %v1819, %v1818
  %v1827 = vpack.c.b16 %v1821, %v1820
  %v1828 = vpack.c.b16 %v1823, %v1822
  %v1829 = vpack.c.b16 %v1825, %v1824
  %v1858 = vunpack.c.l.b16 %v1782
  %v1859 = vunpack.c.h.b16 %v1782
  %v1860 = vunpack.c.l.b16 %v1783
  %v1861 = vunpack.c.h.b16 %v1783
  %v1862 = vunpack.c.l.b16 %v1784
  %v1863 = vunpack.c.h.b16 %v1784
  %v1864 = vunpack.c.l.b16 %v1785
  %v1865 = vunpack.c.h.b16 %v1785
  %v1866 = vunpack.c.l.b16 %v1786
  %v1867 = vunpack.c.h.b16 %v1786
  %v1868 = vunpack.c.l.b16 %v1787
  %v1869 = vunpack.c.h.b16 %v1787
  %v1870 = vunpack.c.l.b16 %v1788
  %v1871 = vunpack.c.h.b16 %v1788
  %v1872 = vunpack.c.l.b16 %v1789
  %v1873 = vunpack.c.h.b16 %v1789
  %v1874 = vunpack.c.l.b16 %v1790
  %v1875 = vunpack.c.h.b16 %v1790
  %v1876 = vunpack.c.l.b16 %v1791
  %v1877 = vunpack.c.h.b16 %v1791
  %v1878 = vunpack.c.l.b16 %v1792
  %v1879 = vunpack.c.h.b16 %v1792
  %v1880 = vunpack.c.l.b16 %v1793
  %v1881 = vunpack.c.h.b16 %v1793
  %v1882 = vunpack.c.l.b16 %v1794
  %v1883 = vunpack.c.h.b16 %v1794
  %v1884 = vunpack.c.l.b16 %v1795
  %v1885 = vunpack.c.h.b16 %v1795
  %v1886 = vunpack.c.l.b16 %v1796
  %v1887 = vunpack.c.h.b16 %v1796
  %v1888 = vunpack.c.l.b16 %v1797
  %v1889 = vunpack.c.h.b16 %v1797
  %v1890 = vunpack.c.l.b16 %v1798
  %v1891 = vunpack.c.h.b16 %v1798
  %v1892 = vunpack.c.l.b16 %v1799
  %v1893 = vunpack.c.h.b16 %v1799
  %v1894 = vunpack.c.l.b16 %v1800
  %v1895 = vunpack.c.h.b16 %v1800
  %v1896 = vunpack.c.l.b16 %v1801
  %v1897 = vunpack.c.h.b16 %v1801
  %v1898 = vunpack.c.l.b16 %v1802
  %v1899 = vunpack.c.h.b16 %v1802
  %v1900 = vunpack.c.l.b16 %v1803
  %v1901 = vunpack.c.h.b16 %v1803
  %v1902 = vunpack.c.l.b16 %v1804
  %v1903 = vunpack.c.h.b16 %v1804
  %v1904 = vunpack.c.l.b16 %v1805
  %v1905 = vunpack.c.h.b16 %v1805
  %v1906 = vunpack.c.l.b16 %v1806
  %v1907 = vunpack.c.h.b16 %v1806
  %v1908 = vunpack.c.l.b16 %v1807
  %v1909 = vunpack.c.h.b16 %v1807
  %v1910 = vunpack.c.l.b16 %v1808
  %v1911 = vunpack.c.h.b16 %v1808
  %v1912 = vunpack.c.l.b16 %v1809
  %v1913 = vunpack.c.h.b16 %v1809
  %v1914 = vpack.c.b16 %v1872, %v1858
  %v1915 = vpack.c.b16 %v1873, %v1859
  %v1916 = vpack.c.b16 %v1874, %v1860
  %v1917 = vpack.c.b16 %v1875, %v1861
  %v1918 = vpack.c.b16 %v1876, %v1862
  %v1919 = vpack.c.b16 %v1877, %v1863
  %v1920 = vpack.c.b16 %v1878, %v1864
  %v1921 = vpack.c.b16 %v1879, %v1865
  %v1922 = vpack.c.b16 %v1880, %v1866
  %v1923 = vpack.c.b16 %v1881, %v1867
  %v1924 = vpack.c.b16 %v1882, %v1868
  %v1925 = vpack.c.b16 %v1883, %v1869
  %v1926 = vpack.c.b16 %v1884, %v1870
  %v1927 = vpack.c.b16 %v1885, %v1871
  %v1928 = vpack.c.b16 %v1900, %v1886
  %v1929 = vpack.c.b16 %v1901, %v1887
  %v1930 = vpack.c.b16 %v1902, %v1888
  %v1931 = vpack.c.b16 %v1903, %v1889
  %v1932 = vpack.c.b16 %v1904, %v1890
  %v1933 = vpack.c.b16 %v1905, %v1891
  %v1934 = vpack.c.b16 %v1906, %v1892
  %v1935 = vpack.c.b16 %v1907, %v1893
  %v1936 = vpack.c.b16 %v1908, %v1894
  %v1937 = vpack.c.b16 %v1909, %v1895
  %v1938 = vpack.c.b16 %v1910, %v1896
  %v1939 = vpack.c.b16 %v1911, %v1897
  %v1940 = vpack.c.b16 %v1912, %v1898
  %v1941 = vpack.c.b16 %v1913, %v1899
  %v1971 = vsel %vm236, %v1826, 0
  %v1974 = vsel %vm236, %v1827, 0
  %v1977 = vsel %vm236, %v1828, 0
  %v1980 = vsel %vm236, %v1829, 0
  %1982 = vmatpush.bf16.msra.mxu0 0
  %1983 = vmatpush.bf16.msra.mxu0 0
  %1984 = vmatpush.bf16.msra.mxu0 0
  %1985 = vmatpush.bf16.msra.mxu0 0
  %1986 = vmatpush.bf16.msra.mxu0 0
  %1987 = vmatpush.bf16.msra.mxu0 0
  %1988 = vmatpush.bf16.msra.mxu0 %v1928
  %1989 = vmatpush.bf16.msra.mxu0 %v1914
  %1990 = vmatmul.bf16.gmra.mxu0 %v1971
  %v1991 = vpop.f32.mrf.mxu0
  %v1992 = vadd.f32 0.0, %v1991
  %v1993 = vpop.f32.mrf.mxu0
  %v1994 = vadd.f32 0.0, %v1993
  %1995 = vmatmul.bf16.gmra.mxu0 %v1974
  %v1996 = vpop.f32.mrf.mxu0
  %v1997 = vadd.f32 0.0, %v1996
  %v1998 = vpop.f32.mrf.mxu0
  %v1999 = vadd.f32 0.0, %v1998
  %2000 = vmatmul.bf16.gmra.mxu0 %v1977
  %v2001 = vpop.f32.mrf.mxu0
  %v2002 = vadd.f32 0.0, %v2001
  %v2003 = vpop.f32.mrf.mxu0
  %v2004 = vadd.f32 0.0, %v2003
  %2005 = vmatmul.bf16.gmra.mxu0 %v1980
  %v2006 = vpop.f32.mrf.mxu0
  %v2007 = vadd.f32 0.0, %v2006
  %v2008 = vpop.f32.mrf.mxu0
  %v2009 = vadd.f32 0.0, %v2008
  %2010 = vdwg.mxu0
  %2011 = vmatpush.bf16.msra.mxu0 0
  %2012 = vmatpush.bf16.msra.mxu0 0
  %2013 = vmatpush.bf16.msra.mxu0 0
  %2014 = vmatpush.bf16.msra.mxu0 0
  %2015 = vmatpush.bf16.msra.mxu0 0
  %2016 = vmatpush.bf16.msra.mxu0 0
  %2017 = vmatpush.bf16.msra.mxu0 %v1929
  %2018 = vmatpush.bf16.msra.mxu0 %v1915
  %2019 = vmatmul.bf16.gmra.mxu0 %v1971
  %v2020 = vpop.f32.mrf.mxu0
  %v2021 = vadd.f32 0.0, %v2020
  %v2022 = vpop.f32.mrf.mxu0
  %v2023 = vadd.f32 0.0, %v2022
  %2024 = vmatmul.bf16.gmra.mxu0 %v1974
  %v2025 = vpop.f32.mrf.mxu0
  %v2026 = vadd.f32 0.0, %v2025
  %v2027 = vpop.f32.mrf.mxu0
  %v2028 = vadd.f32 0.0, %v2027
  %2029 = vmatmul.bf16.gmra.mxu0 %v1977
  %v2030 = vpop.f32.mrf.mxu0
  %v2031 = vadd.f32 0.0, %v2030
  %v2032 = vpop.f32.mrf.mxu0
  %v2033 = vadd.f32 0.0, %v2032
  %2034 = vmatmul.bf16.gmra.mxu0 %v1980
  %v2035 = vpop.f32.mrf.mxu0
  %v2036 = vadd.f32 0.0, %v2035
  %v2037 = vpop.f32.mrf.mxu0
  %v2038 = vadd.f32 0.0, %v2037
  %2039 = vdwg.mxu0
  %2040 = vmatpush.bf16.msra.mxu0 0
  %2041 = vmatpush.bf16.msra.mxu0 0
  %2042 = vmatpush.bf16.msra.mxu0 0
  %2043 = vmatpush.bf16.msra.mxu0 0
  %2044 = vmatpush.bf16.msra.mxu0 0
  %2045 = vmatpush.bf16.msra.mxu0 0
  %2046 = vmatpush.bf16.msra.mxu0 %v1930
  %2047 = vmatpush.bf16.msra.mxu0 %v1916
  %2048 = vmatmul.bf16.gmra.mxu0 %v1971
  %v2049 = vpop.f32.mrf.mxu0
  %v2050 = vadd.f32 0.0, %v2049
  %v2051 = vpop.f32.mrf.mxu0
  %v2052 = vadd.f32 0.0, %v2051
  %2053 = vmatmul.bf16.gmra.mxu0 %v1974
  %v2054 = vpop.f32.mrf.mxu0
  %v2055 = vadd.f32 0.0, %v2054
  %v2056 = vpop.f32.mrf.mxu0
  %v2057 = vadd.f32 0.0, %v2056
  %2058 = vmatmul.bf16.gmra.mxu0 %v1977
  %v2059 = vpop.f32.mrf.mxu0
  %v2060 = vadd.f32 0.0, %v2059
  %v2061 = vpop.f32.mrf.mxu0
  %v2062 = vadd.f32 0.0, %v2061
  %2063 = vmatmul.bf16.gmra.mxu0 %v1980
  %v2064 = vpop.f32.mrf.mxu0
  %v2065 = vadd.f32 0.0, %v2064
  %v2066 = vpop.f32.mrf.mxu0
  %v2067 = vadd.f32 0.0, %v2066
  %2068 = vdwg.mxu0
  %2069 = vmatpush.bf16.msra.mxu0 0
  %2070 = vmatpush.bf16.msra.mxu0 0
  %2071 = vmatpush.bf16.msra.mxu0 0
  %2072 = vmatpush.bf16.msra.mxu0 0
  %2073 = vmatpush.bf16.msra.mxu0 0
  %2074 = vmatpush.bf16.msra.mxu0 0
  %2075 = vmatpush.bf16.msra.mxu0 %v1931
  %2076 = vmatpush.bf16.msra.mxu0 %v1917
  %2077 = vmatmul.bf16.gmra.mxu0 %v1971
  %v2078 = vpop.f32.mrf.mxu0
  %v2079 = vadd.f32 0.0, %v2078
  %v2080 = vpop.f32.mrf.mxu0
  %v2081 = vadd.f32 0.0, %v2080
  %2082 = vmatmul.bf16.gmra.mxu0 %v1974
  %v2083 = vpop.f32.mrf.mxu0
  %v2084 = vadd.f32 0.0, %v2083
  %v2085 = vpop.f32.mrf.mxu0
  %v2086 = vadd.f32 0.0, %v2085
  %2087 = vmatmul.bf16.gmra.mxu0 %v1977
  %v2088 = vpop.f32.mrf.mxu0
  %v2089 = vadd.f32 0.0, %v2088
  %v2090 = vpop.f32.mrf.mxu0
  %v2091 = vadd.f32 0.0, %v2090
  %2092 = vmatmul.bf16.gmra.mxu0 %v1980
  %v2093 = vpop.f32.mrf.mxu0
  %v2094 = vadd.f32 0.0, %v2093
  %v2095 = vpop.f32.mrf.mxu0
  %v2096 = vadd.f32 0.0, %v2095
  %2097 = vdwg.mxu0
  %2098 = vmatpush.bf16.msra.mxu0 0
  %2099 = vmatpush.bf16.msra.mxu0 0
  %2100 = vmatpush.bf16.msra.mxu0 0
  %2101 = vmatpush.bf16.msra.mxu0 0
  %2102 = vmatpush.bf16.msra.mxu0 0
  %2103 = vmatpush.bf16.msra.mxu0 0
  %2104 = vmatpush.bf16.msra.mxu0 %v1932
  %2105 = vmatpush.bf16.msra.mxu0 %v1918
  %2106 = vmatmul.bf16.gmra.mxu0 %v1971
  %v2107 = vpop.f32.mrf.mxu0
  %v2108 = vadd.f32 0.0, %v2107
  %v2109 = vpop.f32.mrf.mxu0
  %v2110 = vadd.f32 0.0, %v2109
  %2111 = vmatmul.bf16.gmra.mxu0 %v1974
  %v2112 = vpop.f32.mrf.mxu0
  %v2113 = vadd.f32 0.0, %v2112
  %v2114 = vpop.f32.mrf.mxu0
  %v2115 = vadd.f32 0.0, %v2114
  %2116 = vmatmul.bf16.gmra.mxu0 %v1977
  %v2117 = vpop.f32.mrf.mxu0
  %v2118 = vadd.f32 0.0, %v2117
  %v2119 = vpop.f32.mrf.mxu0
  %v2120 = vadd.f32 0.0, %v2119
  %2121 = vmatmul.bf16.gmra.mxu0 %v1980
  %v2122 = vpop.f32.mrf.mxu0
  %v2123 = vadd.f32 0.0, %v2122
  %v2124 = vpop.f32.mrf.mxu0
  %v2125 = vadd.f32 0.0, %v2124
  %2126 = vdwg.mxu0
  %2127 = vmatpush.bf16.msra.mxu0 0
  %2128 = vmatpush.bf16.msra.mxu0 0
  %2129 = vmatpush.bf16.msra.mxu0 0
  %2130 = vmatpush.bf16.msra.mxu0 0
  %2131 = vmatpush.bf16.msra.mxu0 0
  %2132 = vmatpush.bf16.msra.mxu0 0
  %2133 = vmatpush.bf16.msra.mxu0 %v1933
  %2134 = vmatpush.bf16.msra.mxu0 %v1919
  %2135 = vmatmul.bf16.gmra.mxu0 %v1971
  %v2136 = vpop.f32.mrf.mxu0
  %v2137 = vadd.f32 0.0, %v2136
  %v2138 = vpop.f32.mrf.mxu0
  %v2139 = vadd.f32 0.0, %v2138
  %2140 = vmatmul.bf16.gmra.mxu0 %v1974
  %v2141 = vpop.f32.mrf.mxu0
  %v2142 = vadd.f32 0.0, %v2141
  %v2143 = vpop.f32.mrf.mxu0
  %v2144 = vadd.f32 0.0, %v2143
  %2145 = vmatmul.bf16.gmra.mxu0 %v1977
  %v2146 = vpop.f32.mrf.mxu0
  %v2147 = vadd.f32 0.0, %v2146
  %v2148 = vpop.f32.mrf.mxu0
  %v2149 = vadd.f32 0.0, %v2148
  %2150 = vmatmul.bf16.gmra.mxu0 %v1980
  %v2151 = vpop.f32.mrf.mxu0
  %v2152 = vadd.f32 0.0, %v2151
  %v2153 = vpop.f32.mrf.mxu0
  %v2154 = vadd.f32 0.0, %v2153
  %2155 = vdwg.mxu0
  %2156 = vmatpush.bf16.msra.mxu0 0
  %2157 = vmatpush.bf16.msra.mxu0 0
  %2158 = vmatpush.bf16.msra.mxu0 0
  %2159 = vmatpush.bf16.msra.mxu0 0
  %2160 = vmatpush.bf16.msra.mxu0 0
  %2161 = vmatpush.bf16.msra.mxu0 0
  %2162 = vmatpush.bf16.msra.mxu0 %v1934
  %2163 = vmatpush.bf16.msra.mxu0 %v1920
  %2164 = vmatmul.bf16.gmra.mxu0 %v1971
  %v2165 = vpop.f32.mrf.mxu0
  %v2166 = vadd.f32 0.0, %v2165
  %v2167 = vpop.f32.mrf.mxu0
  %v2168 = vadd.f32 0.0, %v2167
  %2169 = vmatmul.bf16.gmra.mxu0 %v1974
  %v2170 = vpop.f32.mrf.mxu0
  %v2171 = vadd.f32 0.0, %v2170
  %v2172 = vpop.f32.mrf.mxu0
  %v2173 = vadd.f32 0.0, %v2172
  %2174 = vmatmul.bf16.gmra.mxu0 %v1977
  %v2175 = vpop.f32.mrf.mxu0
  %v2176 = vadd.f32 0.0, %v2175
  %v2177 = vpop.f32.mrf.mxu0
  %v2178 = vadd.f32 0.0, %v2177
  %2179 = vmatmul.bf16.gmra.mxu0 %v1980
  %v2180 = vpop.f32.mrf.mxu0
  %v2181 = vadd.f32 0.0, %v2180
  %v2182 = vpop.f32.mrf.mxu0
  %v2183 = vadd.f32 0.0, %v2182
  %2184 = vdwg.mxu0
  %2185 = vmatpush.bf16.msra.mxu0 0
  %2186 = vmatpush.bf16.msra.mxu0 0
  %2187 = vmatpush.bf16.msra.mxu0 0
  %2188 = vmatpush.bf16.msra.mxu0 0
  %2189 = vmatpush.bf16.msra.mxu0 0
  %2190 = vmatpush.bf16.msra.mxu0 0
  %2191 = vmatpush.bf16.msra.mxu0 %v1935
  %2192 = vmatpush.bf16.msra.mxu0 %v1921
  %2193 = vmatmul.bf16.gmra.mxu0 %v1971
  %v2194 = vpop.f32.mrf.mxu0
  %v2195 = vadd.f32 0.0, %v2194
  %v2196 = vpop.f32.mrf.mxu0
  %v2197 = vadd.f32 0.0, %v2196
  %2198 = vmatmul.bf16.gmra.mxu0 %v1974
  %v2199 = vpop.f32.mrf.mxu0
  %v2200 = vadd.f32 0.0, %v2199
  %v2201 = vpop.f32.mrf.mxu0
  %v2202 = vadd.f32 0.0, %v2201
  %2203 = vmatmul.bf16.gmra.mxu0 %v1977
  %v2204 = vpop.f32.mrf.mxu0
  %v2205 = vadd.f32 0.0, %v2204
  %v2206 = vpop.f32.mrf.mxu0
  %v2207 = vadd.f32 0.0, %v2206
  %2208 = vmatmul.bf16.gmra.mxu0 %v1980
  %v2209 = vpop.f32.mrf.mxu0
  %v2210 = vadd.f32 0.0, %v2209
  %v2211 = vpop.f32.mrf.mxu0
  %v2212 = vadd.f32 0.0, %v2211
  %2213 = vdwg.mxu0
  %2214 = vmatpush.bf16.msra.mxu0 0
  %2215 = vmatpush.bf16.msra.mxu0 0
  %2216 = vmatpush.bf16.msra.mxu0 0
  %2217 = vmatpush.bf16.msra.mxu0 0
  %2218 = vmatpush.bf16.msra.mxu0 0
  %2219 = vmatpush.bf16.msra.mxu0 0
  %2220 = vmatpush.bf16.msra.mxu0 %v1936
  %2221 = vmatpush.bf16.msra.mxu0 %v1922
  %2222 = vmatmul.bf16.gmra.mxu0 %v1971
  %v2223 = vpop.f32.mrf.mxu0
  %v2224 = vadd.f32 0.0, %v2223
  %v2225 = vpop.f32.mrf.mxu0
  %v2226 = vadd.f32 0.0, %v2225
  %2227 = vmatmul.bf16.gmra.mxu0 %v1974
  %v2228 = vpop.f32.mrf.mxu0
  %v2229 = vadd.f32 0.0, %v2228
  %v2230 = vpop.f32.mrf.mxu0
  %v2231 = vadd.f32 0.0, %v2230
  %2232 = vmatmul.bf16.gmra.mxu0 %v1977
  %v2233 = vpop.f32.mrf.mxu0
  %v2234 = vadd.f32 0.0, %v2233
  %v2235 = vpop.f32.mrf.mxu0
  %v2236 = vadd.f32 0.0, %v2235
  %2237 = vmatmul.bf16.gmra.mxu0 %v1980
  %v2238 = vpop.f32.mrf.mxu0
  %v2239 = vadd.f32 0.0, %v2238
  %v2240 = vpop.f32.mrf.mxu0
  %v2241 = vadd.f32 0.0, %v2240
  %2242 = vdwg.mxu0
  %2243 = vmatpush.bf16.msra.mxu0 0
  %2244 = vmatpush.bf16.msra.mxu0 0
  %2245 = vmatpush.bf16.msra.mxu0 0
  %2246 = vmatpush.bf16.msra.mxu0 0
  %2247 = vmatpush.bf16.msra.mxu0 0
  %2248 = vmatpush.bf16.msra.mxu0 0
  %2249 = vmatpush.bf16.msra.mxu0 %v1937
  %2250 = vmatpush.bf16.msra.mxu0 %v1923
  %2251 = vmatmul.bf16.gmra.mxu0 %v1971
  %v2252 = vpop.f32.mrf.mxu0
  %v2253 = vadd.f32 0.0, %v2252
  %v2254 = vpop.f32.mrf.mxu0
  %v2255 = vadd.f32 0.0, %v2254
  %2256 = vmatmul.bf16.gmra.mxu0 %v1974
  %v2257 = vpop.f32.mrf.mxu0
  %v2258 = vadd.f32 0.0, %v2257
  %v2259 = vpop.f32.mrf.mxu0
  %v2260 = vadd.f32 0.0, %v2259
  %2261 = vmatmul.bf16.gmra.mxu0 %v1977
  %v2262 = vpop.f32.mrf.mxu0
  %v2263 = vadd.f32 0.0, %v2262
  %v2264 = vpop.f32.mrf.mxu0
  %v2265 = vadd.f32 0.0, %v2264
  %2266 = vmatmul.bf16.gmra.mxu0 %v1980
  %v2267 = vpop.f32.mrf.mxu0
  %v2268 = vadd.f32 0.0, %v2267
  %v2269 = vpop.f32.mrf.mxu0
  %v2270 = vadd.f32 0.0, %v2269
  %2271 = vdwg.mxu0
  %2272 = vmatpush.bf16.msra.mxu0 0
  %2273 = vmatpush.bf16.msra.mxu0 0
  %2274 = vmatpush.bf16.msra.mxu0 0
  %2275 = vmatpush.bf16.msra.mxu0 0
  %2276 = vmatpush.bf16.msra.mxu0 0
  %2277 = vmatpush.bf16.msra.mxu0 0
  %2278 = vmatpush.bf16.msra.mxu0 %v1938
  %2279 = vmatpush.bf16.msra.mxu0 %v1924
  %2280 = vmatmul.bf16.gmra.mxu0 %v1971
  %v2281 = vpop.f32.mrf.mxu0
  %v2282 = vadd.f32 0.0, %v2281
  %v2283 = vpop.f32.mrf.mxu0
  %v2284 = vadd.f32 0.0, %v2283
  %2285 = vmatmul.bf16.gmra.mxu0 %v1974
  %v2286 = vpop.f32.mrf.mxu0
  %v2287 = vadd.f32 0.0, %v2286
  %v2288 = vpop.f32.mrf.mxu0
  %v2289 = vadd.f32 0.0, %v2288
  %2290 = vmatmul.bf16.gmra.mxu0 %v1977
  %v2291 = vpop.f32.mrf.mxu0
  %v2292 = vadd.f32 0.0, %v2291
  %v2293 = vpop.f32.mrf.mxu0
  %v2294 = vadd.f32 0.0, %v2293
  %2295 = vmatmul.bf16.gmra.mxu0 %v1980
  %v2296 = vpop.f32.mrf.mxu0
  %v2297 = vadd.f32 0.0, %v2296
  %v2298 = vpop.f32.mrf.mxu0
  %v2299 = vadd.f32 0.0, %v2298
  %2300 = vdwg.mxu0
  %2301 = vmatpush.bf16.msra.mxu0 0
  %2302 = vmatpush.bf16.msra.mxu0 0
  %2303 = vmatpush.bf16.msra.mxu0 0
  %2304 = vmatpush.bf16.msra.mxu0 0
  %2305 = vmatpush.bf16.msra.mxu0 0
  %2306 = vmatpush.bf16.msra.mxu0 0
  %2307 = vmatpush.bf16.msra.mxu0 %v1939
  %2308 = vmatpush.bf16.msra.mxu0 %v1925
  %2309 = vmatmul.bf16.gmra.mxu0 %v1971
  %v2310 = vpop.f32.mrf.mxu0
  %v2311 = vadd.f32 0.0, %v2310
  %v2312 = vpop.f32.mrf.mxu0
  %v2313 = vadd.f32 0.0, %v2312
  %2314 = vmatmul.bf16.gmra.mxu0 %v1974
  %v2315 = vpop.f32.mrf.mxu0
  %v2316 = vadd.f32 0.0, %v2315
  %v2317 = vpop.f32.mrf.mxu0
  %v2318 = vadd.f32 0.0, %v2317
  %2319 = vmatmul.bf16.gmra.mxu0 %v1977
  %v2320 = vpop.f32.mrf.mxu0
  %v2321 = vadd.f32 0.0, %v2320
  %v2322 = vpop.f32.mrf.mxu0
  %v2323 = vadd.f32 0.0, %v2322
  %2324 = vmatmul.bf16.gmra.mxu0 %v1980
  %v2325 = vpop.f32.mrf.mxu0
  %v2326 = vadd.f32 0.0, %v2325
  %v2327 = vpop.f32.mrf.mxu0
  %v2328 = vadd.f32 0.0, %v2327
  %2329 = vdwg.mxu0
  %2330 = vmatpush.bf16.msra.mxu0 0
  %2331 = vmatpush.bf16.msra.mxu0 0
  %2332 = vmatpush.bf16.msra.mxu0 0
  %2333 = vmatpush.bf16.msra.mxu0 0
  %2334 = vmatpush.bf16.msra.mxu0 0
  %2335 = vmatpush.bf16.msra.mxu0 0
  %2336 = vmatpush.bf16.msra.mxu0 %v1940
  %2337 = vmatpush.bf16.msra.mxu0 %v1926
  %2338 = vmatmul.bf16.gmra.mxu0 %v1971
  %v2339 = vpop.f32.mrf.mxu0
  %v2340 = vadd.f32 0.0, %v2339
  %v2341 = vpop.f32.mrf.mxu0
  %v2342 = vadd.f32 0.0, %v2341
  %2343 = vmatmul.bf16.gmra.mxu0 %v1974
  %v2344 = vpop.f32.mrf.mxu0
  %v2345 = vadd.f32 0.0, %v2344
  %v2346 = vpop.f32.mrf.mxu0
  %v2347 = vadd.f32 0.0, %v2346
  %2348 = vmatmul.bf16.gmra.mxu0 %v1977
  %v2349 = vpop.f32.mrf.mxu0
  %v2350 = vadd.f32 0.0, %v2349
  %v2351 = vpop.f32.mrf.mxu0
  %v2352 = vadd.f32 0.0, %v2351
  %2353 = vmatmul.bf16.gmra.mxu0 %v1980
  %v2354 = vpop.f32.mrf.mxu0
  %v2355 = vadd.f32 0.0, %v2354
  %v2356 = vpop.f32.mrf.mxu0
  %v2357 = vadd.f32 0.0, %v2356
  %2358 = vdwg.mxu0
  %2359 = vmatpush.bf16.msra.mxu0 0
  %2360 = vmatpush.bf16.msra.mxu0 0
  %2361 = vmatpush.bf16.msra.mxu0 0
  %2362 = vmatpush.bf16.msra.mxu0 0
  %2363 = vmatpush.bf16.msra.mxu0 0
  %2364 = vmatpush.bf16.msra.mxu0 0
  %2365 = vmatpush.bf16.msra.mxu0 %v1941
  %2366 = vmatpush.bf16.msra.mxu0 %v1927
  %2367 = vmatmul.bf16.gmra.mxu0 %v1971
  %v2368 = vpop.f32.mrf.mxu0
  %v2369 = vadd.f32 0.0, %v2368
  %v2370 = vpop.f32.mrf.mxu0
  %v2371 = vadd.f32 0.0, %v2370
  %2372 = vmatmul.bf16.gmra.mxu0 %v1974
  %v2373 = vpop.f32.mrf.mxu0
  %v2374 = vadd.f32 0.0, %v2373
  %v2375 = vpop.f32.mrf.mxu0
  %v2376 = vadd.f32 0.0, %v2375
  %2377 = vmatmul.bf16.gmra.mxu0 %v1977
  %v2378 = vpop.f32.mrf.mxu0
  %v2379 = vadd.f32 0.0, %v2378
  %v2380 = vpop.f32.mrf.mxu0
  %v2381 = vadd.f32 0.0, %v2380
  %2382 = vmatmul.bf16.gmra.mxu0 %v1980
  %v2383 = vpop.f32.mrf.mxu0
  %v2384 = vadd.f32 0.0, %v2383
  %v2385 = vpop.f32.mrf.mxu0
  %v2386 = vadd.f32 0.0, %v2385
  %2387 = vdwg.mxu0
  %v2388 = vadd.f32 %v1661, %v1992
  %v2389 = vadd.f32 %v1662, %v2021
  %v2390 = vadd.f32 %v1663, %v2050
  %v2391 = vadd.f32 %v1664, %v2079
  %v2392 = vadd.f32 %v1665, %v2108
  %v2393 = vadd.f32 %v1666, %v2137
  %v2394 = vadd.f32 %v1667, %v2166
  %v2395 = vadd.f32 %v1668, %v2195
  %v2396 = vadd.f32 %v1669, %v2224
  %v2397 = vadd.f32 %v1670, %v2253
  %v2398 = vadd.f32 %v1671, %v2282
  %v2399 = vadd.f32 %v1672, %v2311
  %v2400 = vadd.f32 %v1673, %v2340
  %v2401 = vadd.f32 %v1674, %v2369
  %v2402 = vadd.f32 %v1675, %v1994
  %v2403 = vadd.f32 %v1676, %v2023
  %v2404 = vadd.f32 %v1677, %v2052
  %v2405 = vadd.f32 %v1678, %v2081
  %v2406 = vadd.f32 %v1679, %v2110
  %v2407 = vadd.f32 %v1680, %v2139
  %v2408 = vadd.f32 %v1681, %v2168
  %v2409 = vadd.f32 %v1682, %v2197
  %v2410 = vadd.f32 %v1683, %v2226
  %v2411 = vadd.f32 %v1684, %v2255
  %v2412 = vadd.f32 %v1685, %v2284
  %v2413 = vadd.f32 %v1686, %v2313
  %v2414 = vadd.f32 %v1687, %v2342
  %v2415 = vadd.f32 %v1688, %v2371
  %v2416 = vadd.f32 %v1689, %v1997
  %v2417 = vadd.f32 %v1690, %v2026
  %v2418 = vadd.f32 %v1691, %v2055
  %v2419 = vadd.f32 %v1692, %v2084
  %v2420 = vadd.f32 %v1693, %v2113
  %v2421 = vadd.f32 %v1694, %v2142
  %v2422 = vadd.f32 %v1695, %v2171
  %v2423 = vadd.f32 %v1696, %v2200
  %v2424 = vadd.f32 %v1697, %v2229
  %v2425 = vadd.f32 %v1698, %v2258
  %v2426 = vadd.f32 %v1699, %v2287
  %v2427 = vadd.f32 %v1700, %v2316
  %v2428 = vadd.f32 %v1701, %v2345
  %v2429 = vadd.f32 %v1702, %v2374
  %v2430 = vadd.f32 %v1703, %v1999
  %v2431 = vadd.f32 %v1704, %v2028
  %v2432 = vadd.f32 %v1705, %v2057
  %v2433 = vadd.f32 %v1706, %v2086
  %v2434 = vadd.f32 %v1707, %v2115
  %v2435 = vadd.f32 %v1708, %v2144
  %v2436 = vadd.f32 %v1709, %v2173
  %v2437 = vadd.f32 %v1710, %v2202
  %v2438 = vadd.f32 %v1711, %v2231
  %v2439 = vadd.f32 %v1712, %v2260
  %v2440 = vadd.f32 %v1713, %v2289
  %v2441 = vadd.f32 %v1714, %v2318
  %v2442 = vadd.f32 %v1715, %v2347
  %v2443 = vadd.f32 %v1716, %v2376
  %v2444 = vadd.f32 %v1717, %v2002
  %v2445 = vadd.f32 %v1718, %v2031
  %v2446 = vadd.f32 %v1719, %v2060
  %v2447 = vadd.f32 %v1720, %v2089
  %v2448 = vadd.f32 %v1721, %v2118
  %v2449 = vadd.f32 %v1722, %v2147
  %v2450 = vadd.f32 %v1723, %v2176
  %v2451 = vadd.f32 %v1724, %v2205
  %v2452 = vadd.f32 %v1725, %v2234
  %v2453 = vadd.f32 %v1726, %v2263
  %v2454 = vadd.f32 %v1727, %v2292
  %v2455 = vadd.f32 %v1728, %v2321
  %v2456 = vadd.f32 %v1729, %v2350
  %v2457 = vadd.f32 %v1730, %v2379
  %v2458 = vadd.f32 %v1731, %v2004
  %v2459 = vadd.f32 %v1732, %v2033
  %v2460 = vadd.f32 %v1733, %v2062
  %v2461 = vadd.f32 %v1734, %v2091
  %v2462 = vadd.f32 %v1735, %v2120
  %v2463 = vadd.f32 %v1736, %v2149
  %v2464 = vadd.f32 %v1737, %v2178
  %v2465 = vadd.f32 %v1738, %v2207
  %v2466 = vadd.f32 %v1739, %v2236
  %v2467 = vadd.f32 %v1740, %v2265
  %v2468 = vadd.f32 %v1741, %v2294
  %v2469 = vadd.f32 %v1742, %v2323
  %v2470 = vadd.f32 %v1743, %v2352
  %v2471 = vadd.f32 %v1744, %v2381
  %v2472 = vadd.f32 %v1745, %v2007
  %v2473 = vadd.f32 %v1746, %v2036
  %v2474 = vadd.f32 %v1747, %v2065
  %v2475 = vadd.f32 %v1748, %v2094
  %v2476 = vadd.f32 %v1749, %v2123
  %v2477 = vadd.f32 %v1750, %v2152
  %v2478 = vadd.f32 %v1751, %v2181
  %v2479 = vadd.f32 %v1752, %v2210
  %v2480 = vadd.f32 %v1753, %v2239
  %v2481 = vadd.f32 %v1754, %v2268
  %v2482 = vadd.f32 %v1755, %v2297
  %v2483 = vadd.f32 %v1756, %v2326
  %v2484 = vadd.f32 %v1757, %v2355
  %v2485 = vadd.f32 %v1758, %v2384
  %v2486 = vadd.f32 %v1759, %v2009
  %v2487 = vadd.f32 %v1760, %v2038
  %v2488 = vadd.f32 %v1761, %v2067
  %v2489 = vadd.f32 %v1762, %v2096
  %v2490 = vadd.f32 %v1763, %v2125
  %v2491 = vadd.f32 %v1764, %v2154
  %v2492 = vadd.f32 %v1765, %v2183
  %v2493 = vadd.f32 %v1766, %v2212
  %v2494 = vadd.f32 %v1767, %v2241
  %v2495 = vadd.f32 %v1768, %v2270
  %v2496 = vadd.f32 %v1769, %v2299
  %v2497 = vadd.f32 %v1770, %v2328
  %v2498 = vadd.f32 %v1771, %v2357
  %v2499 = vadd.f32 %v1772, %v2386
  %2500 = vst [vmem:[#allocation2 + $0x10] sm:$0xff] %v2388
  %2501 = vst [vmem:[#allocation2 + $0x18] sm:$0xff] %v2389
  %2502 = vst [vmem:[#allocation2 + $0x20] sm:$0xff] %v2390
  %2503 = vst [vmem:[#allocation2 + $0x28] sm:$0xff] %v2391
  %2504 = vst [vmem:[#allocation2 + $0x30] sm:$0xff] %v2392
  %2505 = vst [vmem:[#allocation2 + $0x38] sm:$0xff] %v2393
  %2506 = vst [vmem:[#allocation2 + $0x40] sm:$0xff] %v2394
  %2507 = vst [vmem:[#allocation2 + $0x48] sm:$0xff] %v2395
  %2508 = vst [vmem:[#allocation2 + $0x50] sm:$0xff] %v2396
  %2509 = vst [vmem:[#allocation2 + $0x58] sm:$0xff] %v2397
  %2510 = vst [vmem:[#allocation2 + $0x60] sm:$0xff] %v2398
  %2511 = vst [vmem:[#allocation2 + $0x68] sm:$0xff] %v2399
  %2512 = vst [vmem:[#allocation2 + $0x70] sm:$0xff] %v2400
  %2513 = vst [vmem:[#allocation2 + $0x78] sm:$0xff] %v2401
  %2514 = vst [vmem:[#allocation2 + $0x90] sm:$0xff] %v2402
  %2515 = vst [vmem:[#allocation2 + $0x98] sm:$0xff] %v2403
  %2516 = vst [vmem:[#allocation2 + $0xa0] sm:$0xff] %v2404
  %2517 = vst [vmem:[#allocation2 + $0xa8] sm:$0xff] %v2405
  %2518 = vst [vmem:[#allocation2 + $0xb0] sm:$0xff] %v2406
  %2519 = vst [vmem:[#allocation2 + $0xb8] sm:$0xff] %v2407
  %2520 = vst [vmem:[#allocation2 + $0xc0] sm:$0xff] %v2408
  %2521 = vst [vmem:[#allocation2 + $0xc8] sm:$0xff] %v2409
  %2522 = vst [vmem:[#allocation2 + $0xd0] sm:$0xff] %v2410
  %2523 = vst [vmem:[#allocation2 + $0xd8] sm:$0xff] %v2411
  %2524 = vst [vmem:[#allocation2 + $0xe0] sm:$0xff] %v2412
  %2525 = vst [vmem:[#allocation2 + $0xe8] sm:$0xff] %v2413
  %2526 = vst [vmem:[#allocation2 + $0xf0] sm:$0xff] %v2414
  %2527 = vst [vmem:[#allocation2 + $0xf8] sm:$0xff] %v2415
  %2528 = vst [vmem:[#allocation2 + $0x110] sm:$0xff] %v2416
  %2529 = vst [vmem:[#allocation2 + $0x118] sm:$0xff] %v2417
  %2530 = vst [vmem:[#allocation2 + $0x120] sm:$0xff] %v2418
  %2531 = vst [vmem:[#allocation2 + $0x128] sm:$0xff] %v2419
  %2532 = vst [vmem:[#allocation2 + $0x130] sm:$0xff] %v2420
  %2533 = vst [vmem:[#allocation2 + $0x138] sm:$0xff] %v2421
  %2534 = vst [vmem:[#allocation2 + $0x140] sm:$0xff] %v2422
  %2535 = vst [vmem:[#allocation2 + $0x148] sm:$0xff] %v2423
  %2536 = vst [vmem:[#allocation2 + $0x150] sm:$0xff] %v2424
  %2537 = vst [vmem:[#allocation2 + $0x158] sm:$0xff] %v2425
  %2538 = vst [vmem:[#allocation2 + $0x160] sm:$0xff] %v2426
  %2539 = vst [vmem:[#allocation2 + $0x168] sm:$0xff] %v2427
  %2540 = vst [vmem:[#allocation2 + $0x170] sm:$0xff] %v2428
  %2541 = vst [vmem:[#allocation2 + $0x178] sm:$0xff] %v2429
  %2542 = vst [vmem:[#allocation2 + $0x190] sm:$0xff] %v2430
  %2543 = vst [vmem:[#allocation2 + $0x198] sm:$0xff] %v2431
  %2544 = vst [vmem:[#allocation2 + $0x1a0] sm:$0xff] %v2432
  %2545 = vst [vmem:[#allocation2 + $0x1a8] sm:$0xff] %v2433
  %2546 = vst [vmem:[#allocation2 + $0x1b0] sm:$0xff] %v2434
  %2547 = vst [vmem:[#allocation2 + $0x1b8] sm:$0xff] %v2435
  %2548 = vst [vmem:[#allocation2 + $0x1c0] sm:$0xff] %v2436
  %2549 = vst [vmem:[#allocation2 + $0x1c8] sm:$0xff] %v2437
  %2550 = vst [vmem:[#allocation2 + $0x1d0] sm:$0xff] %v2438
  %2551 = vst [vmem:[#allocation2 + $0x1d8] sm:$0xff] %v2439
  %2552 = vst [vmem:[#allocation2 + $0x1e0] sm:$0xff] %v2440
  %2553 = vst [vmem:[#allocation2 + $0x1e8] sm:$0xff] %v2441
  %2554 = vst [vmem:[#allocation2 + $0x1f0] sm:$0xff] %v2442
  %2555 = vst [vmem:[#allocation2 + $0x1f8] sm:$0xff] %v2443
  %2556 = vst [vmem:[#allocation2 + $0x210] sm:$0xff] %v2444
  %2557 = vst [vmem:[#allocation2 + $0x218] sm:$0xff] %v2445
  %2558 = vst [vmem:[#allocation2 + $0x220] sm:$0xff] %v2446
  %2559 = vst [vmem:[#allocation2 + $0x228] sm:$0xff] %v2447
  %2560 = vst [vmem:[#allocation2 + $0x230] sm:$0xff] %v2448
  %2561 = vst [vmem:[#allocation2 + $0x238] sm:$0xff] %v2449
  %2562 = vst [vmem:[#allocation2 + $0x240] sm:$0xff] %v2450
  %2563 = vst [vmem:[#allocation2 + $0x248] sm:$0xff] %v2451
  %2564 = vst [vmem:[#allocation2 + $0x250] sm:$0xff] %v2452
  %2565 = vst [vmem:[#allocation2 + $0x258] sm:$0xff] %v2453
  %2566 = vst [vmem:[#allocation2 + $0x260] sm:$0xff] %v2454
  %2567 = vst [vmem:[#allocation2 + $0x268] sm:$0xff] %v2455
  %2568 = vst [vmem:[#allocation2 + $0x270] sm:$0xff] %v2456
  %2569 = vst [vmem:[#allocation2 + $0x278] sm:$0xff] %v2457
  %2570 = vst [vmem:[#allocation2 + $0x290] sm:$0xff] %v2458
  %2571 = vst [vmem:[#allocation2 + $0x298] sm:$0xff] %v2459
  %2572 = vst [vmem:[#allocation2 + $0x2a0] sm:$0xff] %v2460
  %2573 = vst [vmem:[#allocation2 + $0x2a8] sm:$0xff] %v2461
  %2574 = vst [vmem:[#allocation2 + $0x2b0] sm:$0xff] %v2462
  %2575 = vst [vmem:[#allocation2 + $0x2b8] sm:$0xff] %v2463
  %2576 = vst [vmem:[#allocation2 + $0x2c0] sm:$0xff] %v2464
  %2577 = vst [vmem:[#allocation2 + $0x2c8] sm:$0xff] %v2465
  %2578 = vst [vmem:[#allocation2 + $0x2d0] sm:$0xff] %v2466
  %2579 = vst [vmem:[#allocation2 + $0x2d8] sm:$0xff] %v2467
  %2580 = vst [vmem:[#allocation2 + $0x2e0] sm:$0xff] %v2468
  %2581 = vst [vmem:[#allocation2 + $0x2e8] sm:$0xff] %v2469
  %2582 = vst [vmem:[#allocation2 + $0x2f0] sm:$0xff] %v2470
  %2583 = vst [vmem:[#allocation2 + $0x2f8] sm:$0xff] %v2471
  %2584 = vst [vmem:[#allocation2 + $0x310] sm:$0xff] %v2472
  %2585 = vst [vmem:[#allocation2 + $0x318] sm:$0xff] %v2473
  %2586 = vst [vmem:[#allocation2 + $0x320] sm:$0xff] %v2474
  %2587 = vst [vmem:[#allocation2 + $0x328] sm:$0xff] %v2475
  %2588 = vst [vmem:[#allocation2 + $0x330] sm:$0xff] %v2476
  %2589 = vst [vmem:[#allocation2 + $0x338] sm:$0xff] %v2477
  %2590 = vst [vmem:[#allocation2 + $0x340] sm:$0xff] %v2478
  %2591 = vst [vmem:[#allocation2 + $0x348] sm:$0xff] %v2479
  %2592 = vst [vmem:[#allocation2 + $0x350] sm:$0xff] %v2480
  %2593 = vst [vmem:[#allocation2 + $0x358] sm:$0xff] %v2481
  %2594 = vst [vmem:[#allocation2 + $0x360] sm:$0xff] %v2482
  %2595 = vst [vmem:[#allocation2 + $0x368] sm:$0xff] %v2483
  %2596 = vst [vmem:[#allocation2 + $0x370] sm:$0xff] %v2484
  %2597 = vst [vmem:[#allocation2 + $0x378] sm:$0xff] %v2485
  %2598 = vst [vmem:[#allocation2 + $0x390] sm:$0xff] %v2486
  %2599 = vst [vmem:[#allocation2 + $0x398] sm:$0xff] %v2487
  %2600 = vst [vmem:[#allocation2 + $0x3a0] sm:$0xff] %v2488
  %2601 = vst [vmem:[#allocation2 + $0x3a8] sm:$0xff] %v2489
  %2602 = vst [vmem:[#allocation2 + $0x3b0] sm:$0xff] %v2490
  %2603 = vst [vmem:[#allocation2 + $0x3b8] sm:$0xff] %v2491
  %2604 = vst [vmem:[#allocation2 + $0x3c0] sm:$0xff] %v2492
  %2605 = vst [vmem:[#allocation2 + $0x3c8] sm:$0xff] %v2493
  %2606 = vst [vmem:[#allocation2 + $0x3d0] sm:$0xff] %v2494
  %2607 = vst [vmem:[#allocation2 + $0x3d8] sm:$0xff] %v2495
  %2608 = vst [vmem:[#allocation2 + $0x3e0] sm:$0xff] %v2496
  %2609 = vst [vmem:[#allocation2 + $0x3e8] sm:$0xff] %v2497
  %2610 = vst [vmem:[#allocation2 + $0x3f0] sm:$0xff] %v2498
  %2611 = vst [vmem:[#allocation2 + $0x3f8] sm:$0xff] %v2499
  %v2612 = vld [vmem:[#allocation2] sm:$0xff]
  %v2613 = vld [vmem:[#allocation2 + $0x8] sm:$0xff]
  %v2614 = vld [vmem:[#allocation2 + $0x10] sm:$0xff]
  %v2615 = vld [vmem:[#allocation2 + $0x18] sm:$0xff]
  %v2616 = vld [vmem:[#allocation2 + $0x20] sm:$0xff]
  %v2617 = vld [vmem:[#allocation2 + $0x28] sm:$0xff]
  %v2618 = vld [vmem:[#allocation2 + $0x30] sm:$0xff]
  %v2619 = vld [vmem:[#allocation2 + $0x38] sm:$0xff]
  %v2620 = vld [vmem:[#allocation2 + $0x40] sm:$0xff]
  %v2621 = vld [vmem:[#allocation2 + $0x48] sm:$0xff]
  %v2622 = vld [vmem:[#allocation2 + $0x50] sm:$0xff]
  %v2623 = vld [vmem:[#allocation2 + $0x58] sm:$0xff]
  %v2624 = vld [vmem:[#allocation2 + $0x60] sm:$0xff]
  %v2625 = vld [vmem:[#allocation2 + $0x68] sm:$0xff]
  %v2626 = vld [vmem:[#allocation2 + $0x80] sm:$0xff]
  %v2627 = vld [vmem:[#allocation2 + $0x88] sm:$0xff]
  %v2628 = vld [vmem:[#allocation2 + $0x90] sm:$0xff]
  %v2629 = vld [vmem:[#allocation2 + $0x98] sm:$0xff]
  %v2630 = vld [vmem:[#allocation2 + $0xa0] sm:$0xff]
  %v2631 = vld [vmem:[#allocation2 + $0xa8] sm:$0xff]
  %v2632 = vld [vmem:[#allocation2 + $0xb0] sm:$0xff]
  %v2633 = vld [vmem:[#allocation2 + $0xb8] sm:$0xff]
  %v2634 = vld [vmem:[#allocation2 + $0xc0] sm:$0xff]
  %v2635 = vld [vmem:[#allocation2 + $0xc8] sm:$0xff]
  %v2636 = vld [vmem:[#allocation2 + $0xd0] sm:$0xff]
  %v2637 = vld [vmem:[#allocation2 + $0xd8] sm:$0xff]
  %v2638 = vld [vmem:[#allocation2 + $0xe0] sm:$0xff]
  %v2639 = vld [vmem:[#allocation2 + $0xe8] sm:$0xff]
  %v2640 = vld [vmem:[#allocation2 + $0x100] sm:$0xff]
  %v2641 = vld [vmem:[#allocation2 + $0x108] sm:$0xff]
  %v2642 = vld [vmem:[#allocation2 + $0x110] sm:$0xff]
  %v2643 = vld [vmem:[#allocation2 + $0x118] sm:$0xff]
  %v2644 = vld [vmem:[#allocation2 + $0x120] sm:$0xff]
  %v2645 = vld [vmem:[#allocation2 + $0x128] sm:$0xff]
  %v2646 = vld [vmem:[#allocation2 + $0x130] sm:$0xff]
  %v2647 = vld [vmem:[#allocation2 + $0x138] sm:$0xff]
  %v2648 = vld [vmem:[#allocation2 + $0x140] sm:$0xff]
  %v2649 = vld [vmem:[#allocation2 + $0x148] sm:$0xff]
  %v2650 = vld [vmem:[#allocation2 + $0x150] sm:$0xff]
  %v2651 = vld [vmem:[#allocation2 + $0x158] sm:$0xff]
  %v2652 = vld [vmem:[#allocation2 + $0x160] sm:$0xff]
  %v2653 = vld [vmem:[#allocation2 + $0x168] sm:$0xff]
  %v2654 = vld [vmem:[#allocation2 + $0x180] sm:$0xff]
  %v2655 = vld [vmem:[#allocation2 + $0x188] sm:$0xff]
  %v2656 = vld [vmem:[#allocation2 + $0x190] sm:$0xff]
  %v2657 = vld [vmem:[#allocation2 + $0x198] sm:$0xff]
  %v2658 = vld [vmem:[#allocation2 + $0x1a0] sm:$0xff]
  %v2659 = vld [vmem:[#allocation2 + $0x1a8] sm:$0xff]
  %v2660 = vld [vmem:[#allocation2 + $0x1b0] sm:$0xff]
  %v2661 = vld [vmem:[#allocation2 + $0x1b8] sm:$0xff]
  %v2662 = vld [vmem:[#allocation2 + $0x1c0] sm:$0xff]
  %v2663 = vld [vmem:[#allocation2 + $0x1c8] sm:$0xff]
  %v2664 = vld [vmem:[#allocation2 + $0x1d0] sm:$0xff]
  %v2665 = vld [vmem:[#allocation2 + $0x1d8] sm:$0xff]
  %v2666 = vld [vmem:[#allocation2 + $0x1e0] sm:$0xff]
  %v2667 = vld [vmem:[#allocation2 + $0x1e8] sm:$0xff]
  %v2668 = vld [vmem:[#allocation2 + $0x200] sm:$0xff]
  %v2669 = vld [vmem:[#allocation2 + $0x208] sm:$0xff]
  %v2670 = vld [vmem:[#allocation2 + $0x210] sm:$0xff]
  %v2671 = vld [vmem:[#allocation2 + $0x218] sm:$0xff]
  %v2672 = vld [vmem:[#allocation2 + $0x220] sm:$0xff]
  %v2673 = vld [vmem:[#allocation2 + $0x228] sm:$0xff]
  %v2674 = vld [vmem:[#allocation2 + $0x230] sm:$0xff]
  %v2675 = vld [vmem:[#allocation2 + $0x238] sm:$0xff]
  %v2676 = vld [vmem:[#allocation2 + $0x240] sm:$0xff]
  %v2677 = vld [vmem:[#allocation2 + $0x248] sm:$0xff]
  %v2678 = vld [vmem:[#allocation2 + $0x250] sm:$0xff]
  %v2679 = vld [vmem:[#allocation2 + $0x258] sm:$0xff]
  %v2680 = vld [vmem:[#allocation2 + $0x260] sm:$0xff]
  %v2681 = vld [vmem:[#allocation2 + $0x268] sm:$0xff]
  %v2682 = vld [vmem:[#allocation2 + $0x280] sm:$0xff]
  %v2683 = vld [vmem:[#allocation2 + $0x288] sm:$0xff]
  %v2684 = vld [vmem:[#allocation2 + $0x290] sm:$0xff]
  %v2685 = vld [vmem:[#allocation2 + $0x298] sm:$0xff]
  %v2686 = vld [vmem:[#allocation2 + $0x2a0] sm:$0xff]
  %v2687 = vld [vmem:[#allocation2 + $0x2a8] sm:$0xff]
  %v2688 = vld [vmem:[#allocation2 + $0x2b0] sm:$0xff]
  %v2689 = vld [vmem:[#allocation2 + $0x2b8] sm:$0xff]
  %v2690 = vld [vmem:[#allocation2 + $0x2c0] sm:$0xff]
  %v2691 = vld [vmem:[#allocation2 + $0x2c8] sm:$0xff]
  %v2692 = vld [vmem:[#allocation2 + $0x2d0] sm:$0xff]
  %v2693 = vld [vmem:[#allocation2 + $0x2d8] sm:$0xff]
  %v2694 = vld [vmem:[#allocation2 + $0x2e0] sm:$0xff]
  %v2695 = vld [vmem:[#allocation2 + $0x2e8] sm:$0xff]
  %v2696 = vld [vmem:[#allocation2 + $0x300] sm:$0xff]
  %v2697 = vld [vmem:[#allocation2 + $0x308] sm:$0xff]
  %v2698 = vld [vmem:[#allocation2 + $0x310] sm:$0xff]
  %v2699 = vld [vmem:[#allocation2 + $0x318] sm:$0xff]
  %v2700 = vld [vmem:[#allocation2 + $0x320] sm:$0xff]
  %v2701 = vld [vmem:[#allocation2 + $0x328] sm:$0xff]
  %v2702 = vld [vmem:[#allocation2 + $0x330] sm:$0xff]
  %v2703 = vld [vmem:[#allocation2 + $0x338] sm:$0xff]
  %v2704 = vld [vmem:[#allocation2 + $0x340] sm:$0xff]
  %v2705 = vld [vmem:[#allocation2 + $0x348] sm:$0xff]
  %v2706 = vld [vmem:[#allocation2 + $0x350] sm:$0xff]
  %v2707 = vld [vmem:[#allocation2 + $0x358] sm:$0xff]
  %v2708 = vld [vmem:[#allocation2 + $0x360] sm:$0xff]
  %v2709 = vld [vmem:[#allocation2 + $0x368] sm:$0xff]
  %v2710 = vld [vmem:[#allocation2 + $0x380] sm:$0xff]
  %v2711 = vld [vmem:[#allocation2 + $0x388] sm:$0xff]
  %v2712 = vld [vmem:[#allocation2 + $0x390] sm:$0xff]
  %v2713 = vld [vmem:[#allocation2 + $0x398] sm:$0xff]
  %v2714 = vld [vmem:[#allocation2 + $0x3a0] sm:$0xff]
  %v2715 = vld [vmem:[#allocation2 + $0x3a8] sm:$0xff]
  %v2716 = vld [vmem:[#allocation2 + $0x3b0] sm:$0xff]
  %v2717 = vld [vmem:[#allocation2 + $0x3b8] sm:$0xff]
  %v2718 = vld [vmem:[#allocation2 + $0x3c0] sm:$0xff]
  %v2719 = vld [vmem:[#allocation2 + $0x3c8] sm:$0xff]
  %v2720 = vld [vmem:[#allocation2 + $0x3d0] sm:$0xff]
  %v2721 = vld [vmem:[#allocation2 + $0x3d8] sm:$0xff]
  %v2722 = vld [vmem:[#allocation2 + $0x3e0] sm:$0xff]
  %v2723 = vld [vmem:[#allocation2 + $0x3e8] sm:$0xff]
  %s2724 = scalar_lea.vmem %s1, 96
  %v2725 = vld [vmem:[%s2724] sm:$0xf]
  %v2726 = vld [vmem:[%s2724 + $0x4] sm:$0xf]
  %v2727 = vld [vmem:[%s2724 + $0x8] sm:$0xf]
  %v2728 = vld [vmem:[%s2724 + $0xc] sm:$0xf]
  %v2729 = vld [vmem:[%s2724 + $0x10] sm:$0xf]
  %v2730 = vld [vmem:[%s2724 + $0x14] sm:$0xf]
  %v2731 = vld [vmem:[%s2724 + $0x18] sm:$0xf]
  %v2732 = vld [vmem:[%s2724 + $0x1c] sm:$0xf]
  %v2733 = vld [vmem:[%s0 + $0x8] sm:$0xff]
  %v2734 = vld [vmem:[%s0 + $0x10] sm:$0xff]
  %v2735 = vld [vmem:[%s0 + $0x18] sm:$0xff]
  %v2736 = vld [vmem:[%s0 + $0x20] sm:$0xff]
  %v2737 = vld [vmem:[%s0 + $0x28] sm:$0xff]
  %v2738 = vld [vmem:[%s0 + $0x30] sm:$0xff]
  %v2739 = vld [vmem:[%s0 + $0x38] sm:$0xff]
  %v2740 = vld [vmem:[%s0 + $0x48] sm:$0xff]
  %v2741 = vld [vmem:[%s0 + $0x50] sm:$0xff]
  %v2742 = vld [vmem:[%s0 + $0x58] sm:$0xff]
  %v2743 = vld [vmem:[%s0 + $0x60] sm:$0xff]
  %v2744 = vld [vmem:[%s0 + $0x68] sm:$0xff]
  %v2745 = vld [vmem:[%s0 + $0x70] sm:$0xff]
  %v2746 = vld [vmem:[%s0 + $0x78] sm:$0xff]
  %v2747 = vld [vmem:[%s0 + $0x88] sm:$0xff]
  %v2748 = vld [vmem:[%s0 + $0x90] sm:$0xff]
  %v2749 = vld [vmem:[%s0 + $0x98] sm:$0xff]
  %v2750 = vld [vmem:[%s0 + $0xa0] sm:$0xff]
  %v2751 = vld [vmem:[%s0 + $0xa8] sm:$0xff]
  %v2752 = vld [vmem:[%s0 + $0xb0] sm:$0xff]
  %v2753 = vld [vmem:[%s0 + $0xb8] sm:$0xff]
  %v2754 = vld [vmem:[%s0 + $0xc8] sm:$0xff]
  %v2755 = vld [vmem:[%s0 + $0xd0] sm:$0xff]
  %v2756 = vld [vmem:[%s0 + $0xd8] sm:$0xff]
  %v2757 = vld [vmem:[%s0 + $0xe0] sm:$0xff]
  %v2758 = vld [vmem:[%s0 + $0xe8] sm:$0xff]
  %v2759 = vld [vmem:[%s0 + $0xf0] sm:$0xff]
  %v2760 = vld [vmem:[%s0 + $0xf8] sm:$0xff]
  %v2769 = vunpack.c.l.b16 %v2725
  %v2770 = vunpack.c.l.b16 %v2726
  %v2771 = vunpack.c.l.b16 %v2727
  %v2772 = vunpack.c.l.b16 %v2728
  %v2773 = vunpack.c.l.b16 %v2729
  %v2774 = vunpack.c.l.b16 %v2730
  %v2775 = vunpack.c.l.b16 %v2731
  %v2776 = vunpack.c.l.b16 %v2732
  %v2777 = vpack.c.b16 %v2770, %v2769
  %v2778 = vpack.c.b16 %v2772, %v2771
  %v2779 = vpack.c.b16 %v2774, %v2773
  %v2780 = vpack.c.b16 %v2776, %v2775
  %v2809 = vunpack.c.l.b16 %v2733
  %v2810 = vunpack.c.h.b16 %v2733
  %v2811 = vunpack.c.l.b16 %v2734
  %v2812 = vunpack.c.h.b16 %v2734
  %v2813 = vunpack.c.l.b16 %v2735
  %v2814 = vunpack.c.h.b16 %v2735
  %v2815 = vunpack.c.l.b16 %v2736
  %v2816 = vunpack.c.h.b16 %v2736
  %v2817 = vunpack.c.l.b16 %v2737
  %v2818 = vunpack.c.h.b16 %v2737
  %v2819 = vunpack.c.l.b16 %v2738
  %v2820 = vunpack.c.h.b16 %v2738
  %v2821 = vunpack.c.l.b16 %v2739
  %v2822 = vunpack.c.h.b16 %v2739
  %v2823 = vunpack.c.l.b16 %v2740
  %v2824 = vunpack.c.h.b16 %v2740
  %v2825 = vunpack.c.l.b16 %v2741
  %v2826 = vunpack.c.h.b16 %v2741
  %v2827 = vunpack.c.l.b16 %v2742
  %v2828 = vunpack.c.h.b16 %v2742
  %v2829 = vunpack.c.l.b16 %v2743
  %v2830 = vunpack.c.h.b16 %v2743
  %v2831 = vunpack.c.l.b16 %v2744
  %v2832 = vunpack.c.h.b16 %v2744
  %v2833 = vunpack.c.l.b16 %v2745
  %v2834 = vunpack.c.h.b16 %v2745
  %v2835 = vunpack.c.l.b16 %v2746
  %v2836 = vunpack.c.h.b16 %v2746
  %v2837 = vunpack.c.l.b16 %v2747
  %v2838 = vunpack.c.h.b16 %v2747
  %v2839 = vunpack.c.l.b16 %v2748
  %v2840 = vunpack.c.h.b16 %v2748
  %v2841 = vunpack.c.l.b16 %v2749
  %v2842 = vunpack.c.h.b16 %v2749
  %v2843 = vunpack.c.l.b16 %v2750
  %v2844 = vunpack.c.h.b16 %v2750
  %v2845 = vunpack.c.l.b16 %v2751
  %v2846 = vunpack.c.h.b16 %v2751
  %v2847 = vunpack.c.l.b16 %v2752
  %v2848 = vunpack.c.h.b16 %v2752
  %v2849 = vunpack.c.l.b16 %v2753
  %v2850 = vunpack.c.h.b16 %v2753
  %v2851 = vunpack.c.l.b16 %v2754
  %v2852 = vunpack.c.h.b16 %v2754
  %v2853 = vunpack.c.l.b16 %v2755
  %v2854 = vunpack.c.h.b16 %v2755
  %v2855 = vunpack.c.l.b16 %v2756
  %v2856 = vunpack.c.h.b16 %v2756
  %v2857 = vunpack.c.l.b16 %v2757
  %v2858 = vunpack.c.h.b16 %v2757
  %v2859 = vunpack.c.l.b16 %v2758
  %v2860 = vunpack.c.h.b16 %v2758
  %v2861 = vunpack.c.l.b16 %v2759
  %v2862 = vunpack.c.h.b16 %v2759
  %v2863 = vunpack.c.l.b16 %v2760
  %v2864 = vunpack.c.h.b16 %v2760
  %v2865 = vpack.c.b16 %v2823, %v2809
  %v2866 = vpack.c.b16 %v2824, %v2810
  %v2867 = vpack.c.b16 %v2825, %v2811
  %v2868 = vpack.c.b16 %v2826, %v2812
  %v2869 = vpack.c.b16 %v2827, %v2813
  %v2870 = vpack.c.b16 %v2828, %v2814
  %v2871 = vpack.c.b16 %v2829, %v2815
  %v2872 = vpack.c.b16 %v2830, %v2816
  %v2873 = vpack.c.b16 %v2831, %v2817
  %v2874 = vpack.c.b16 %v2832, %v2818
  %v2875 = vpack.c.b16 %v2833, %v2819
  %v2876 = vpack.c.b16 %v2834, %v2820
  %v2877 = vpack.c.b16 %v2835, %v2821
  %v2878 = vpack.c.b16 %v2836, %v2822
  %v2879 = vpack.c.b16 %v2851, %v2837
  %v2880 = vpack.c.b16 %v2852, %v2838
  %v2881 = vpack.c.b16 %v2853, %v2839
  %v2882 = vpack.c.b16 %v2854, %v2840
  %v2883 = vpack.c.b16 %v2855, %v2841
  %v2884 = vpack.c.b16 %v2856, %v2842
  %v2885 = vpack.c.b16 %v2857, %v2843
  %v2886 = vpack.c.b16 %v2858, %v2844
  %v2887 = vpack.c.b16 %v2859, %v2845
  %v2888 = vpack.c.b16 %v2860, %v2846
  %v2889 = vpack.c.b16 %v2861, %v2847
  %v2890 = vpack.c.b16 %v2862, %v2848
  %v2891 = vpack.c.b16 %v2863, %v2849
  %v2892 = vpack.c.b16 %v2864, %v2850
  %v2922 = vsel %vm236, %v2777, 0
  %v2925 = vsel %vm236, %v2778, 0
  %v2928 = vsel %vm236, %v2779, 0
  %v2931 = vsel %vm236, %v2780, 0
  %2933 = vmatpush.bf16.msra.mxu0 0
  %2934 = vmatpush.bf16.msra.mxu0 0
  %2935 = vmatpush.bf16.msra.mxu0 0
  %2936 = vmatpush.bf16.msra.mxu0 0
  %2937 = vmatpush.bf16.msra.mxu0 0
  %2938 = vmatpush.bf16.msra.mxu0 0
  %2939 = vmatpush.bf16.msra.mxu0 %v2879
  %2940 = vmatpush.bf16.msra.mxu0 %v2865
  %2941 = vmatmul.bf16.gmra.mxu0 %v2922
  %v2942 = vpop.f32.mrf.mxu0
  %v2943 = vadd.f32 0.0, %v2942
  %v2944 = vpop.f32.mrf.mxu0
  %v2945 = vadd.f32 0.0, %v2944
  %2946 = vmatmul.bf16.gmra.mxu0 %v2925
  %v2947 = vpop.f32.mrf.mxu0
  %v2948 = vadd.f32 0.0, %v2947
  %v2949 = vpop.f32.mrf.mxu0
  %v2950 = vadd.f32 0.0, %v2949
  %2951 = vmatmul.bf16.gmra.mxu0 %v2928
  %v2952 = vpop.f32.mrf.mxu0
  %v2953 = vadd.f32 0.0, %v2952
  %v2954 = vpop.f32.mrf.mxu0
  %v2955 = vadd.f32 0.0, %v2954
  %2956 = vmatmul.bf16.gmra.mxu0 %v2931
  %v2957 = vpop.f32.mrf.mxu0
  %v2958 = vadd.f32 0.0, %v2957
  %v2959 = vpop.f32.mrf.mxu0
  %v2960 = vadd.f32 0.0, %v2959
  %2961 = vdwg.mxu0
  %2962 = vmatpush.bf16.msra.mxu0 0
  %2963 = vmatpush.bf16.msra.mxu0 0
  %2964 = vmatpush.bf16.msra.mxu0 0
  %2965 = vmatpush.bf16.msra.mxu0 0
  %2966 = vmatpush.bf16.msra.mxu0 0
  %2967 = vmatpush.bf16.msra.mxu0 0
  %2968 = vmatpush.bf16.msra.mxu0 %v2880
  %2969 = vmatpush.bf16.msra.mxu0 %v2866
  %2970 = vmatmul.bf16.gmra.mxu0 %v2922
  %v2971 = vpop.f32.mrf.mxu0
  %v2972 = vadd.f32 0.0, %v2971
  %v2973 = vpop.f32.mrf.mxu0
  %v2974 = vadd.f32 0.0, %v2973
  %2975 = vmatmul.bf16.gmra.mxu0 %v2925
  %v2976 = vpop.f32.mrf.mxu0
  %v2977 = vadd.f32 0.0, %v2976
  %v2978 = vpop.f32.mrf.mxu0
  %v2979 = vadd.f32 0.0, %v2978
  %2980 = vmatmul.bf16.gmra.mxu0 %v2928
  %v2981 = vpop.f32.mrf.mxu0
  %v2982 = vadd.f32 0.0, %v2981
  %v2983 = vpop.f32.mrf.mxu0
  %v2984 = vadd.f32 0.0, %v2983
  %2985 = vmatmul.bf16.gmra.mxu0 %v2931
  %v2986 = vpop.f32.mrf.mxu0
  %v2987 = vadd.f32 0.0, %v2986
  %v2988 = vpop.f32.mrf.mxu0
  %v2989 = vadd.f32 0.0, %v2988
  %2990 = vdwg.mxu0
  %2991 = vmatpush.bf16.msra.mxu0 0
  %2992 = vmatpush.bf16.msra.mxu0 0
  %2993 = vmatpush.bf16.msra.mxu0 0
  %2994 = vmatpush.bf16.msra.mxu0 0
  %2995 = vmatpush.bf16.msra.mxu0 0
  %2996 = vmatpush.bf16.msra.mxu0 0
  %2997 = vmatpush.bf16.msra.mxu0 %v2881
  %2998 = vmatpush.bf16.msra.mxu0 %v2867
  %2999 = vmatmul.bf16.gmra.mxu0 %v2922
  %v3000 = vpop.f32.mrf.mxu0
  %v3001 = vadd.f32 0.0, %v3000
  %v3002 = vpop.f32.mrf.mxu0
  %v3003 = vadd.f32 0.0, %v3002
  %3004 = vmatmul.bf16.gmra.mxu0 %v2925
  %v3005 = vpop.f32.mrf.mxu0
  %v3006 = vadd.f32 0.0, %v3005
  %v3007 = vpop.f32.mrf.mxu0
  %v3008 = vadd.f32 0.0, %v3007
  %3009 = vmatmul.bf16.gmra.mxu0 %v2928
  %v3010 = vpop.f32.mrf.mxu0
  %v3011 = vadd.f32 0.0, %v3010
  %v3012 = vpop.f32.mrf.mxu0
  %v3013 = vadd.f32 0.0, %v3012
  %3014 = vmatmul.bf16.gmra.mxu0 %v2931
  %v3015 = vpop.f32.mrf.mxu0
  %v3016 = vadd.f32 0.0, %v3015
  %v3017 = vpop.f32.mrf.mxu0
  %v3018 = vadd.f32 0.0, %v3017
  %3019 = vdwg.mxu0
  %3020 = vmatpush.bf16.msra.mxu0 0
  %3021 = vmatpush.bf16.msra.mxu0 0
  %3022 = vmatpush.bf16.msra.mxu0 0
  %3023 = vmatpush.bf16.msra.mxu0 0
  %3024 = vmatpush.bf16.msra.mxu0 0
  %3025 = vmatpush.bf16.msra.mxu0 0
  %3026 = vmatpush.bf16.msra.mxu0 %v2882
  %3027 = vmatpush.bf16.msra.mxu0 %v2868
  %3028 = vmatmul.bf16.gmra.mxu0 %v2922
  %v3029 = vpop.f32.mrf.mxu0
  %v3030 = vadd.f32 0.0, %v3029
  %v3031 = vpop.f32.mrf.mxu0
  %v3032 = vadd.f32 0.0, %v3031
  %3033 = vmatmul.bf16.gmra.mxu0 %v2925
  %v3034 = vpop.f32.mrf.mxu0
  %v3035 = vadd.f32 0.0, %v3034
  %v3036 = vpop.f32.mrf.mxu0
  %v3037 = vadd.f32 0.0, %v3036
  %3038 = vmatmul.bf16.gmra.mxu0 %v2928
  %v3039 = vpop.f32.mrf.mxu0
  %v3040 = vadd.f32 0.0, %v3039
  %v3041 = vpop.f32.mrf.mxu0
  %v3042 = vadd.f32 0.0, %v3041
  %3043 = vmatmul.bf16.gmra.mxu0 %v2931
  %v3044 = vpop.f32.mrf.mxu0
  %v3045 = vadd.f32 0.0, %v3044
  %v3046 = vpop.f32.mrf.mxu0
  %v3047 = vadd.f32 0.0, %v3046
  %3048 = vdwg.mxu0
  %3049 = vmatpush.bf16.msra.mxu0 0
  %3050 = vmatpush.bf16.msra.mxu0 0
  %3051 = vmatpush.bf16.msra.mxu0 0
  %3052 = vmatpush.bf16.msra.mxu0 0
  %3053 = vmatpush.bf16.msra.mxu0 0
  %3054 = vmatpush.bf16.msra.mxu0 0
  %3055 = vmatpush.bf16.msra.mxu0 %v2883
  %3056 = vmatpush.bf16.msra.mxu0 %v2869
  %3057 = vmatmul.bf16.gmra.mxu0 %v2922
  %v3058 = vpop.f32.mrf.mxu0
  %v3059 = vadd.f32 0.0, %v3058
  %v3060 = vpop.f32.mrf.mxu0
  %v3061 = vadd.f32 0.0, %v3060
  %3062 = vmatmul.bf16.gmra.mxu0 %v2925
  %v3063 = vpop.f32.mrf.mxu0
  %v3064 = vadd.f32 0.0, %v3063
  %v3065 = vpop.f32.mrf.mxu0
  %v3066 = vadd.f32 0.0, %v3065
  %3067 = vmatmul.bf16.gmra.mxu0 %v2928
  %v3068 = vpop.f32.mrf.mxu0
  %v3069 = vadd.f32 0.0, %v3068
  %v3070 = vpop.f32.mrf.mxu0
  %v3071 = vadd.f32 0.0, %v3070
  %3072 = vmatmul.bf16.gmra.mxu0 %v2931
  %v3073 = vpop.f32.mrf.mxu0
  %v3074 = vadd.f32 0.0, %v3073
  %v3075 = vpop.f32.mrf.mxu0
  %v3076 = vadd.f32 0.0, %v3075
  %3077 = vdwg.mxu0
  %3078 = vmatpush.bf16.msra.mxu0 0
  %3079 = vmatpush.bf16.msra.mxu0 0
  %3080 = vmatpush.bf16.msra.mxu0 0
  %3081 = vmatpush.bf16.msra.mxu0 0
  %3082 = vmatpush.bf16.msra.mxu0 0
  %3083 = vmatpush.bf16.msra.mxu0 0
  %3084 = vmatpush.bf16.msra.mxu0 %v2884
  %3085 = vmatpush.bf16.msra.mxu0 %v2870
  %3086 = vmatmul.bf16.gmra.mxu0 %v2922
  %v3087 = vpop.f32.mrf.mxu0
  %v3088 = vadd.f32 0.0, %v3087
  %v3089 = vpop.f32.mrf.mxu0
  %v3090 = vadd.f32 0.0, %v3089
  %3091 = vmatmul.bf16.gmra.mxu0 %v2925
  %v3092 = vpop.f32.mrf.mxu0
  %v3093 = vadd.f32 0.0, %v3092
  %v3094 = vpop.f32.mrf.mxu0
  %v3095 = vadd.f32 0.0, %v3094
  %3096 = vmatmul.bf16.gmra.mxu0 %v2928
  %v3097 = vpop.f32.mrf.mxu0
  %v3098 = vadd.f32 0.0, %v3097
  %v3099 = vpop.f32.mrf.mxu0
  %v3100 = vadd.f32 0.0, %v3099
  %3101 = vmatmul.bf16.gmra.mxu0 %v2931
  %v3102 = vpop.f32.mrf.mxu0
  %v3103 = vadd.f32 0.0, %v3102
  %v3104 = vpop.f32.mrf.mxu0
  %v3105 = vadd.f32 0.0, %v3104
  %3106 = vdwg.mxu0
  %3107 = vmatpush.bf16.msra.mxu0 0
  %3108 = vmatpush.bf16.msra.mxu0 0
  %3109 = vmatpush.bf16.msra.mxu0 0
  %3110 = vmatpush.bf16.msra.mxu0 0
  %3111 = vmatpush.bf16.msra.mxu0 0
  %3112 = vmatpush.bf16.msra.mxu0 0
  %3113 = vmatpush.bf16.msra.mxu0 %v2885
  %3114 = vmatpush.bf16.msra.mxu0 %v2871
  %3115 = vmatmul.bf16.gmra.mxu0 %v2922
  %v3116 = vpop.f32.mrf.mxu0
  %v3117 = vadd.f32 0.0, %v3116
  %v3118 = vpop.f32.mrf.mxu0
  %v3119 = vadd.f32 0.0, %v3118
  %3120 = vmatmul.bf16.gmra.mxu0 %v2925
  %v3121 = vpop.f32.mrf.mxu0
  %v3122 = vadd.f32 0.0, %v3121
  %v3123 = vpop.f32.mrf.mxu0
  %v3124 = vadd.f32 0.0, %v3123
  %3125 = vmatmul.bf16.gmra.mxu0 %v2928
  %v3126 = vpop.f32.mrf.mxu0
  %v3127 = vadd.f32 0.0, %v3126
  %v3128 = vpop.f32.mrf.mxu0
  %v3129 = vadd.f32 0.0, %v3128
  %3130 = vmatmul.bf16.gmra.mxu0 %v2931
  %v3131 = vpop.f32.mrf.mxu0
  %v3132 = vadd.f32 0.0, %v3131
  %v3133 = vpop.f32.mrf.mxu0
  %v3134 = vadd.f32 0.0, %v3133
  %3135 = vdwg.mxu0
  %3136 = vmatpush.bf16.msra.mxu0 0
  %3137 = vmatpush.bf16.msra.mxu0 0
  %3138 = vmatpush.bf16.msra.mxu0 0
  %3139 = vmatpush.bf16.msra.mxu0 0
  %3140 = vmatpush.bf16.msra.mxu0 0
  %3141 = vmatpush.bf16.msra.mxu0 0
  %3142 = vmatpush.bf16.msra.mxu0 %v2886
  %3143 = vmatpush.bf16.msra.mxu0 %v2872
  %3144 = vmatmul.bf16.gmra.mxu0 %v2922
  %v3145 = vpop.f32.mrf.mxu0
  %v3146 = vadd.f32 0.0, %v3145
  %v3147 = vpop.f32.mrf.mxu0
  %v3148 = vadd.f32 0.0, %v3147
  %3149 = vmatmul.bf16.gmra.mxu0 %v2925
  %v3150 = vpop.f32.mrf.mxu0
  %v3151 = vadd.f32 0.0, %v3150
  %v3152 = vpop.f32.mrf.mxu0
  %v3153 = vadd.f32 0.0, %v3152
  %3154 = vmatmul.bf16.gmra.mxu0 %v2928
  %v3155 = vpop.f32.mrf.mxu0
  %v3156 = vadd.f32 0.0, %v3155
  %v3157 = vpop.f32.mrf.mxu0
  %v3158 = vadd.f32 0.0, %v3157
  %3159 = vmatmul.bf16.gmra.mxu0 %v2931
  %v3160 = vpop.f32.mrf.mxu0
  %v3161 = vadd.f32 0.0, %v3160
  %v3162 = vpop.f32.mrf.mxu0
  %v3163 = vadd.f32 0.0, %v3162
  %3164 = vdwg.mxu0
  %3165 = vmatpush.bf16.msra.mxu0 0
  %3166 = vmatpush.bf16.msra.mxu0 0
  %3167 = vmatpush.bf16.msra.mxu0 0
  %3168 = vmatpush.bf16.msra.mxu0 0
  %3169 = vmatpush.bf16.msra.mxu0 0
  %3170 = vmatpush.bf16.msra.mxu0 0
  %3171 = vmatpush.bf16.msra.mxu0 %v2887
  %3172 = vmatpush.bf16.msra.mxu0 %v2873
  %3173 = vmatmul.bf16.gmra.mxu0 %v2922
  %v3174 = vpop.f32.mrf.mxu0
  %v3175 = vadd.f32 0.0, %v3174
  %v3176 = vpop.f32.mrf.mxu0
  %v3177 = vadd.f32 0.0, %v3176
  %3178 = vmatmul.bf16.gmra.mxu0 %v2925
  %v3179 = vpop.f32.mrf.mxu0
  %v3180 = vadd.f32 0.0, %v3179
  %v3181 = vpop.f32.mrf.mxu0
  %v3182 = vadd.f32 0.0, %v3181
  %3183 = vmatmul.bf16.gmra.mxu0 %v2928
  %v3184 = vpop.f32.mrf.mxu0
  %v3185 = vadd.f32 0.0, %v3184
  %v3186 = vpop.f32.mrf.mxu0
  %v3187 = vadd.f32 0.0, %v3186
  %3188 = vmatmul.bf16.gmra.mxu0 %v2931
  %v3189 = vpop.f32.mrf.mxu0
  %v3190 = vadd.f32 0.0, %v3189
  %v3191 = vpop.f32.mrf.mxu0
  %v3192 = vadd.f32 0.0, %v3191
  %3193 = vdwg.mxu0
  %3194 = vmatpush.bf16.msra.mxu0 0
  %3195 = vmatpush.bf16.msra.mxu0 0
  %3196 = vmatpush.bf16.msra.mxu0 0
  %3197 = vmatpush.bf16.msra.mxu0 0
  %3198 = vmatpush.bf16.msra.mxu0 0
  %3199 = vmatpush.bf16.msra.mxu0 0
  %3200 = vmatpush.bf16.msra.mxu0 %v2888
  %3201 = vmatpush.bf16.msra.mxu0 %v2874
  %3202 = vmatmul.bf16.gmra.mxu0 %v2922
  %v3203 = vpop.f32.mrf.mxu0
  %v3204 = vadd.f32 0.0, %v3203
  %v3205 = vpop.f32.mrf.mxu0
  %v3206 = vadd.f32 0.0, %v3205
  %3207 = vmatmul.bf16.gmra.mxu0 %v2925
  %v3208 = vpop.f32.mrf.mxu0
  %v3209 = vadd.f32 0.0, %v3208
  %v3210 = vpop.f32.mrf.mxu0
  %v3211 = vadd.f32 0.0, %v3210
  %3212 = vmatmul.bf16.gmra.mxu0 %v2928
  %v3213 = vpop.f32.mrf.mxu0
  %v3214 = vadd.f32 0.0, %v3213
  %v3215 = vpop.f32.mrf.mxu0
  %v3216 = vadd.f32 0.0, %v3215
  %3217 = vmatmul.bf16.gmra.mxu0 %v2931
  %v3218 = vpop.f32.mrf.mxu0
  %v3219 = vadd.f32 0.0, %v3218
  %v3220 = vpop.f32.mrf.mxu0
  %v3221 = vadd.f32 0.0, %v3220
  %3222 = vdwg.mxu0
  %3223 = vmatpush.bf16.msra.mxu0 0
  %3224 = vmatpush.bf16.msra.mxu0 0
  %3225 = vmatpush.bf16.msra.mxu0 0
  %3226 = vmatpush.bf16.msra.mxu0 0
  %3227 = vmatpush.bf16.msra.mxu0 0
  %3228 = vmatpush.bf16.msra.mxu0 0
  %3229 = vmatpush.bf16.msra.mxu0 %v2889
  %3230 = vmatpush.bf16.msra.mxu0 %v2875
  %3231 = vmatmul.bf16.gmra.mxu0 %v2922
  %v3232 = vpop.f32.mrf.mxu0
  %v3233 = vadd.f32 0.0, %v3232
  %v3234 = vpop.f32.mrf.mxu0
  %v3235 = vadd.f32 0.0, %v3234
  %3236 = vmatmul.bf16.gmra.mxu0 %v2925
  %v3237 = vpop.f32.mrf.mxu0
  %v3238 = vadd.f32 0.0, %v3237
  %v3239 = vpop.f32.mrf.mxu0
  %v3240 = vadd.f32 0.0, %v3239
  %3241 = vmatmul.bf16.gmra.mxu0 %v2928
  %v3242 = vpop.f32.mrf.mxu0
  %v3243 = vadd.f32 0.0, %v3242
  %v3244 = vpop.f32.mrf.mxu0
  %v3245 = vadd.f32 0.0, %v3244
  %3246 = vmatmul.bf16.gmra.mxu0 %v2931
  %v3247 = vpop.f32.mrf.mxu0
  %v3248 = vadd.f32 0.0, %v3247
  %v3249 = vpop.f32.mrf.mxu0
  %v3250 = vadd.f32 0.0, %v3249
  %3251 = vdwg.mxu0
  %3252 = vmatpush.bf16.msra.mxu0 0
  %3253 = vmatpush.bf16.msra.mxu0 0
  %3254 = vmatpush.bf16.msra.mxu0 0
  %3255 = vmatpush.bf16.msra.mxu0 0
  %3256 = vmatpush.bf16.msra.mxu0 0
  %3257 = vmatpush.bf16.msra.mxu0 0
  %3258 = vmatpush.bf16.msra.mxu0 %v2890
  %3259 = vmatpush.bf16.msra.mxu0 %v2876
  %3260 = vmatmul.bf16.gmra.mxu0 %v2922
  %v3261 = vpop.f32.mrf.mxu0
  %v3262 = vadd.f32 0.0, %v3261
  %v3263 = vpop.f32.mrf.mxu0
  %v3264 = vadd.f32 0.0, %v3263
  %3265 = vmatmul.bf16.gmra.mxu0 %v2925
  %v3266 = vpop.f32.mrf.mxu0
  %v3267 = vadd.f32 0.0, %v3266
  %v3268 = vpop.f32.mrf.mxu0
  %v3269 = vadd.f32 0.0, %v3268
  %3270 = vmatmul.bf16.gmra.mxu0 %v2928
  %v3271 = vpop.f32.mrf.mxu0
  %v3272 = vadd.f32 0.0, %v3271
  %v3273 = vpop.f32.mrf.mxu0
  %v3274 = vadd.f32 0.0, %v3273
  %3275 = vmatmul.bf16.gmra.mxu0 %v2931
  %v3276 = vpop.f32.mrf.mxu0
  %v3277 = vadd.f32 0.0, %v3276
  %v3278 = vpop.f32.mrf.mxu0
  %v3279 = vadd.f32 0.0, %v3278
  %3280 = vdwg.mxu0
  %3281 = vmatpush.bf16.msra.mxu0 0
  %3282 = vmatpush.bf16.msra.mxu0 0
  %3283 = vmatpush.bf16.msra.mxu0 0
  %3284 = vmatpush.bf16.msra.mxu0 0
  %3285 = vmatpush.bf16.msra.mxu0 0
  %3286 = vmatpush.bf16.msra.mxu0 0
  %3287 = vmatpush.bf16.msra.mxu0 %v2891
  %3288 = vmatpush.bf16.msra.mxu0 %v2877
  %3289 = vmatmul.bf16.gmra.mxu0 %v2922
  %v3290 = vpop.f32.mrf.mxu0
  %v3291 = vadd.f32 0.0, %v3290
  %v3292 = vpop.f32.mrf.mxu0
  %v3293 = vadd.f32 0.0, %v3292
  %3294 = vmatmul.bf16.gmra.mxu0 %v2925
  %v3295 = vpop.f32.mrf.mxu0
  %v3296 = vadd.f32 0.0, %v3295
  %v3297 = vpop.f32.mrf.mxu0
  %v3298 = vadd.f32 0.0, %v3297
  %3299 = vmatmul.bf16.gmra.mxu0 %v2928
  %v3300 = vpop.f32.mrf.mxu0
  %v3301 = vadd.f32 0.0, %v3300
  %v3302 = vpop.f32.mrf.mxu0
  %v3303 = vadd.f32 0.0, %v3302
  %3304 = vmatmul.bf16.gmra.mxu0 %v2931
  %v3305 = vpop.f32.mrf.mxu0
  %v3306 = vadd.f32 0.0, %v3305
  %v3307 = vpop.f32.mrf.mxu0
  %v3308 = vadd.f32 0.0, %v3307
  %3309 = vdwg.mxu0
  %3310 = vmatpush.bf16.msra.mxu0 0
  %3311 = vmatpush.bf16.msra.mxu0 0
  %3312 = vmatpush.bf16.msra.mxu0 0
  %3313 = vmatpush.bf16.msra.mxu0 0
  %3314 = vmatpush.bf16.msra.mxu0 0
  %3315 = vmatpush.bf16.msra.mxu0 0
  %3316 = vmatpush.bf16.msra.mxu0 %v2892
  %3317 = vmatpush.bf16.msra.mxu0 %v2878
  %3318 = vmatmul.bf16.gmra.mxu0 %v2922
  %v3319 = vpop.f32.mrf.mxu0
  %v3320 = vadd.f32 0.0, %v3319
  %v3321 = vpop.f32.mrf.mxu0
  %v3322 = vadd.f32 0.0, %v3321
  %3323 = vmatmul.bf16.gmra.mxu0 %v2925
  %v3324 = vpop.f32.mrf.mxu0
  %v3325 = vadd.f32 0.0, %v3324
  %v3326 = vpop.f32.mrf.mxu0
  %v3327 = vadd.f32 0.0, %v3326
  %3328 = vmatmul.bf16.gmra.mxu0 %v2928
  %v3329 = vpop.f32.mrf.mxu0
  %v3330 = vadd.f32 0.0, %v3329
  %v3331 = vpop.f32.mrf.mxu0
  %v3332 = vadd.f32 0.0, %v3331
  %3333 = vmatmul.bf16.gmra.mxu0 %v2931
  %v3334 = vpop.f32.mrf.mxu0
  %v3335 = vadd.f32 0.0, %v3334
  %v3336 = vpop.f32.mrf.mxu0
  %v3337 = vadd.f32 0.0, %v3336
  %3338 = vdwg.mxu0
  %v3339 = vadd.f32 %v2612, %v2943
  %v3340 = vadd.f32 %v2613, %v2972
  %v3341 = vadd.f32 %v2614, %v3001
  %v3342 = vadd.f32 %v2615, %v3030
  %v3343 = vadd.f32 %v2616, %v3059
  %v3344 = vadd.f32 %v2617, %v3088
  %v3345 = vadd.f32 %v2618, %v3117
  %v3346 = vadd.f32 %v2619, %v3146
  %v3347 = vadd.f32 %v2620, %v3175
  %v3348 = vadd.f32 %v2621, %v3204
  %v3349 = vadd.f32 %v2622, %v3233
  %v3350 = vadd.f32 %v2623, %v3262
  %v3351 = vadd.f32 %v2624, %v3291
  %v3352 = vadd.f32 %v2625, %v3320
  %v3353 = vadd.f32 %v2626, %v2945
  %v3354 = vadd.f32 %v2627, %v2974
  %v3355 = vadd.f32 %v2628, %v3003
  %v3356 = vadd.f32 %v2629, %v3032
  %v3357 = vadd.f32 %v2630, %v3061
  %v3358 = vadd.f32 %v2631, %v3090
  %v3359 = vadd.f32 %v2632, %v3119
  %v3360 = vadd.f32 %v2633, %v3148
  %v3361 = vadd.f32 %v2634, %v3177
  %v3362 = vadd.f32 %v2635, %v3206
  %v3363 = vadd.f32 %v2636, %v3235
  %v3364 = vadd.f32 %v2637, %v3264
  %v3365 = vadd.f32 %v2638, %v3293
  %v3366 = vadd.f32 %v2639, %v3322
  %v3367 = vadd.f32 %v2640, %v2948
  %v3368 = vadd.f32 %v2641, %v2977
  %v3369 = vadd.f32 %v2642, %v3006
  %v3370 = vadd.f32 %v2643, %v3035
  %v3371 = vadd.f32 %v2644, %v3064
  %v3372 = vadd.f32 %v2645, %v3093
  %v3373 = vadd.f32 %v2646, %v3122
  %v3374 = vadd.f32 %v2647, %v3151
  %v3375 = vadd.f32 %v2648, %v3180
  %v3376 = vadd.f32 %v2649, %v3209
  %v3377 = vadd.f32 %v2650, %v3238
  %v3378 = vadd.f32 %v2651, %v3267
  %v3379 = vadd.f32 %v2652, %v3296
  %v3380 = vadd.f32 %v2653, %v3325
  %v3381 = vadd.f32 %v2654, %v2950
  %v3382 = vadd.f32 %v2655, %v2979
  %v3383 = vadd.f32 %v2656, %v3008
  %v3384 = vadd.f32 %v2657, %v3037
  %v3385 = vadd.f32 %v2658, %v3066
  %v3386 = vadd.f32 %v2659, %v3095
  %v3387 = vadd.f32 %v2660, %v3124
  %v3388 = vadd.f32 %v2661, %v3153
  %v3389 = vadd.f32 %v2662, %v3182
  %v3390 = vadd.f32 %v2663, %v3211
  %v3391 = vadd.f32 %v2664, %v3240
  %v3392 = vadd.f32 %v2665, %v3269
  %v3393 = vadd.f32 %v2666, %v3298
  %v3394 = vadd.f32 %v2667, %v3327
  %v3395 = vadd.f32 %v2668, %v2953
  %v3396 = vadd.f32 %v2669, %v2982
  %v3397 = vadd.f32 %v2670, %v3011
  %v3398 = vadd.f32 %v2671, %v3040
  %v3399 = vadd.f32 %v2672, %v3069
  %v3400 = vadd.f32 %v2673, %v3098
  %v3401 = vadd.f32 %v2674, %v3127
  %v3402 = vadd.f32 %v2675, %v3156
  %v3403 = vadd.f32 %v2676, %v3185
  %v3404 = vadd.f32 %v2677, %v3214
  %v3405 = vadd.f32 %v2678, %v3243
  %v3406 = vadd.f32 %v2679, %v3272
  %v3407 = vadd.f32 %v2680, %v3301
  %v3408 = vadd.f32 %v2681, %v3330
  %v3409 = vadd.f32 %v2682, %v2955
  %v3410 = vadd.f32 %v2683, %v2984
  %v3411 = vadd.f32 %v2684, %v3013
  %v3412 = vadd.f32 %v2685, %v3042
  %v3413 = vadd.f32 %v2686, %v3071
  %v3414 = vadd.f32 %v2687, %v3100
  %v3415 = vadd.f32 %v2688, %v3129
  %v3416 = vadd.f32 %v2689, %v3158
  %v3417 = vadd.f32 %v2690, %v3187
  %v3418 = vadd.f32 %v2691, %v3216
  %v3419 = vadd.f32 %v2692, %v3245
  %v3420 = vadd.f32 %v2693, %v3274
  %v3421 = vadd.f32 %v2694, %v3303
  %v3422 = vadd.f32 %v2695, %v3332
  %v3423 = vadd.f32 %v2696, %v2958
  %v3424 = vadd.f32 %v2697, %v2987
  %v3425 = vadd.f32 %v2698, %v3016
  %v3426 = vadd.f32 %v2699, %v3045
  %v3427 = vadd.f32 %v2700, %v3074
  %v3428 = vadd.f32 %v2701, %v3103
  %v3429 = vadd.f32 %v2702, %v3132
  %v3430 = vadd.f32 %v2703, %v3161
  %v3431 = vadd.f32 %v2704, %v3190
  %v3432 = vadd.f32 %v2705, %v3219
  %v3433 = vadd.f32 %v2706, %v3248
  %v3434 = vadd.f32 %v2707, %v3277
  %v3435 = vadd.f32 %v2708, %v3306
  %v3436 = vadd.f32 %v2709, %v3335
  %v3437 = vadd.f32 %v2710, %v2960
  %v3438 = vadd.f32 %v2711, %v2989
  %v3439 = vadd.f32 %v2712, %v3018
  %v3440 = vadd.f32 %v2713, %v3047
  %v3441 = vadd.f32 %v2714, %v3076
  %v3442 = vadd.f32 %v2715, %v3105
  %v3443 = vadd.f32 %v2716, %v3134
  %v3444 = vadd.f32 %v2717, %v3163
  %v3445 = vadd.f32 %v2718, %v3192
  %v3446 = vadd.f32 %v2719, %v3221
  %v3447 = vadd.f32 %v2720, %v3250
  %v3448 = vadd.f32 %v2721, %v3279
  %v3449 = vadd.f32 %v2722, %v3308
  %v3450 = vadd.f32 %v2723, %v3337
  %3451 = vst [vmem:[#allocation2] sm:$0xff] %v3339
  %3452 = vst [vmem:[#allocation2 + $0x8] sm:$0xff] %v3340
  %3453 = vst [vmem:[#allocation2 + $0x10] sm:$0xff] %v3341
  %3454 = vst [vmem:[#allocation2 + $0x18] sm:$0xff] %v3342
  %3455 = vst [vmem:[#allocation2 + $0x20] sm:$0xff] %v3343
  %3456 = vst [vmem:[#allocation2 + $0x28] sm:$0xff] %v3344
  %3457 = vst [vmem:[#allocation2 + $0x30] sm:$0xff] %v3345
  %3458 = vst [vmem:[#allocation2 + $0x38] sm:$0xff] %v3346
  %3459 = vst [vmem:[#allocation2 + $0x40] sm:$0xff] %v3347
  %3460 = vst [vmem:[#allocation2 + $0x48] sm:$0xff] %v3348
  %3461 = vst [vmem:[#allocation2 + $0x50] sm:$0xff] %v3349
  %3462 = vst [vmem:[#allocation2 + $0x58] sm:$0xff] %v3350
  %3463 = vst [vmem:[#allocation2 + $0x60] sm:$0xff] %v3351
  %3464 = vst [vmem:[#allocation2 + $0x68] sm:$0xff] %v3352
  %3465 = vst [vmem:[#allocation2 + $0x80] sm:$0xff] %v3353
  %3466 = vst [vmem:[#allocation2 + $0x88] sm:$0xff] %v3354
  %3467 = vst [vmem:[#allocation2 + $0x90] sm:$0xff] %v3355
  %3468 = vst [vmem:[#allocation2 + $0x98] sm:$0xff] %v3356
  %3469 = vst [vmem:[#allocation2 + $0xa0] sm:$0xff] %v3357
  %3470 = vst [vmem:[#allocation2 + $0xa8] sm:$0xff] %v3358
  %3471 = vst [vmem:[#allocation2 + $0xb0] sm:$0xff] %v3359
  %3472 = vst [vmem:[#allocation2 + $0xb8] sm:$0xff] %v3360
  %3473 = vst [vmem:[#allocation2 + $0xc0] sm:$0xff] %v3361
  %3474 = vst [vmem:[#allocation2 + $0xc8] sm:$0xff] %v3362
  %3475 = vst [vmem:[#allocation2 + $0xd0] sm:$0xff] %v3363
  %3476 = vst [vmem:[#allocation2 + $0xd8] sm:$0xff] %v3364
  %3477 = vst [vmem:[#allocation2 + $0xe0] sm:$0xff] %v3365
  %3478 = vst [vmem:[#allocation2 + $0xe8] sm:$0xff] %v3366
  %3479 = vst [vmem:[#allocation2 + $0x100] sm:$0xff] %v3367
  %3480 = vst [vmem:[#allocation2 + $0x108] sm:$0xff] %v3368
  %3481 = vst [vmem:[#allocation2 + $0x110] sm:$0xff] %v3369
  %3482 = vst [vmem:[#allocation2 + $0x118] sm:$0xff] %v3370
  %3483 = vst [vmem:[#allocation2 + $0x120] sm:$0xff] %v3371
  %3484 = vst [vmem:[#allocation2 + $0x128] sm:$0xff] %v3372
  %3485 = vst [vmem:[#allocation2 + $0x130] sm:$0xff] %v3373
  %3486 = vst [vmem:[#allocation2 + $0x138] sm:$0xff] %v3374
  %3487 = vst [vmem:[#allocation2 + $0x140] sm:$0xff] %v3375
  %3488 = vst [vmem:[#allocation2 + $0x148] sm:$0xff] %v3376
  %3489 = vst [vmem:[#allocation2 + $0x150] sm:$0xff] %v3377
  %3490 = vst [vmem:[#allocation2 + $0x158] sm:$0xff] %v3378
  %3491 = vst [vmem:[#allocation2 + $0x160] sm:$0xff] %v3379
  %3492 = vst [vmem:[#allocation2 + $0x168] sm:$0xff] %v3380
  %3493 = vst [vmem:[#allocation2 + $0x180] sm:$0xff] %v3381
  %3494 = vst [vmem:[#allocation2 + $0x188] sm:$0xff] %v3382
  %3495 = vst [vmem:[#allocation2 + $0x190] sm:$0xff] %v3383
  %3496 = vst [vmem:[#allocation2 + $0x198] sm:$0xff] %v3384
  %3497 = vst [vmem:[#allocation2 + $0x1a0] sm:$0xff] %v3385
  %3498 = vst [vmem:[#allocation2 + $0x1a8] sm:$0xff] %v3386
  %3499 = vst [vmem:[#allocation2 + $0x1b0] sm:$0xff] %v3387
  %3500 = vst [vmem:[#allocation2 + $0x1b8] sm:$0xff] %v3388
  %3501 = vst [vmem:[#allocation2 + $0x1c0] sm:$0xff] %v3389
  %3502 = vst [vmem:[#allocation2 + $0x1c8] sm:$0xff] %v3390
  %3503 = vst [vmem:[#allocation2 + $0x1d0] sm:$0xff] %v3391
  %3504 = vst [vmem:[#allocation2 + $0x1d8] sm:$0xff] %v3392
  %3505 = vst [vmem:[#allocation2 + $0x1e0] sm:$0xff] %v3393
  %3506 = vst [vmem:[#allocation2 + $0x1e8] sm:$0xff] %v3394
  %3507 = vst [vmem:[#allocation2 + $0x200] sm:$0xff] %v3395
  %3508 = vst [vmem:[#allocation2 + $0x208] sm:$0xff] %v3396
  %3509 = vst [vmem:[#allocation2 + $0x210] sm:$0xff] %v3397
  %3510 = vst [vmem:[#allocation2 + $0x218] sm:$0xff] %v3398
  %3511 = vst [vmem:[#allocation2 + $0x220] sm:$0xff] %v3399
  %3512 = vst [vmem:[#allocation2 + $0x228] sm:$0xff] %v3400
  %3513 = vst [vmem:[#allocation2 + $0x230] sm:$0xff] %v3401
  %3514 = vst [vmem:[#allocation2 + $0x238] sm:$0xff] %v3402
  %3515 = vst [vmem:[#allocation2 + $0x240] sm:$0xff] %v3403
  %3516 = vst [vmem:[#allocation2 + $0x248] sm:$0xff] %v3404
  %3517 = vst [vmem:[#allocation2 + $0x250] sm:$0xff] %v3405
  %3518 = vst [vmem:[#allocation2 + $0x258] sm:$0xff] %v3406
  %3519 = vst [vmem:[#allocation2 + $0x260] sm:$0xff] %v3407
  %3520 = vst [vmem:[#allocation2 + $0x268] sm:$0xff] %v3408
  %3521 = vst [vmem:[#allocation2 + $0x280] sm:$0xff] %v3409
  %3522 = vst [vmem:[#allocation2 + $0x288] sm:$0xff] %v3410
  %3523 = vst [vmem:[#allocation2 + $0x290] sm:$0xff] %v3411
  %3524 = vst [vmem:[#allocation2 + $0x298] sm:$0xff] %v3412
  %3525 = vst [vmem:[#allocation2 + $0x2a0] sm:$0xff] %v3413
  %3526 = vst [vmem:[#allocation2 + $0x2a8] sm:$0xff] %v3414
  %3527 = vst [vmem:[#allocation2 + $0x2b0] sm:$0xff] %v3415
  %3528 = vst [vmem:[#allocation2 + $0x2b8] sm:$0xff] %v3416
  %3529 = vst [vmem:[#allocation2 + $0x2c0] sm:$0xff] %v3417
  %3530 = vst [vmem:[#allocation2 + $0x2c8] sm:$0xff] %v3418
  %3531 = vst [vmem:[#allocation2 + $0x2d0] sm:$0xff] %v3419
  %3532 = vst [vmem:[#allocation2 + $0x2d8] sm:$0xff] %v3420
  %3533 = vst [vmem:[#allocation2 + $0x2e0] sm:$0xff] %v3421
  %3534 = vst [vmem:[#allocation2 + $0x2e8] sm:$0xff] %v3422
  %3535 = vst [vmem:[#allocation2 + $0x300] sm:$0xff] %v3423
  %3536 = vst [vmem:[#allocation2 + $0x308] sm:$0xff] %v3424
  %3537 = vst [vmem:[#allocation2 + $0x310] sm:$0xff] %v3425
  %3538 = vst [vmem:[#allocation2 + $0x318] sm:$0xff] %v3426
  %3539 = vst [vmem:[#allocation2 + $0x320] sm:$0xff] %v3427
  %3540 = vst [vmem:[#allocation2 + $0x328] sm:$0xff] %v3428
  %3541 = vst [vmem:[#allocation2 + $0x330] sm:$0xff] %v3429
  %3542 = vst [vmem:[#allocation2 + $0x338] sm:$0xff] %v3430
  %3543 = vst [vmem:[#allocation2 + $0x340] sm:$0xff] %v3431
  %3544 = vst [vmem:[#allocation2 + $0x348] sm:$0xff] %v3432
  %3545 = vst [vmem:[#allocation2 + $0x350] sm:$0xff] %v3433
  %3546 = vst [vmem:[#allocation2 + $0x358] sm:$0xff] %v3434
  %3547 = vst [vmem:[#allocation2 + $0x360] sm:$0xff] %v3435
  %3548 = vst [vmem:[#allocation2 + $0x368] sm:$0xff] %v3436
  %3549 = vst [vmem:[#allocation2 + $0x380] sm:$0xff] %v3437
  %3550 = vst [vmem:[#allocation2 + $0x388] sm:$0xff] %v3438
  %3551 = vst [vmem:[#allocation2 + $0x390] sm:$0xff] %v3439
  %3552 = vst [vmem:[#allocation2 + $0x398] sm:$0xff] %v3440
  %3553 = vst [vmem:[#allocation2 + $0x3a0] sm:$0xff] %v3441
  %3554 = vst [vmem:[#allocation2 + $0x3a8] sm:$0xff] %v3442
  %3555 = vst [vmem:[#allocation2 + $0x3b0] sm:$0xff] %v3443
  %3556 = vst [vmem:[#allocation2 + $0x3b8] sm:$0xff] %v3444
  %3557 = vst [vmem:[#allocation2 + $0x3c0] sm:$0xff] %v3445
  %3558 = vst [vmem:[#allocation2 + $0x3c8] sm:$0xff] %v3446
  %3559 = vst [vmem:[#allocation2 + $0x3d0] sm:$0xff] %v3447
  %3560 = vst [vmem:[#allocation2 + $0x3d8] sm:$0xff] %v3448
  %3561 = vst [vmem:[#allocation2 + $0x3e0] sm:$0xff] %v3449
  %3562 = vst [vmem:[#allocation2 + $0x3e8] sm:$0xff] %v3450
  %v3563 = vld [vmem:[#allocation2] sm:$0xff]
  %v3564 = vld [vmem:[#allocation2 + $0x8] sm:$0xff]
  %v3565 = vld [vmem:[#allocation2 + $0x10] sm:$0xff]
  %v3566 = vld [vmem:[#allocation2 + $0x18] sm:$0xff]
  %v3567 = vld [vmem:[#allocation2 + $0x20] sm:$0xff]
  %v3568 = vld [vmem:[#allocation2 + $0x28] sm:$0xff]
  %v3569 = vld [vmem:[#allocation2 + $0x30] sm:$0xff]
  %v3570 = vld [vmem:[#allocation2 + $0x38] sm:$0xff]
  %v3571 = vld [vmem:[#allocation2 + $0x40] sm:$0xff]
  %v3572 = vld [vmem:[#allocation2 + $0x48] sm:$0xff]
  %v3573 = vld [vmem:[#allocation2 + $0x50] sm:$0xff]
  %v3574 = vld [vmem:[#allocation2 + $0x58] sm:$0xff]
  %v3575 = vld [vmem:[#allocation2 + $0x80] sm:$0xff]
  %v3576 = vld [vmem:[#allocation2 + $0x88] sm:$0xff]
  %v3577 = vld [vmem:[#allocation2 + $0x90] sm:$0xff]
  %v3578 = vld [vmem:[#allocation2 + $0x98] sm:$0xff]
  %v3579 = vld [vmem:[#allocation2 + $0xa0] sm:$0xff]
  %v3580 = vld [vmem:[#allocation2 + $0xa8] sm:$0xff]
  %v3581 = vld [vmem:[#allocation2 + $0xb0] sm:$0xff]
  %v3582 = vld [vmem:[#allocation2 + $0xb8] sm:$0xff]
  %v3583 = vld [vmem:[#allocation2 + $0xc0] sm:$0xff]
  %v3584 = vld [vmem:[#allocation2 + $0xc8] sm:$0xff]
  %v3585 = vld [vmem:[#allocation2 + $0xd0] sm:$0xff]
  %v3586 = vld [vmem:[#allocation2 + $0xd8] sm:$0xff]
  %v3587 = vld [vmem:[#allocation2 + $0x100] sm:$0xff]
  %v3588 = vld [vmem:[#allocation2 + $0x108] sm:$0xff]
  %v3589 = vld [vmem:[#allocation2 + $0x110] sm:$0xff]
  %v3590 = vld [vmem:[#allocation2 + $0x118] sm:$0xff]
  %v3591 = vld [vmem:[#allocation2 + $0x120] sm:$0xff]
  %v3592 = vld [vmem:[#allocation2 + $0x128] sm:$0xff]
  %v3593 = vld [vmem:[#allocation2 + $0x130] sm:$0xff]
  %v3594 = vld [vmem:[#allocation2 + $0x138] sm:$0xff]
  %v3595 = vld [vmem:[#allocation2 + $0x140] sm:$0xff]
  %v3596 = vld [vmem:[#allocation2 + $0x148] sm:$0xff]
  %v3597 = vld [vmem:[#allocation2 + $0x150] sm:$0xff]
  %v3598 = vld [vmem:[#allocation2 + $0x158] sm:$0xff]
  %v3599 = vld [vmem:[#allocation2 + $0x180] sm:$0xff]
  %v3600 = vld [vmem:[#allocation2 + $0x188] sm:$0xff]
  %v3601 = vld [vmem:[#allocation2 + $0x190] sm:$0xff]
  %v3602 = vld [vmem:[#allocation2 + $0x198] sm:$0xff]
  %v3603 = vld [vmem:[#allocation2 + $0x1a0] sm:$0xff]
  %v3604 = vld [vmem:[#allocation2 + $0x1a8] sm:$0xff]
  %v3605 = vld [vmem:[#allocation2 + $0x1b0] sm:$0xff]
  %v3606 = vld [vmem:[#allocation2 + $0x1b8] sm:$0xff]
  %v3607 = vld [vmem:[#allocation2 + $0x1c0] sm:$0xff]
  %v3608 = vld [vmem:[#allocation2 + $0x1c8] sm:$0xff]
  %v3609 = vld [vmem:[#allocation2 + $0x1d0] sm:$0xff]
  %v3610 = vld [vmem:[#allocation2 + $0x1d8] sm:$0xff]
  %v3611 = vld [vmem:[#allocation2 + $0x200] sm:$0xff]
  %v3612 = vld [vmem:[#allocation2 + $0x208] sm:$0xff]
  %v3613 = vld [vmem:[#allocation2 + $0x210] sm:$0xff]
  %v3614 = vld [vmem:[#allocation2 + $0x218] sm:$0xff]
  %v3615 = vld [vmem:[#allocation2 + $0x220] sm:$0xff]
  %v3616 = vld [vmem:[#allocation2 + $0x228] sm:$0xff]
  %v3617 = vld [vmem:[#allocation2 + $0x230] sm:$0xff]
  %v3618 = vld [vmem:[#allocation2 + $0x238] sm:$0xff]
  %v3619 = vld [vmem:[#allocation2 + $0x240] sm:$0xff]
  %v3620 = vld [vmem:[#allocation2 + $0x248] sm:$0xff]
  %v3621 = vld [vmem:[#allocation2 + $0x250] sm:$0xff]
  %v3622 = vld [vmem:[#allocation2 + $0x258] sm:$0xff]
  %v3623 = vld [vmem:[#allocation2 + $0x280] sm:$0xff]
  %v3624 = vld [vmem:[#allocation2 + $0x288] sm:$0xff]
  %v3625 = vld [vmem:[#allocation2 + $0x290] sm:$0xff]
  %v3626 = vld [vmem:[#allocation2 + $0x298] sm:$0xff]
  %v3627 = vld [vmem:[#allocation2 + $0x2a0] sm:$0xff]
  %v3628 = vld [vmem:[#allocation2 + $0x2a8] sm:$0xff]
  %v3629 = vld [vmem:[#allocation2 + $0x2b0] sm:$0xff]
  %v3630 = vld [vmem:[#allocation2 + $0x2b8] sm:$0xff]
  %v3631 = vld [vmem:[#allocation2 + $0x2c0] sm:$0xff]
  %v3632 = vld [vmem:[#allocation2 + $0x2c8] sm:$0xff]
  %v3633 = vld [vmem:[#allocation2 + $0x2d0] sm:$0xff]
  %v3634 = vld [vmem:[#allocation2 + $0x2d8] sm:$0xff]
  %v3635 = vld [vmem:[#allocation2 + $0x300] sm:$0xff]
  %v3636 = vld [vmem:[#allocation2 + $0x308] sm:$0xff]
  %v3637 = vld [vmem:[#allocation2 + $0x310] sm:$0xff]
  %v3638 = vld [vmem:[#allocation2 + $0x318] sm:$0xff]
  %v3639 = vld [vmem:[#allocation2 + $0x320] sm:$0xff]
  %v3640 = vld [vmem:[#allocation2 + $0x328] sm:$0xff]
  %v3641 = vld [vmem:[#allocation2 + $0x330] sm:$0xff]
  %v3642 = vld [vmem:[#allocation2 + $0x338] sm:$0xff]
  %v3643 = vld [vmem:[#allocation2 + $0x340] sm:$0xff]
  %v3644 = vld [vmem:[#allocation2 + $0x348] sm:$0xff]
  %v3645 = vld [vmem:[#allocation2 + $0x350] sm:$0xff]
  %v3646 = vld [vmem:[#allocation2 + $0x358] sm:$0xff]
  %v3647 = vld [vmem:[#allocation2 + $0x380] sm:$0xff]
  %v3648 = vld [vmem:[#allocation2 + $0x388] sm:$0xff]
  %v3649 = vld [vmem:[#allocation2 + $0x390] sm:$0xff]
  %v3650 = vld [vmem:[#allocation2 + $0x398] sm:$0xff]
  %v3651 = vld [vmem:[#allocation2 + $0x3a0] sm:$0xff]
  %v3652 = vld [vmem:[#allocation2 + $0x3a8] sm:$0xff]
  %v3653 = vld [vmem:[#allocation2 + $0x3b0] sm:$0xff]
  %v3654 = vld [vmem:[#allocation2 + $0x3b8] sm:$0xff]
  %v3655 = vld [vmem:[#allocation2 + $0x3c0] sm:$0xff]
  %v3656 = vld [vmem:[#allocation2 + $0x3c8] sm:$0xff]
  %v3657 = vld [vmem:[#allocation2 + $0x3d0] sm:$0xff]
  %v3658 = vld [vmem:[#allocation2 + $0x3d8] sm:$0xff]
  %s3659 = scalar_lea.vmem %s1, 128
  %v3660 = vld [vmem:[%s3659] sm:$0xf]
  %v3661 = vld [vmem:[%s3659 + $0x4] sm:$0xf]
  %v3662 = vld [vmem:[%s3659 + $0x8] sm:$0xf]
  %v3663 = vld [vmem:[%s3659 + $0xc] sm:$0xf]
  %v3664 = vld [vmem:[%s3659 + $0x10] sm:$0xf]
  %v3665 = vld [vmem:[%s3659 + $0x14] sm:$0xf]
  %v3666 = vld [vmem:[%s3659 + $0x18] sm:$0xf]
  %v3667 = vld [vmem:[%s3659 + $0x1c] sm:$0xf]
  %v3668 = vld [vmem:[%s0 + $0x10] sm:$0xff]
  %v3669 = vld [vmem:[%s0 + $0x18] sm:$0xff]
  %v3670 = vld [vmem:[%s0 + $0x20] sm:$0xff]
  %v3671 = vld [vmem:[%s0 + $0x28] sm:$0xff]
  %v3672 = vld [vmem:[%s0 + $0x30] sm:$0xff]
  %v3673 = vld [vmem:[%s0 + $0x38] sm:$0xff]
  %v3674 = vld [vmem:[%s0 + $0x50] sm:$0xff]
  %v3675 = vld [vmem:[%s0 + $0x58] sm:$0xff]
  %v3676 = vld [vmem:[%s0 + $0x60] sm:$0xff]
  %v3677 = vld [vmem:[%s0 + $0x68] sm:$0xff]
  %v3678 = vld [vmem:[%s0 + $0x70] sm:$0xff]
  %v3679 = vld [vmem:[%s0 + $0x78] sm:$0xff]
  %v3680 = vld [vmem:[%s0 + $0x90] sm:$0xff]
  %v3681 = vld [vmem:[%s0 + $0x98] sm:$0xff]
  %v3682 = vld [vmem:[%s0 + $0xa0] sm:$0xff]
  %v3683 = vld [vmem:[%s0 + $0xa8] sm:$0xff]
  %v3684 = vld [vmem:[%s0 + $0xb0] sm:$0xff]
  %v3685 = vld [vmem:[%s0 + $0xb8] sm:$0xff]
  %v3686 = vld [vmem:[%s0 + $0xd0] sm:$0xff]
  %v3687 = vld [vmem:[%s0 + $0xd8] sm:$0xff]
  %v3688 = vld [vmem:[%s0 + $0xe0] sm:$0xff]
  %v3689 = vld [vmem:[%s0 + $0xe8] sm:$0xff]
  %v3690 = vld [vmem:[%s0 + $0xf0] sm:$0xff]
  %v3691 = vld [vmem:[%s0 + $0xf8] sm:$0xff]
  %v3700 = vunpack.c.l.b16 %v3660
  %v3701 = vunpack.c.l.b16 %v3661
  %v3702 = vunpack.c.l.b16 %v3662
  %v3703 = vunpack.c.l.b16 %v3663
  %v3704 = vunpack.c.l.b16 %v3664
  %v3705 = vunpack.c.l.b16 %v3665
  %v3706 = vunpack.c.l.b16 %v3666
  %v3707 = vunpack.c.l.b16 %v3667
  %v3708 = vpack.c.b16 %v3701, %v3700
  %v3709 = vpack.c.b16 %v3703, %v3702
  %v3710 = vpack.c.b16 %v3705, %v3704
  %v3711 = vpack.c.b16 %v3707, %v3706
  %v3736 = vunpack.c.l.b16 %v3668
  %v3737 = vunpack.c.h.b16 %v3668
  %v3738 = vunpack.c.l.b16 %v3669
  %v3739 = vunpack.c.h.b16 %v3669
  %v3740 = vunpack.c.l.b16 %v3670
  %v3741 = vunpack.c.h.b16 %v3670
  %v3742 = vunpack.c.l.b16 %v3671
  %v3743 = vunpack.c.h.b16 %v3671
  %v3744 = vunpack.c.l.b16 %v3672
  %v3745 = vunpack.c.h.b16 %v3672
  %v3746 = vunpack.c.l.b16 %v3673
  %v3747 = vunpack.c.h.b16 %v3673
  %v3748 = vunpack.c.l.b16 %v3674
  %v3749 = vunpack.c.h.b16 %v3674
  %v3750 = vunpack.c.l.b16 %v3675
  %v3751 = vunpack.c.h.b16 %v3675
  %v3752 = vunpack.c.l.b16 %v3676
  %v3753 = vunpack.c.h.b16 %v3676
  %v3754 = vunpack.c.l.b16 %v3677
  %v3755 = vunpack.c.h.b16 %v3677
  %v3756 = vunpack.c.l.b16 %v3678
  %v3757 = vunpack.c.h.b16 %v3678
  %v3758 = vunpack.c.l.b16 %v3679
  %v3759 = vunpack.c.h.b16 %v3679
  %v3760 = vunpack.c.l.b16 %v3680
  %v3761 = vunpack.c.h.b16 %v3680
  %v3762 = vunpack.c.l.b16 %v3681
  %v3763 = vunpack.c.h.b16 %v3681
  %v3764 = vunpack.c.l.b16 %v3682
  %v3765 = vunpack.c.h.b16 %v3682
  %v3766 = vunpack.c.l.b16 %v3683
  %v3767 = vunpack.c.h.b16 %v3683
  %v3768 = vunpack.c.l.b16 %v3684
  %v3769 = vunpack.c.h.b16 %v3684
  %v3770 = vunpack.c.l.b16 %v3685
  %v3771 = vunpack.c.h.b16 %v3685
  %v3772 = vunpack.c.l.b16 %v3686
  %v3773 = vunpack.c.h.b16 %v3686
  %v3774 = vunpack.c.l.b16 %v3687
  %v3775 = vunpack.c.h.b16 %v3687
  %v3776 = vunpack.c.l.b16 %v3688
  %v3777 = vunpack.c.h.b16 %v3688
  %v3778 = vunpack.c.l.b16 %v3689
  %v3779 = vunpack.c.h.b16 %v3689
  %v3780 = vunpack.c.l.b16 %v3690
  %v3781 = vunpack.c.h.b16 %v3690
  %v3782 = vunpack.c.l.b16 %v3691
  %v3783 = vunpack.c.h.b16 %v3691
  %v3784 = vpack.c.b16 %v3748, %v3736
  %v3785 = vpack.c.b16 %v3749, %v3737
  %v3786 = vpack.c.b16 %v3750, %v3738
  %v3787 = vpack.c.b16 %v3751, %v3739
  %v3788 = vpack.c.b16 %v3752, %v3740
  %v3789 = vpack.c.b16 %v3753, %v3741
  %v3790 = vpack.c.b16 %v3754, %v3742
  %v3791 = vpack.c.b16 %v3755, %v3743
  %v3792 = vpack.c.b16 %v3756, %v3744
  %v3793 = vpack.c.b16 %v3757, %v3745
  %v3794 = vpack.c.b16 %v3758, %v3746
  %v3795 = vpack.c.b16 %v3759, %v3747
  %v3796 = vpack.c.b16 %v3772, %v3760
  %v3797 = vpack.c.b16 %v3773, %v3761
  %v3798 = vpack.c.b16 %v3774, %v3762
  %v3799 = vpack.c.b16 %v3775, %v3763
  %v3800 = vpack.c.b16 %v3776, %v3764
  %v3801 = vpack.c.b16 %v3777, %v3765
  %v3802 = vpack.c.b16 %v3778, %v3766
  %v3803 = vpack.c.b16 %v3779, %v3767
  %v3804 = vpack.c.b16 %v3780, %v3768
  %v3805 = vpack.c.b16 %v3781, %v3769
  %v3806 = vpack.c.b16 %v3782, %v3770
  %v3807 = vpack.c.b16 %v3783, %v3771
  %v3833 = vsel %vm236, %v3708, 0
  %v3836 = vsel %vm236, %v3709, 0
  %v3839 = vsel %vm236, %v3710, 0
  %v3842 = vsel %vm236, %v3711, 0
  %3844 = vmatpush.bf16.msra.mxu0 0
  %3845 = vmatpush.bf16.msra.mxu0 0
  %3846 = vmatpush.bf16.msra.mxu0 0
  %3847 = vmatpush.bf16.msra.mxu0 0
  %3848 = vmatpush.bf16.msra.mxu0 0
  %3849 = vmatpush.bf16.msra.mxu0 0
  %3850 = vmatpush.bf16.msra.mxu0 %v3796
  %3851 = vmatpush.bf16.msra.mxu0 %v3784
  %3852 = vmatmul.bf16.gmra.mxu0 %v3833
  %v3853 = vpop.f32.mrf.mxu0
  %v3854 = vadd.f32 0.0, %v3853
  %v3855 = vpop.f32.mrf.mxu0
  %v3856 = vadd.f32 0.0, %v3855
  %3857 = vmatmul.bf16.gmra.mxu0 %v3836
  %v3858 = vpop.f32.mrf.mxu0
  %v3859 = vadd.f32 0.0, %v3858
  %v3860 = vpop.f32.mrf.mxu0
  %v3861 = vadd.f32 0.0, %v3860
  %3862 = vmatmul.bf16.gmra.mxu0 %v3839
  %v3863 = vpop.f32.mrf.mxu0
  %v3864 = vadd.f32 0.0, %v3863
  %v3865 = vpop.f32.mrf.mxu0
  %v3866 = vadd.f32 0.0, %v3865
  %3867 = vmatmul.bf16.gmra.mxu0 %v3842
  %v3868 = vpop.f32.mrf.mxu0
  %v3869 = vadd.f32 0.0, %v3868
  %v3870 = vpop.f32.mrf.mxu0
  %v3871 = vadd.f32 0.0, %v3870
  %3872 = vdwg.mxu0
  %3873 = vmatpush.bf16.msra.mxu0 0
  %3874 = vmatpush.bf16.msra.mxu0 0
  %3875 = vmatpush.bf16.msra.mxu0 0
  %3876 = vmatpush.bf16.msra.mxu0 0
  %3877 = vmatpush.bf16.msra.mxu0 0
  %3878 = vmatpush.bf16.msra.mxu0 0
  %3879 = vmatpush.bf16.msra.mxu0 %v3797
  %3880 = vmatpush.bf16.msra.mxu0 %v3785
  %3881 = vmatmul.bf16.gmra.mxu0 %v3833
  %v3882 = vpop.f32.mrf.mxu0
  %v3883 = vadd.f32 0.0, %v3882
  %v3884 = vpop.f32.mrf.mxu0
  %v3885 = vadd.f32 0.0, %v3884
  %3886 = vmatmul.bf16.gmra.mxu0 %v3836
  %v3887 = vpop.f32.mrf.mxu0
  %v3888 = vadd.f32 0.0, %v3887
  %v3889 = vpop.f32.mrf.mxu0
  %v3890 = vadd.f32 0.0, %v3889
  %3891 = vmatmul.bf16.gmra.mxu0 %v3839
  %v3892 = vpop.f32.mrf.mxu0
  %v3893 = vadd.f32 0.0, %v3892
  %v3894 = vpop.f32.mrf.mxu0
  %v3895 = vadd.f32 0.0, %v3894
  %3896 = vmatmul.bf16.gmra.mxu0 %v3842
  %v3897 = vpop.f32.mrf.mxu0
  %v3898 = vadd.f32 0.0, %v3897
  %v3899 = vpop.f32.mrf.mxu0
  %v3900 = vadd.f32 0.0, %v3899
  %3901 = vdwg.mxu0
  %3902 = vmatpush.bf16.msra.mxu0 0
  %3903 = vmatpush.bf16.msra.mxu0 0
  %3904 = vmatpush.bf16.msra.mxu0 0
  %3905 = vmatpush.bf16.msra.mxu0 0
  %3906 = vmatpush.bf16.msra.mxu0 0
  %3907 = vmatpush.bf16.msra.mxu0 0
  %3908 = vmatpush.bf16.msra.mxu0 %v3798
  %3909 = vmatpush.bf16.msra.mxu0 %v3786
  %3910 = vmatmul.bf16.gmra.mxu0 %v3833
  %v3911 = vpop.f32.mrf.mxu0
  %v3912 = vadd.f32 0.0, %v3911
  %v3913 = vpop.f32.mrf.mxu0
  %v3914 = vadd.f32 0.0, %v3913
  %3915 = vmatmul.bf16.gmra.mxu0 %v3836
  %v3916 = vpop.f32.mrf.mxu0
  %v3917 = vadd.f32 0.0, %v3916
  %v3918 = vpop.f32.mrf.mxu0
  %v3919 = vadd.f32 0.0, %v3918
  %3920 = vmatmul.bf16.gmra.mxu0 %v3839
  %v3921 = vpop.f32.mrf.mxu0
  %v3922 = vadd.f32 0.0, %v3921
  %v3923 = vpop.f32.mrf.mxu0
  %v3924 = vadd.f32 0.0, %v3923
  %3925 = vmatmul.bf16.gmra.mxu0 %v3842
  %v3926 = vpop.f32.mrf.mxu0
  %v3927 = vadd.f32 0.0, %v3926
  %v3928 = vpop.f32.mrf.mxu0
  %v3929 = vadd.f32 0.0, %v3928
  %3930 = vdwg.mxu0
  %3931 = vmatpush.bf16.msra.mxu0 0
  %3932 = vmatpush.bf16.msra.mxu0 0
  %3933 = vmatpush.bf16.msra.mxu0 0
  %3934 = vmatpush.bf16.msra.mxu0 0
  %3935 = vmatpush.bf16.msra.mxu0 0
  %3936 = vmatpush.bf16.msra.mxu0 0
  %3937 = vmatpush.bf16.msra.mxu0 %v3799
  %3938 = vmatpush.bf16.msra.mxu0 %v3787
  %3939 = vmatmul.bf16.gmra.mxu0 %v3833
  %v3940 = vpop.f32.mrf.mxu0
  %v3941 = vadd.f32 0.0, %v3940
  %v3942 = vpop.f32.mrf.mxu0
  %v3943 = vadd.f32 0.0, %v3942
  %3944 = vmatmul.bf16.gmra.mxu0 %v3836
  %v3945 = vpop.f32.mrf.mxu0
  %v3946 = vadd.f32 0.0, %v3945
  %v3947 = vpop.f32.mrf.mxu0
  %v3948 = vadd.f32 0.0, %v3947
  %3949 = vmatmul.bf16.gmra.mxu0 %v3839
  %v3950 = vpop.f32.mrf.mxu0
  %v3951 = vadd.f32 0.0, %v3950
  %v3952 = vpop.f32.mrf.mxu0
  %v3953 = vadd.f32 0.0, %v3952
  %3954 = vmatmul.bf16.gmra.mxu0 %v3842
  %v3955 = vpop.f32.mrf.mxu0
  %v3956 = vadd.f32 0.0, %v3955
  %v3957 = vpop.f32.mrf.mxu0
  %v3958 = vadd.f32 0.0, %v3957
  %3959 = vdwg.mxu0
  %3960 = vmatpush.bf16.msra.mxu0 0
  %3961 = vmatpush.bf16.msra.mxu0 0
  %3962 = vmatpush.bf16.msra.mxu0 0
  %3963 = vmatpush.bf16.msra.mxu0 0
  %3964 = vmatpush.bf16.msra.mxu0 0
  %3965 = vmatpush.bf16.msra.mxu0 0
  %3966 = vmatpush.bf16.msra.mxu0 %v3800
  %3967 = vmatpush.bf16.msra.mxu0 %v3788
  %3968 = vmatmul.bf16.gmra.mxu0 %v3833
  %v3969 = vpop.f32.mrf.mxu0
  %v3970 = vadd.f32 0.0, %v3969
  %v3971 = vpop.f32.mrf.mxu0
  %v3972 = vadd.f32 0.0, %v3971
  %3973 = vmatmul.bf16.gmra.mxu0 %v3836
  %v3974 = vpop.f32.mrf.mxu0
  %v3975 = vadd.f32 0.0, %v3974
  %v3976 = vpop.f32.mrf.mxu0
  %v3977 = vadd.f32 0.0, %v3976
  %3978 = vmatmul.bf16.gmra.mxu0 %v3839
  %v3979 = vpop.f32.mrf.mxu0
  %v3980 = vadd.f32 0.0, %v3979
  %v3981 = vpop.f32.mrf.mxu0
  %v3982 = vadd.f32 0.0, %v3981
  %3983 = vmatmul.bf16.gmra.mxu0 %v3842
  %v3984 = vpop.f32.mrf.mxu0
  %v3985 = vadd.f32 0.0, %v3984
  %v3986 = vpop.f32.mrf.mxu0
  %v3987 = vadd.f32 0.0, %v3986
  %3988 = vdwg.mxu0
  %3989 = vmatpush.bf16.msra.mxu0 0
  %3990 = vmatpush.bf16.msra.mxu0 0
  %3991 = vmatpush.bf16.msra.mxu0 0
  %3992 = vmatpush.bf16.msra.mxu0 0
  %3993 = vmatpush.bf16.msra.mxu0 0
  %3994 = vmatpush.bf16.msra.mxu0 0
  %3995 = vmatpush.bf16.msra.mxu0 %v3801
  %3996 = vmatpush.bf16.msra.mxu0 %v3789
  %3997 = vmatmul.bf16.gmra.mxu0 %v3833
  %v3998 = vpop.f32.mrf.mxu0
  %v3999 = vadd.f32 0.0, %v3998
  %v4000 = vpop.f32.mrf.mxu0
  %v4001 = vadd.f32 0.0, %v4000
  %4002 = vmatmul.bf16.gmra.mxu0 %v3836
  %v4003 = vpop.f32.mrf.mxu0
  %v4004 = vadd.f32 0.0, %v4003
  %v4005 = vpop.f32.mrf.mxu0
  %v4006 = vadd.f32 0.0, %v4005
  %4007 = vmatmul.bf16.gmra.mxu0 %v3839
  %v4008 = vpop.f32.mrf.mxu0
  %v4009 = vadd.f32 0.0, %v4008
  %v4010 = vpop.f32.mrf.mxu0
  %v4011 = vadd.f32 0.0, %v4010
  %4012 = vmatmul.bf16.gmra.mxu0 %v3842
  %v4013 = vpop.f32.mrf.mxu0
  %v4014 = vadd.f32 0.0, %v4013
  %v4015 = vpop.f32.mrf.mxu0
  %v4016 = vadd.f32 0.0, %v4015
  %4017 = vdwg.mxu0
  %4018 = vmatpush.bf16.msra.mxu0 0
  %4019 = vmatpush.bf16.msra.mxu0 0
  %4020 = vmatpush.bf16.msra.mxu0 0
  %4021 = vmatpush.bf16.msra.mxu0 0
  %4022 = vmatpush.bf16.msra.mxu0 0
  %4023 = vmatpush.bf16.msra.mxu0 0
  %4024 = vmatpush.bf16.msra.mxu0 %v3802
  %4025 = vmatpush.bf16.msra.mxu0 %v3790
  %4026 = vmatmul.bf16.gmra.mxu0 %v3833
  %v4027 = vpop.f32.mrf.mxu0
  %v4028 = vadd.f32 0.0, %v4027
  %v4029 = vpop.f32.mrf.mxu0
  %v4030 = vadd.f32 0.0, %v4029
  %4031 = vmatmul.bf16.gmra.mxu0 %v3836
  %v4032 = vpop.f32.mrf.mxu0
  %v4033 = vadd.f32 0.0, %v4032
  %v4034 = vpop.f32.mrf.mxu0
  %v4035 = vadd.f32 0.0, %v4034
  %4036 = vmatmul.bf16.gmra.mxu0 %v3839
  %v4037 = vpop.f32.mrf.mxu0
  %v4038 = vadd.f32 0.0, %v4037
  %v4039 = vpop.f32.mrf.mxu0
  %v4040 = vadd.f32 0.0, %v4039
  %4041 = vmatmul.bf16.gmra.mxu0 %v3842
  %v4042 = vpop.f32.mrf.mxu0
  %v4043 = vadd.f32 0.0, %v4042
  %v4044 = vpop.f32.mrf.mxu0
  %v4045 = vadd.f32 0.0, %v4044
  %4046 = vdwg.mxu0
  %4047 = vmatpush.bf16.msra.mxu0 0
  %4048 = vmatpush.bf16.msra.mxu0 0
  %4049 = vmatpush.bf16.msra.mxu0 0
  %4050 = vmatpush.bf16.msra.mxu0 0
  %4051 = vmatpush.bf16.msra.mxu0 0
  %4052 = vmatpush.bf16.msra.mxu0 0
  %4053 = vmatpush.bf16.msra.mxu0 %v3803
  %4054 = vmatpush.bf16.msra.mxu0 %v3791
  %4055 = vmatmul.bf16.gmra.mxu0 %v3833
  %v4056 = vpop.f32.mrf.mxu0
  %v4057 = vadd.f32 0.0, %v4056
  %v4058 = vpop.f32.mrf.mxu0
  %v4059 = vadd.f32 0.0, %v4058
  %4060 = vmatmul.bf16.gmra.mxu0 %v3836
  %v4061 = vpop.f32.mrf.mxu0
  %v4062 = vadd.f32 0.0, %v4061
  %v4063 = vpop.f32.mrf.mxu0
  %v4064 = vadd.f32 0.0, %v4063
  %4065 = vmatmul.bf16.gmra.mxu0 %v3839
  %v4066 = vpop.f32.mrf.mxu0
  %v4067 = vadd.f32 0.0, %v4066
  %v4068 = vpop.f32.mrf.mxu0
  %v4069 = vadd.f32 0.0, %v4068
  %4070 = vmatmul.bf16.gmra.mxu0 %v3842
  %v4071 = vpop.f32.mrf.mxu0
  %v4072 = vadd.f32 0.0, %v4071
  %v4073 = vpop.f32.mrf.mxu0
  %v4074 = vadd.f32 0.0, %v4073
  %4075 = vdwg.mxu0
  %4076 = vmatpush.bf16.msra.mxu0 0
  %4077 = vmatpush.bf16.msra.mxu0 0
  %4078 = vmatpush.bf16.msra.mxu0 0
  %4079 = vmatpush.bf16.msra.mxu0 0
  %4080 = vmatpush.bf16.msra.mxu0 0
  %4081 = vmatpush.bf16.msra.mxu0 0
  %4082 = vmatpush.bf16.msra.mxu0 %v3804
  %4083 = vmatpush.bf16.msra.mxu0 %v3792
  %4084 = vmatmul.bf16.gmra.mxu0 %v3833
  %v4085 = vpop.f32.mrf.mxu0
  %v4086 = vadd.f32 0.0, %v4085
  %v4087 = vpop.f32.mrf.mxu0
  %v4088 = vadd.f32 0.0, %v4087
  %4089 = vmatmul.bf16.gmra.mxu0 %v3836
  %v4090 = vpop.f32.mrf.mxu0
  %v4091 = vadd.f32 0.0, %v4090
  %v4092 = vpop.f32.mrf.mxu0
  %v4093 = vadd.f32 0.0, %v4092
  %4094 = vmatmul.bf16.gmra.mxu0 %v3839
  %v4095 = vpop.f32.mrf.mxu0
  %v4096 = vadd.f32 0.0, %v4095
  %v4097 = vpop.f32.mrf.mxu0
  %v4098 = vadd.f32 0.0, %v4097
  %4099 = vmatmul.bf16.gmra.mxu0 %v3842
  %v4100 = vpop.f32.mrf.mxu0
  %v4101 = vadd.f32 0.0, %v4100
  %v4102 = vpop.f32.mrf.mxu0
  %v4103 = vadd.f32 0.0, %v4102
  %4104 = vdwg.mxu0
  %4105 = vmatpush.bf16.msra.mxu0 0
  %4106 = vmatpush.bf16.msra.mxu0 0
  %4107 = vmatpush.bf16.msra.mxu0 0
  %4108 = vmatpush.bf16.msra.mxu0 0
  %4109 = vmatpush.bf16.msra.mxu0 0
  %4110 = vmatpush.bf16.msra.mxu0 0
  %4111 = vmatpush.bf16.msra.mxu0 %v3805
  %4112 = vmatpush.bf16.msra.mxu0 %v3793
  %4113 = vmatmul.bf16.gmra.mxu0 %v3833
  %v4114 = vpop.f32.mrf.mxu0
  %v4115 = vadd.f32 0.0, %v4114
  %v4116 = vpop.f32.mrf.mxu0
  %v4117 = vadd.f32 0.0, %v4116
  %4118 = vmatmul.bf16.gmra.mxu0 %v3836
  %v4119 = vpop.f32.mrf.mxu0
  %v4120 = vadd.f32 0.0, %v4119
  %v4121 = vpop.f32.mrf.mxu0
  %v4122 = vadd.f32 0.0, %v4121
  %4123 = vmatmul.bf16.gmra.mxu0 %v3839
  %v4124 = vpop.f32.mrf.mxu0
  %v4125 = vadd.f32 0.0, %v4124
  %v4126 = vpop.f32.mrf.mxu0
  %v4127 = vadd.f32 0.0, %v4126
  %4128 = vmatmul.bf16.gmra.mxu0 %v3842
  %v4129 = vpop.f32.mrf.mxu0
  %v4130 = vadd.f32 0.0, %v4129
  %v4131 = vpop.f32.mrf.mxu0
  %v4132 = vadd.f32 0.0, %v4131
  %4133 = vdwg.mxu0
  %4134 = vmatpush.bf16.msra.mxu0 0
  %4135 = vmatpush.bf16.msra.mxu0 0
  %4136 = vmatpush.bf16.msra.mxu0 0
  %4137 = vmatpush.bf16.msra.mxu0 0
  %4138 = vmatpush.bf16.msra.mxu0 0
  %4139 = vmatpush.bf16.msra.mxu0 0
  %4140 = vmatpush.bf16.msra.mxu0 %v3806
  %4141 = vmatpush.bf16.msra.mxu0 %v3794
  %4142 = vmatmul.bf16.gmra.mxu0 %v3833
  %v4143 = vpop.f32.mrf.mxu0
  %v4144 = vadd.f32 0.0, %v4143
  %v4145 = vpop.f32.mrf.mxu0
  %v4146 = vadd.f32 0.0, %v4145
  %4147 = vmatmul.bf16.gmra.mxu0 %v3836
  %v4148 = vpop.f32.mrf.mxu0
  %v4149 = vadd.f32 0.0, %v4148
  %v4150 = vpop.f32.mrf.mxu0
  %v4151 = vadd.f32 0.0, %v4150
  %4152 = vmatmul.bf16.gmra.mxu0 %v3839
  %v4153 = vpop.f32.mrf.mxu0
  %v4154 = vadd.f32 0.0, %v4153
  %v4155 = vpop.f32.mrf.mxu0
  %v4156 = vadd.f32 0.0, %v4155
  %4157 = vmatmul.bf16.gmra.mxu0 %v3842
  %v4158 = vpop.f32.mrf.mxu0
  %v4159 = vadd.f32 0.0, %v4158
  %v4160 = vpop.f32.mrf.mxu0
  %v4161 = vadd.f32 0.0, %v4160
  %4162 = vdwg.mxu0
  %4163 = vmatpush.bf16.msra.mxu0 0
  %4164 = vmatpush.bf16.msra.mxu0 0
  %4165 = vmatpush.bf16.msra.mxu0 0
  %4166 = vmatpush.bf16.msra.mxu0 0
  %4167 = vmatpush.bf16.msra.mxu0 0
  %4168 = vmatpush.bf16.msra.mxu0 0
  %4169 = vmatpush.bf16.msra.mxu0 %v3807
  %4170 = vmatpush.bf16.msra.mxu0 %v3795
  %4171 = vmatmul.bf16.gmra.mxu0 %v3833
  %v4172 = vpop.f32.mrf.mxu0
  %v4173 = vadd.f32 0.0, %v4172
  %v4174 = vpop.f32.mrf.mxu0
  %v4175 = vadd.f32 0.0, %v4174
  %4176 = vmatmul.bf16.gmra.mxu0 %v3836
  %v4177 = vpop.f32.mrf.mxu0
  %v4178 = vadd.f32 0.0, %v4177
  %v4179 = vpop.f32.mrf.mxu0
  %v4180 = vadd.f32 0.0, %v4179
  %4181 = vmatmul.bf16.gmra.mxu0 %v3839
  %v4182 = vpop.f32.mrf.mxu0
  %v4183 = vadd.f32 0.0, %v4182
  %v4184 = vpop.f32.mrf.mxu0
  %v4185 = vadd.f32 0.0, %v4184
  %4186 = vmatmul.bf16.gmra.mxu0 %v3842
  %v4187 = vpop.f32.mrf.mxu0
  %v4188 = vadd.f32 0.0, %v4187
  %v4189 = vpop.f32.mrf.mxu0
  %v4190 = vadd.f32 0.0, %v4189
  %4191 = vdwg.mxu0
  %v4192 = vadd.f32 %v3563, %v3854
  %v4193 = vadd.f32 %v3564, %v3883
  %v4194 = vadd.f32 %v3565, %v3912
  %v4195 = vadd.f32 %v3566, %v3941
  %v4196 = vadd.f32 %v3567, %v3970
  %v4197 = vadd.f32 %v3568, %v3999
  %v4198 = vadd.f32 %v3569, %v4028
  %v4199 = vadd.f32 %v3570, %v4057
  %v4200 = vadd.f32 %v3571, %v4086
  %v4201 = vadd.f32 %v3572, %v4115
  %v4202 = vadd.f32 %v3573, %v4144
  %v4203 = vadd.f32 %v3574, %v4173
  %v4204 = vadd.f32 %v3575, %v3856
  %v4205 = vadd.f32 %v3576, %v3885
  %v4206 = vadd.f32 %v3577, %v3914
  %v4207 = vadd.f32 %v3578, %v3943
  %v4208 = vadd.f32 %v3579, %v3972
  %v4209 = vadd.f32 %v3580, %v4001
  %v4210 = vadd.f32 %v3581, %v4030
  %v4211 = vadd.f32 %v3582, %v4059
  %v4212 = vadd.f32 %v3583, %v4088
  %v4213 = vadd.f32 %v3584, %v4117
  %v4214 = vadd.f32 %v3585, %v4146
  %v4215 = vadd.f32 %v3586, %v4175
  %v4216 = vadd.f32 %v3587, %v3859
  %v4217 = vadd.f32 %v3588, %v3888
  %v4218 = vadd.f32 %v3589, %v3917
  %v4219 = vadd.f32 %v3590, %v3946
  %v4220 = vadd.f32 %v3591, %v3975
  %v4221 = vadd.f32 %v3592, %v4004
  %v4222 = vadd.f32 %v3593, %v4033
  %v4223 = vadd.f32 %v3594, %v4062
  %v4224 = vadd.f32 %v3595, %v4091
  %v4225 = vadd.f32 %v3596, %v4120
  %v4226 = vadd.f32 %v3597, %v4149
  %v4227 = vadd.f32 %v3598, %v4178
  %v4228 = vadd.f32 %v3599, %v3861
  %v4229 = vadd.f32 %v3600, %v3890
  %v4230 = vadd.f32 %v3601, %v3919
  %v4231 = vadd.f32 %v3602, %v3948
  %v4232 = vadd.f32 %v3603, %v3977
  %v4233 = vadd.f32 %v3604, %v4006
  %v4234 = vadd.f32 %v3605, %v4035
  %v4235 = vadd.f32 %v3606, %v4064
  %v4236 = vadd.f32 %v3607, %v4093
  %v4237 = vadd.f32 %v3608, %v4122
  %v4238 = vadd.f32 %v3609, %v4151
  %v4239 = vadd.f32 %v3610, %v4180
  %v4240 = vadd.f32 %v3611, %v3864
  %v4241 = vadd.f32 %v3612, %v3893
  %v4242 = vadd.f32 %v3613, %v3922
  %v4243 = vadd.f32 %v3614, %v3951
  %v4244 = vadd.f32 %v3615, %v3980
  %v4245 = vadd.f32 %v3616, %v4009
  %v4246 = vadd.f32 %v3617, %v4038
  %v4247 = vadd.f32 %v3618, %v4067
  %v4248 = vadd.f32 %v3619, %v4096
  %v4249 = vadd.f32 %v3620, %v4125
  %v4250 = vadd.f32 %v3621, %v4154
  %v4251 = vadd.f32 %v3622, %v4183
  %v4252 = vadd.f32 %v3623, %v3866
  %v4253 = vadd.f32 %v3624, %v3895
  %v4254 = vadd.f32 %v3625, %v3924
  %v4255 = vadd.f32 %v3626, %v3953
  %v4256 = vadd.f32 %v3627, %v3982
  %v4257 = vadd.f32 %v3628, %v4011
  %v4258 = vadd.f32 %v3629, %v4040
  %v4259 = vadd.f32 %v3630, %v4069
  %v4260 = vadd.f32 %v3631, %v4098
  %v4261 = vadd.f32 %v3632, %v4127
  %v4262 = vadd.f32 %v3633, %v4156
  %v4263 = vadd.f32 %v3634, %v4185
  %v4264 = vadd.f32 %v3635, %v3869
  %v4265 = vadd.f32 %v3636, %v3898
  %v4266 = vadd.f32 %v3637, %v3927
  %v4267 = vadd.f32 %v3638, %v3956
  %v4268 = vadd.f32 %v3639, %v3985
  %v4269 = vadd.f32 %v3640, %v4014
  %v4270 = vadd.f32 %v3641, %v4043
  %v4271 = vadd.f32 %v3642, %v4072
  %v4272 = vadd.f32 %v3643, %v4101
  %v4273 = vadd.f32 %v3644, %v4130
  %v4274 = vadd.f32 %v3645, %v4159
  %v4275 = vadd.f32 %v3646, %v4188
  %v4276 = vadd.f32 %v3647, %v3871
  %v4277 = vadd.f32 %v3648, %v3900
  %v4278 = vadd.f32 %v3649, %v3929
  %v4279 = vadd.f32 %v3650, %v3958
  %v4280 = vadd.f32 %v3651, %v3987
  %v4281 = vadd.f32 %v3652, %v4016
  %v4282 = vadd.f32 %v3653, %v4045
  %v4283 = vadd.f32 %v3654, %v4074
  %v4284 = vadd.f32 %v3655, %v4103
  %v4285 = vadd.f32 %v3656, %v4132
  %v4286 = vadd.f32 %v3657, %v4161
  %v4287 = vadd.f32 %v3658, %v4190
  %4288 = vst [vmem:[#allocation2] sm:$0xff] %v4192
  %4289 = vst [vmem:[#allocation2 + $0x8] sm:$0xff] %v4193
  %4290 = vst [vmem:[#allocation2 + $0x10] sm:$0xff] %v4194
  %4291 = vst [vmem:[#allocation2 + $0x18] sm:$0xff] %v4195
  %4292 = vst [vmem:[#allocation2 + $0x20] sm:$0xff] %v4196
  %4293 = vst [vmem:[#allocation2 + $0x28] sm:$0xff] %v4197
  %4294 = vst [vmem:[#allocation2 + $0x30] sm:$0xff] %v4198
  %4295 = vst [vmem:[#allocation2 + $0x38] sm:$0xff] %v4199
  %4296 = vst [vmem:[#allocation2 + $0x40] sm:$0xff] %v4200
  %4297 = vst [vmem:[#allocation2 + $0x48] sm:$0xff] %v4201
  %4298 = vst [vmem:[#allocation2 + $0x50] sm:$0xff] %v4202
  %4299 = vst [vmem:[#allocation2 + $0x58] sm:$0xff] %v4203
  %4300 = vst [vmem:[#allocation2 + $0x80] sm:$0xff] %v4204
  %4301 = vst [vmem:[#allocation2 + $0x88] sm:$0xff] %v4205
  %4302 = vst [vmem:[#allocation2 + $0x90] sm:$0xff] %v4206
  %4303 = vst [vmem:[#allocation2 + $0x98] sm:$0xff] %v4207
  %4304 = vst [vmem:[#allocation2 + $0xa0] sm:$0xff] %v4208
  %4305 = vst [vmem:[#allocation2 + $0xa8] sm:$0xff] %v4209
  %4306 = vst [vmem:[#allocation2 + $0xb0] sm:$0xff] %v4210
  %4307 = vst [vmem:[#allocation2 + $0xb8] sm:$0xff] %v4211
  %4308 = vst [vmem:[#allocation2 + $0xc0] sm:$0xff] %v4212
  %4309 = vst [vmem:[#allocation2 + $0xc8] sm:$0xff] %v4213
  %4310 = vst [vmem:[#allocation2 + $0xd0] sm:$0xff] %v4214
  %4311 = vst [vmem:[#allocation2 + $0xd8] sm:$0xff] %v4215
  %4312 = vst [vmem:[#allocation2 + $0x100] sm:$0xff] %v4216
  %4313 = vst [vmem:[#allocation2 + $0x108] sm:$0xff] %v4217
  %4314 = vst [vmem:[#allocation2 + $0x110] sm:$0xff] %v4218
  %4315 = vst [vmem:[#allocation2 + $0x118] sm:$0xff] %v4219
  %4316 = vst [vmem:[#allocation2 + $0x120] sm:$0xff] %v4220
  %4317 = vst [vmem:[#allocation2 + $0x128] sm:$0xff] %v4221
  %4318 = vst [vmem:[#allocation2 + $0x130] sm:$0xff] %v4222
  %4319 = vst [vmem:[#allocation2 + $0x138] sm:$0xff] %v4223
  %4320 = vst [vmem:[#allocation2 + $0x140] sm:$0xff] %v4224
  %4321 = vst [vmem:[#allocation2 + $0x148] sm:$0xff] %v4225
  %4322 = vst [vmem:[#allocation2 + $0x150] sm:$0xff] %v4226
  %4323 = vst [vmem:[#allocation2 + $0x158] sm:$0xff] %v4227
  %4324 = vst [vmem:[#allocation2 + $0x180] sm:$0xff] %v4228
  %4325 = vst [vmem:[#allocation2 + $0x188] sm:$0xff] %v4229
  %4326 = vst [vmem:[#allocation2 + $0x190] sm:$0xff] %v4230
  %4327 = vst [vmem:[#allocation2 + $0x198] sm:$0xff] %v4231
  %4328 = vst [vmem:[#allocation2 + $0x1a0] sm:$0xff] %v4232
  %4329 = vst [vmem:[#allocation2 + $0x1a8] sm:$0xff] %v4233
  %4330 = vst [vmem:[#allocation2 + $0x1b0] sm:$0xff] %v4234
  %4331 = vst [vmem:[#allocation2 + $0x1b8] sm:$0xff] %v4235
  %4332 = vst [vmem:[#allocation2 + $0x1c0] sm:$0xff] %v4236
  %4333 = vst [vmem:[#allocation2 + $0x1c8] sm:$0xff] %v4237
  %4334 = vst [vmem:[#allocation2 + $0x1d0] sm:$0xff] %v4238
  %4335 = vst [vmem:[#allocation2 + $0x1d8] sm:$0xff] %v4239
  %4336 = vst [vmem:[#allocation2 + $0x200] sm:$0xff] %v4240
  %4337 = vst [vmem:[#allocation2 + $0x208] sm:$0xff] %v4241
  %4338 = vst [vmem:[#allocation2 + $0x210] sm:$0xff] %v4242
  %4339 = vst [vmem:[#allocation2 + $0x218] sm:$0xff] %v4243
  %4340 = vst [vmem:[#allocation2 + $0x220] sm:$0xff] %v4244
  %4341 = vst [vmem:[#allocation2 + $0x228] sm:$0xff] %v4245
  %4342 = vst [vmem:[#allocation2 + $0x230] sm:$0xff] %v4246
  %4343 = vst [vmem:[#allocation2 + $0x238] sm:$0xff] %v4247
  %4344 = vst [vmem:[#allocation2 + $0x240] sm:$0xff] %v4248
  %4345 = vst [vmem:[#allocation2 + $0x248] sm:$0xff] %v4249
  %4346 = vst [vmem:[#allocation2 + $0x250] sm:$0xff] %v4250
  %4347 = vst [vmem:[#allocation2 + $0x258] sm:$0xff] %v4251
  %4348 = vst [vmem:[#allocation2 + $0x280] sm:$0xff] %v4252
  %4349 = vst [vmem:[#allocation2 + $0x288] sm:$0xff] %v4253
  %4350 = vst [vmem:[#allocation2 + $0x290] sm:$0xff] %v4254
  %4351 = vst [vmem:[#allocation2 + $0x298] sm:$0xff] %v4255
  %4352 = vst [vmem:[#allocation2 + $0x2a0] sm:$0xff] %v4256
  %4353 = vst [vmem:[#allocation2 + $0x2a8] sm:$0xff] %v4257
  %4354 = vst [vmem:[#allocation2 + $0x2b0] sm:$0xff] %v4258
  %4355 = vst [vmem:[#allocation2 + $0x2b8] sm:$0xff] %v4259
  %4356 = vst [vmem:[#allocation2 + $0x2c0] sm:$0xff] %v4260
  %4357 = vst [vmem:[#allocation2 + $0x2c8] sm:$0xff] %v4261
  %4358 = vst [vmem:[#allocation2 + $0x2d0] sm:$0xff] %v4262
  %4359 = vst [vmem:[#allocation2 + $0x2d8] sm:$0xff] %v4263
  %4360 = vst [vmem:[#allocation2 + $0x300] sm:$0xff] %v4264
  %4361 = vst [vmem:[#allocation2 + $0x308] sm:$0xff] %v4265
  %4362 = vst [vmem:[#allocation2 + $0x310] sm:$0xff] %v4266
  %4363 = vst [vmem:[#allocation2 + $0x318] sm:$0xff] %v4267
  %4364 = vst [vmem:[#allocation2 + $0x320] sm:$0xff] %v4268
  %4365 = vst [vmem:[#allocation2 + $0x328] sm:$0xff] %v4269
  %4366 = vst [vmem:[#allocation2 + $0x330] sm:$0xff] %v4270
  %4367 = vst [vmem:[#allocation2 + $0x338] sm:$0xff] %v4271
  %4368 = vst [vmem:[#allocation2 + $0x340] sm:$0xff] %v4272
  %4369 = vst [vmem:[#allocation2 + $0x348] sm:$0xff] %v4273
  %4370 = vst [vmem:[#allocation2 + $0x350] sm:$0xff] %v4274
  %4371 = vst [vmem:[#allocation2 + $0x358] sm:$0xff] %v4275
  %4372 = vst [vmem:[#allocation2 + $0x380] sm:$0xff] %v4276
  %4373 = vst [vmem:[#allocation2 + $0x388] sm:$0xff] %v4277
  %4374 = vst [vmem:[#allocation2 + $0x390] sm:$0xff] %v4278
  %4375 = vst [vmem:[#allocation2 + $0x398] sm:$0xff] %v4279
  %4376 = vst [vmem:[#allocation2 + $0x3a0] sm:$0xff] %v4280
  %4377 = vst [vmem:[#allocation2 + $0x3a8] sm:$0xff] %v4281
  %4378 = vst [vmem:[#allocation2 + $0x3b0] sm:$0xff] %v4282
  %4379 = vst [vmem:[#allocation2 + $0x3b8] sm:$0xff] %v4283
  %4380 = vst [vmem:[#allocation2 + $0x3c0] sm:$0xff] %v4284
  %4381 = vst [vmem:[#allocation2 + $0x3c8] sm:$0xff] %v4285
  %4382 = vst [vmem:[#allocation2 + $0x3d0] sm:$0xff] %v4286
  %4383 = vst [vmem:[#allocation2 + $0x3d8] sm:$0xff] %v4287
  %v4384 = vld [vmem:[#allocation2] sm:$0xff]
  %v4385 = vld [vmem:[#allocation2 + $0x8] sm:$0xff]
  %v4386 = vld [vmem:[#allocation2 + $0x80] sm:$0xff]
  %v4387 = vld [vmem:[#allocation2 + $0x88] sm:$0xff]
  %v4388 = vld [vmem:[#allocation2 + $0x100] sm:$0xff]
  %v4389 = vld [vmem:[#allocation2 + $0x108] sm:$0xff]
  %v4390 = vld [vmem:[#allocation2 + $0x180] sm:$0xff]
  %v4391 = vld [vmem:[#allocation2 + $0x188] sm:$0xff]
  %v4392 = vld [vmem:[#allocation2 + $0x200] sm:$0xff]
  %v4393 = vld [vmem:[#allocation2 + $0x208] sm:$0xff]
  %v4394 = vld [vmem:[#allocation2 + $0x280] sm:$0xff]
  %v4395 = vld [vmem:[#allocation2 + $0x288] sm:$0xff]
  %v4396 = vld [vmem:[#allocation2 + $0x300] sm:$0xff]
  %v4397 = vld [vmem:[#allocation2 + $0x308] sm:$0xff]
  %v4398 = vld [vmem:[#allocation2 + $0x380] sm:$0xff]
  %v4399 = vld [vmem:[#allocation2 + $0x388] sm:$0xff]
  %v4400 = vadd.f32 %v4384, %v4385
  %4401 = vadd.xlane.f32.xlu0 %v4400
  %v4402 = vpop.xlane.xlu0 %4401
  %v4403 = vadd.f32 %v4386, %v4387
  %4404 = vadd.xlane.f32.xlu0 %v4403
  %v4405 = vpop.xlane.xlu0 %4404
  %v4406 = vadd.f32 %v4388, %v4389
  %4407 = vadd.xlane.f32.xlu0 %v4406
  %v4408 = vpop.xlane.xlu0 %4407
  %v4409 = vadd.f32 %v4390, %v4391
  %4410 = vadd.xlane.f32.xlu0 %v4409
  %v4411 = vpop.xlane.xlu0 %4410
  %v4412 = vadd.f32 %v4392, %v4393
  %4413 = vadd.xlane.f32.xlu0 %v4412
  %v4414 = vpop.xlane.xlu0 %4413
  %v4415 = vadd.f32 %v4394, %v4395
  %4416 = vadd.xlane.f32.xlu0 %v4415
  %v4417 = vpop.xlane.xlu0 %4416
  %v4418 = vadd.f32 %v4396, %v4397
  %4419 = vadd.xlane.f32.xlu0 %v4418
  %v4420 = vpop.xlane.xlu0 %4419
  %v4421 = vadd.f32 %v4398, %v4399
  %4422 = vadd.xlane.f32.xlu0 %v4421
  %v4423 = vpop.xlane.xlu0 %4422
  %v4424 = vmul.f32 %v4402, 0.00390625
  %v4425 = vmul.f32 %v4405, 0.00390625
  %v4426 = vmul.f32 %v4408, 0.00390625
  %v4427 = vmul.f32 %v4411, 0.00390625
  %v4428 = vmul.f32 %v4414, 0.00390625
  %v4429 = vmul.f32 %v4417, 0.00390625
  %v4430 = vmul.f32 %v4420, 0.00390625
  %v4431 = vmul.f32 %v4423, 0.00390625
  %v4432 = vmax.f32 %v4384, %v4385
  %4433 = vmax.xlane.f32.xlu0 %v4432
  %v4434 = vpop.xlane.xlu0 %4433
  %v4435 = vmax.f32 %v4386, %v4387
  %4436 = vmax.xlane.f32.xlu0 %v4435
  %v4437 = vpop.xlane.xlu0 %4436
  %v4438 = vmax.f32 %v4388, %v4389
  %4439 = vmax.xlane.f32.xlu0 %v4438
  %v4440 = vpop.xlane.xlu0 %4439
  %v4441 = vmax.f32 %v4390, %v4391
  %4442 = vmax.xlane.f32.xlu0 %v4441
  %v4443 = vpop.xlane.xlu0 %4442
  %v4444 = vmax.f32 %v4392, %v4393
  %4445 = vmax.xlane.f32.xlu0 %v4444
  %v4446 = vpop.xlane.xlu0 %4445
  %v4447 = vmax.f32 %v4394, %v4395
  %4448 = vmax.xlane.f32.xlu0 %v4447
  %v4449 = vpop.xlane.xlu0 %4448
  %v4450 = vmax.f32 %v4396, %v4397
  %4451 = vmax.xlane.f32.xlu0 %v4450
  %v4452 = vpop.xlane.xlu0 %4451
  %v4453 = vmax.f32 %v4398, %v4399
  %4454 = vmax.xlane.f32.xlu0 %v4453
  %v4455 = vpop.xlane.xlu0 %4454
  %v4456 = vld [vmem:[#allocation2 + $0x10] sm:$0xff]
  %v4457 = vld [vmem:[#allocation2 + $0x18] sm:$0xff]
  %v4458 = vld [vmem:[#allocation2 + $0x90] sm:$0xff]
  %v4459 = vld [vmem:[#allocation2 + $0x98] sm:$0xff]
  %v4460 = vld [vmem:[#allocation2 + $0x110] sm:$0xff]
  %v4461 = vld [vmem:[#allocation2 + $0x118] sm:$0xff]
  %v4462 = vld [vmem:[#allocation2 + $0x190] sm:$0xff]
  %v4463 = vld [vmem:[#allocation2 + $0x198] sm:$0xff]
  %v4464 = vld [vmem:[#allocation2 + $0x210] sm:$0xff]
  %v4465 = vld [vmem:[#allocation2 + $0x218] sm:$0xff]
  %v4466 = vld [vmem:[#allocation2 + $0x290] sm:$0xff]
  %v4467 = vld [vmem:[#allocation2 + $0x298] sm:$0xff]
  %v4468 = vld [vmem:[#allocation2 + $0x310] sm:$0xff]
  %v4469 = vld [vmem:[#allocation2 + $0x318] sm:$0xff]
  %v4470 = vld [vmem:[#allocation2 + $0x390] sm:$0xff]
  %v4471 = vld [vmem:[#allocation2 + $0x398] sm:$0xff]
  %v4472 = vadd.f32 %v4456, %v4457
  %4473 = vadd.xlane.f32.xlu0 %v4472
  %v4474 = vpop.xlane.xlu0 %4473
  %v4475 = vadd.f32 %v4458, %v4459
  %4476 = vadd.xlane.f32.xlu0 %v4475
  %v4477 = vpop.xlane.xlu0 %4476
  %v4478 = vadd.f32 %v4460, %v4461
  %4479 = vadd.xlane.f32.xlu0 %v4478
  %v4480 = vpop.xlane.xlu0 %4479
  %v4481 = vadd.f32 %v4462, %v4463
  %4482 = vadd.xlane.f32.xlu0 %v4481
  %v4483 = vpop.xlane.xlu0 %4482
  %v4484 = vadd.f32 %v4464, %v4465
  %4485 = vadd.xlane.f32.xlu0 %v4484
  %v4486 = vpop.xlane.xlu0 %4485
  %v4487 = vadd.f32 %v4466, %v4467
  %4488 = vadd.xlane.f32.xlu0 %v4487
  %v4489 = vpop.xlane.xlu0 %4488
  %v4490 = vadd.f32 %v4468, %v4469
  %4491 = vadd.xlane.f32.xlu0 %v4490
  %v4492 = vpop.xlane.xlu0 %4491
  %v4493 = vadd.f32 %v4470, %v4471
  %4494 = vadd.xlane.f32.xlu0 %v4493
  %v4495 = vpop.xlane.xlu0 %4494
  %v4496 = vmul.f32 %v4474, 0.00390625
  %v4497 = vmul.f32 %v4477, 0.00390625
  %v4498 = vmul.f32 %v4480, 0.00390625
  %v4499 = vmul.f32 %v4483, 0.00390625
  %v4500 = vmul.f32 %v4486, 0.00390625
  %v4501 = vmul.f32 %v4489, 0.00390625
  %v4502 = vmul.f32 %v4492, 0.00390625
  %v4503 = vmul.f32 %v4495, 0.00390625
  %v4504 = vmax.f32 %v4456, %v4457
  %4505 = vmax.xlane.f32.xlu0 %v4504
  %v4506 = vpop.xlane.xlu0 %4505
  %v4507 = vmax.f32 %v4458, %v4459
  %4508 = vmax.xlane.f32.xlu0 %v4507
  %v4509 = vpop.xlane.xlu0 %4508
  %v4510 = vmax.f32 %v4460, %v4461
  %4511 = vmax.xlane.f32.xlu0 %v4510
  %v4512 = vpop.xlane.xlu0 %4511
  %v4513 = vmax.f32 %v4462, %v4463
  %4514 = vmax.xlane.f32.xlu0 %v4513
  %v4515 = vpop.xlane.xlu0 %4514
  %v4516 = vmax.f32 %v4464, %v4465
  %4517 = vmax.xlane.f32.xlu0 %v4516
  %v4518 = vpop.xlane.xlu0 %4517
  %v4519 = vmax.f32 %v4466, %v4467
  %4520 = vmax.xlane.f32.xlu0 %v4519
  %v4521 = vpop.xlane.xlu0 %4520
  %v4522 = vmax.f32 %v4468, %v4469
  %4523 = vmax.xlane.f32.xlu0 %v4522
  %v4524 = vpop.xlane.xlu0 %4523
  %v4525 = vmax.f32 %v4470, %v4471
  %4526 = vmax.xlane.f32.xlu0 %v4525
  %v4527 = vpop.xlane.xlu0 %4526
  %v4528 = vld [vmem:[#allocation2 + $0x20] sm:$0xff]
  %v4529 = vld [vmem:[#allocation2 + $0x28] sm:$0xff]
  %v4530 = vld [vmem:[#allocation2 + $0xa0] sm:$0xff]
  %v4531 = vld [vmem:[#allocation2 + $0xa8] sm:$0xff]
  %v4532 = vld [vmem:[#allocation2 + $0x120] sm:$0xff]
  %v4533 = vld [vmem:[#allocation2 + $0x128] sm:$0xff]
  %v4534 = vld [vmem:[#allocation2 + $0x1a0] sm:$0xff]
  %v4535 = vld [vmem:[#allocation2 + $0x1a8] sm:$0xff]
  %v4536 = vld [vmem:[#allocation2 + $0x220] sm:$0xff]
  %v4537 = vld [vmem:[#allocation2 + $0x228] sm:$0xff]
  %v4538 = vld [vmem:[#allocation2 + $0x2a0] sm:$0xff]
  %v4539 = vld [vmem:[#allocation2 + $0x2a8] sm:$0xff]
  %v4540 = vld [vmem:[#allocation2 + $0x320] sm:$0xff]
  %v4541 = vld [vmem:[#allocation2 + $0x328] sm:$0xff]
  %v4542 = vld [vmem:[#allocation2 + $0x3a0] sm:$0xff]
  %v4543 = vld [vmem:[#allocation2 + $0x3a8] sm:$0xff]
  %v4544 = vadd.f32 %v4528, %v4529
  %4545 = vadd.xlane.f32.xlu0 %v4544
  %v4546 = vpop.xlane.xlu0 %4545
  %v4547 = vadd.f32 %v4530, %v4531
  %4548 = vadd.xlane.f32.xlu0 %v4547
  %v4549 = vpop.xlane.xlu0 %4548
  %v4550 = vadd.f32 %v4532, %v4533
  %4551 = vadd.xlane.f32.xlu0 %v4550
  %v4552 = vpop.xlane.xlu0 %4551
  %v4553 = vadd.f32 %v4534, %v4535
  %4554 = vadd.xlane.f32.xlu0 %v4553
  %v4555 = vpop.xlane.xlu0 %4554
  %v4556 = vadd.f32 %v4536, %v4537
  %4557 = vadd.xlane.f32.xlu0 %v4556
  %v4558 = vpop.xlane.xlu0 %4557
  %v4559 = vadd.f32 %v4538, %v4539
  %4560 = vadd.xlane.f32.xlu0 %v4559
  %v4561 = vpop.xlane.xlu0 %4560
  %v4562 = vadd.f32 %v4540, %v4541
  %4563 = vadd.xlane.f32.xlu0 %v4562
  %v4564 = vpop.xlane.xlu0 %4563
  %v4565 = vadd.f32 %v4542, %v4543
  %4566 = vadd.xlane.f32.xlu0 %v4565
  %v4567 = vpop.xlane.xlu0 %4566
  %v4568 = vmul.f32 %v4546, 0.00390625
  %v4569 = vmul.f32 %v4549, 0.00390625
  %v4570 = vmul.f32 %v4552, 0.00390625
  %v4571 = vmul.f32 %v4555, 0.00390625
  %v4572 = vmul.f32 %v4558, 0.00390625
  %v4573 = vmul.f32 %v4561, 0.00390625
  %v4574 = vmul.f32 %v4564, 0.00390625
  %v4575 = vmul.f32 %v4567, 0.00390625
  %v4576 = vmax.f32 %v4528, %v4529
  %4577 = vmax.xlane.f32.xlu0 %v4576
  %v4578 = vpop.xlane.xlu0 %4577
  %v4579 = vmax.f32 %v4530, %v4531
  %4580 = vmax.xlane.f32.xlu0 %v4579
  %v4581 = vpop.xlane.xlu0 %4580
  %v4582 = vmax.f32 %v4532, %v4533
  %4583 = vmax.xlane.f32.xlu0 %v4582
  %v4584 = vpop.xlane.xlu0 %4583
  %v4585 = vmax.f32 %v4534, %v4535
  %4586 = vmax.xlane.f32.xlu0 %v4585
  %v4587 = vpop.xlane.xlu0 %4586
  %v4588 = vmax.f32 %v4536, %v4537
  %4589 = vmax.xlane.f32.xlu0 %v4588
  %v4590 = vpop.xlane.xlu0 %4589
  %v4591 = vmax.f32 %v4538, %v4539
  %4592 = vmax.xlane.f32.xlu0 %v4591
  %v4593 = vpop.xlane.xlu0 %4592
  %v4594 = vmax.f32 %v4540, %v4541
  %4595 = vmax.xlane.f32.xlu0 %v4594
  %v4596 = vpop.xlane.xlu0 %4595
  %v4597 = vmax.f32 %v4542, %v4543
  %4598 = vmax.xlane.f32.xlu0 %v4597
  %v4599 = vpop.xlane.xlu0 %4598
  %v4600 = vld [vmem:[#allocation2 + $0x30] sm:$0xff]
  %v4601 = vld [vmem:[#allocation2 + $0x38] sm:$0xff]
  %v4602 = vld [vmem:[#allocation2 + $0xb0] sm:$0xff]
  %v4603 = vld [vmem:[#allocation2 + $0xb8] sm:$0xff]
  %v4604 = vld [vmem:[#allocation2 + $0x130] sm:$0xff]
  %v4605 = vld [vmem:[#allocation2 + $0x138] sm:$0xff]
  %v4606 = vld [vmem:[#allocation2 + $0x1b0] sm:$0xff]
  %v4607 = vld [vmem:[#allocation2 + $0x1b8] sm:$0xff]
  %v4608 = vld [vmem:[#allocation2 + $0x230] sm:$0xff]
  %v4609 = vld [vmem:[#allocation2 + $0x238] sm:$0xff]
  %v4610 = vld [vmem:[#allocation2 + $0x2b0] sm:$0xff]
  %v4611 = vld [vmem:[#allocation2 + $0x2b8] sm:$0xff]
  %v4612 = vld [vmem:[#allocation2 + $0x330] sm:$0xff]
  %v4613 = vld [vmem:[#allocation2 + $0x338] sm:$0xff]
  %v4614 = vld [vmem:[#allocation2 + $0x3b0] sm:$0xff]
  %v4615 = vld [vmem:[#allocation2 + $0x3b8] sm:$0xff]
  %v4616 = vadd.f32 %v4600, %v4601
  %4617 = vadd.xlane.f32.xlu0 %v4616
  %v4618 = vpop.xlane.xlu0 %4617
  %v4619 = vadd.f32 %v4602, %v4603
  %4620 = vadd.xlane.f32.xlu0 %v4619
  %v4621 = vpop.xlane.xlu0 %4620
  %v4622 = vadd.f32 %v4604, %v4605
  %4623 = vadd.xlane.f32.xlu0 %v4622
  %v4624 = vpop.xlane.xlu0 %4623
  %v4625 = vadd.f32 %v4606, %v4607
  %4626 = vadd.xlane.f32.xlu0 %v4625
  %v4627 = vpop.xlane.xlu0 %4626
  %v4628 = vadd.f32 %v4608, %v4609
  %4629 = vadd.xlane.f32.xlu0 %v4628
  %v4630 = vpop.xlane.xlu0 %4629
  %v4631 = vadd.f32 %v4610, %v4611
  %4632 = vadd.xlane.f32.xlu0 %v4631
  %v4633 = vpop.xlane.xlu0 %4632
  %v4634 = vadd.f32 %v4612, %v4613
  %4635 = vadd.xlane.f32.xlu0 %v4634
  %v4636 = vpop.xlane.xlu0 %4635
  %v4637 = vadd.f32 %v4614, %v4615
  %4638 = vadd.xlane.f32.xlu0 %v4637
  %v4639 = vpop.xlane.xlu0 %4638
  %v4640 = vmul.f32 %v4618, 0.00390625
  %v4641 = vmul.f32 %v4621, 0.00390625
  %v4642 = vmul.f32 %v4624, 0.00390625
  %v4643 = vmul.f32 %v4627, 0.00390625
  %v4644 = vmul.f32 %v4630, 0.00390625
  %v4645 = vmul.f32 %v4633, 0.00390625
  %v4646 = vmul.f32 %v4636, 0.00390625
  %v4647 = vmul.f32 %v4639, 0.00390625
  %v4648 = vmax.f32 %v4600, %v4601
  %4649 = vmax.xlane.f32.xlu0 %v4648
  %v4650 = vpop.xlane.xlu0 %4649
  %v4651 = vmax.f32 %v4602, %v4603
  %4652 = vmax.xlane.f32.xlu0 %v4651
  %v4653 = vpop.xlane.xlu0 %4652
  %v4654 = vmax.f32 %v4604, %v4605
  %4655 = vmax.xlane.f32.xlu0 %v4654
  %v4656 = vpop.xlane.xlu0 %4655
  %v4657 = vmax.f32 %v4606, %v4607
  %4658 = vmax.xlane.f32.xlu0 %v4657
  %v4659 = vpop.xlane.xlu0 %4658
  %v4660 = vmax.f32 %v4608, %v4609
  %4661 = vmax.xlane.f32.xlu0 %v4660
  %v4662 = vpop.xlane.xlu0 %4661
  %v4663 = vmax.f32 %v4610, %v4611
  %4664 = vmax.xlane.f32.xlu0 %v4663
  %v4665 = vpop.xlane.xlu0 %4664
  %v4666 = vmax.f32 %v4612, %v4613
  %4667 = vmax.xlane.f32.xlu0 %v4666
  %v4668 = vpop.xlane.xlu0 %4667
  %v4669 = vmax.f32 %v4614, %v4615
  %4670 = vmax.xlane.f32.xlu0 %v4669
  %v4671 = vpop.xlane.xlu0 %4670
  %v4672 = vld [vmem:[#allocation2 + $0x40] sm:$0xff]
  %v4673 = vld [vmem:[#allocation2 + $0x48] sm:$0xff]
  %v4674 = vld [vmem:[#allocation2 + $0xc0] sm:$0xff]
  %v4675 = vld [vmem:[#allocation2 + $0xc8] sm:$0xff]
  %v4676 = vld [vmem:[#allocation2 + $0x140] sm:$0xff]
  %v4677 = vld [vmem:[#allocation2 + $0x148] sm:$0xff]
  %v4678 = vld [vmem:[#allocation2 + $0x1c0] sm:$0xff]
  %v4679 = vld [vmem:[#allocation2 + $0x1c8] sm:$0xff]
  %v4680 = vld [vmem:[#allocation2 + $0x240] sm:$0xff]
  %v4681 = vld [vmem:[#allocation2 + $0x248] sm:$0xff]
  %v4682 = vld [vmem:[#allocation2 + $0x2c0] sm:$0xff]
  %v4683 = vld [vmem:[#allocation2 + $0x2c8] sm:$0xff]
  %v4684 = vld [vmem:[#allocation2 + $0x340] sm:$0xff]
  %v4685 = vld [vmem:[#allocation2 + $0x348] sm:$0xff]
  %v4686 = vld [vmem:[#allocation2 + $0x3c0] sm:$0xff]
  %v4687 = vld [vmem:[#allocation2 + $0x3c8] sm:$0xff]
  %v4688 = vadd.f32 %v4672, %v4673
  %4689 = vadd.xlane.f32.xlu0 %v4688
  %v4690 = vpop.xlane.xlu0 %4689
  %v4691 = vadd.f32 %v4674, %v4675
  %4692 = vadd.xlane.f32.xlu0 %v4691
  %v4693 = vpop.xlane.xlu0 %4692
  %v4694 = vadd.f32 %v4676, %v4677
  %4695 = vadd.xlane.f32.xlu0 %v4694
  %v4696 = vpop.xlane.xlu0 %4695
  %v4697 = vadd.f32 %v4678, %v4679
  %4698 = vadd.xlane.f32.xlu0 %v4697
  %v4699 = vpop.xlane.xlu0 %4698
  %v4700 = vadd.f32 %v4680, %v4681
  %4701 = vadd.xlane.f32.xlu0 %v4700
  %v4702 = vpop.xlane.xlu0 %4701
  %v4703 = vadd.f32 %v4682, %v4683
  %4704 = vadd.xlane.f32.xlu0 %v4703
  %v4705 = vpop.xlane.xlu0 %4704
  %v4706 = vadd.f32 %v4684, %v4685
  %4707 = vadd.xlane.f32.xlu0 %v4706
  %v4708 = vpop.xlane.xlu0 %4707
  %v4709 = vadd.f32 %v4686, %v4687
  %4710 = vadd.xlane.f32.xlu0 %v4709
  %v4711 = vpop.xlane.xlu0 %4710
  %v4712 = vmul.f32 %v4690, 0.00390625
  %v4713 = vmul.f32 %v4693, 0.00390625
  %v4714 = vmul.f32 %v4696, 0.00390625
  %v4715 = vmul.f32 %v4699, 0.00390625
  %v4716 = vmul.f32 %v4702, 0.00390625
  %v4717 = vmul.f32 %v4705, 0.00390625
  %v4718 = vmul.f32 %v4708, 0.00390625
  %v4719 = vmul.f32 %v4711, 0.00390625
  %v4720 = vmax.f32 %v4672, %v4673
  %4721 = vmax.xlane.f32.xlu0 %v4720
  %v4722 = vpop.xlane.xlu0 %4721
  %v4723 = vmax.f32 %v4674, %v4675
  %4724 = vmax.xlane.f32.xlu0 %v4723
  %v4725 = vpop.xlane.xlu0 %4724
  %v4726 = vmax.f32 %v4676, %v4677
  %4727 = vmax.xlane.f32.xlu0 %v4726
  %v4728 = vpop.xlane.xlu0 %4727
  %v4729 = vmax.f32 %v4678, %v4679
  %4730 = vmax.xlane.f32.xlu0 %v4729
  %v4731 = vpop.xlane.xlu0 %4730
  %v4732 = vmax.f32 %v4680, %v4681
  %4733 = vmax.xlane.f32.xlu0 %v4732
  %v4734 = vpop.xlane.xlu0 %4733
  %v4735 = vmax.f32 %v4682, %v4683
  %4736 = vmax.xlane.f32.xlu0 %v4735
  %v4737 = vpop.xlane.xlu0 %4736
  %v4738 = vmax.f32 %v4684, %v4685
  %4739 = vmax.xlane.f32.xlu0 %v4738
  %v4740 = vpop.xlane.xlu0 %4739
  %v4741 = vmax.f32 %v4686, %v4687
  %4742 = vmax.xlane.f32.xlu0 %v4741
  %v4743 = vpop.xlane.xlu0 %4742
  %v4744 = vld [vmem:[#allocation2 + $0x50] sm:$0xff]
  %v4745 = vld [vmem:[#allocation2 + $0x58] sm:$0xff]
  %v4746 = vld [vmem:[#allocation2 + $0xd0] sm:$0xff]
  %v4747 = vld [vmem:[#allocation2 + $0xd8] sm:$0xff]
  %v4748 = vld [vmem:[#allocation2 + $0x150] sm:$0xff]
  %v4749 = vld [vmem:[#allocation2 + $0x158] sm:$0xff]
  %v4750 = vld [vmem:[#allocation2 + $0x1d0] sm:$0xff]
  %v4751 = vld [vmem:[#allocation2 + $0x1d8] sm:$0xff]
  %v4752 = vld [vmem:[#allocation2 + $0x250] sm:$0xff]
  %v4753 = vld [vmem:[#allocation2 + $0x258] sm:$0xff]
  %v4754 = vld [vmem:[#allocation2 + $0x2d0] sm:$0xff]
  %v4755 = vld [vmem:[#allocation2 + $0x2d8] sm:$0xff]
  %v4756 = vld [vmem:[#allocation2 + $0x350] sm:$0xff]
  %v4757 = vld [vmem:[#allocation2 + $0x358] sm:$0xff]
  %v4758 = vld [vmem:[#allocation2 + $0x3d0] sm:$0xff]
  %v4759 = vld [vmem:[#allocation2 + $0x3d8] sm:$0xff]
  %v4760 = vadd.f32 %v4744, %v4745
  %4761 = vadd.xlane.f32.xlu0 %v4760
  %v4762 = vpop.xlane.xlu0 %4761
  %v4763 = vadd.f32 %v4746, %v4747
  %4764 = vadd.xlane.f32.xlu0 %v4763
  %v4765 = vpop.xlane.xlu0 %4764
  %v4766 = vadd.f32 %v4748, %v4749
  %4767 = vadd.xlane.f32.xlu0 %v4766
  %v4768 = vpop.xlane.xlu0 %4767
  %v4769 = vadd.f32 %v4750, %v4751
  %4770 = vadd.xlane.f32.xlu0 %v4769
  %v4771 = vpop.xlane.xlu0 %4770
  %v4772 = vadd.f32 %v4752, %v4753
  %4773 = vadd.xlane.f32.xlu0 %v4772
  %v4774 = vpop.xlane.xlu0 %4773
  %v4775 = vadd.f32 %v4754, %v4755
  %4776 = vadd.xlane.f32.xlu0 %v4775
  %v4777 = vpop.xlane.xlu0 %4776
  %v4778 = vadd.f32 %v4756, %v4757
  %4779 = vadd.xlane.f32.xlu0 %v4778
  %v4780 = vpop.xlane.xlu0 %4779
  %v4781 = vadd.f32 %v4758, %v4759
  %4782 = vadd.xlane.f32.xlu0 %v4781
  %v4783 = vpop.xlane.xlu0 %4782
  %v4784 = vmul.f32 %v4762, 0.00390625
  %v4785 = vmul.f32 %v4765, 0.00390625
  %v4786 = vmul.f32 %v4768, 0.00390625
  %v4787 = vmul.f32 %v4771, 0.00390625
  %v4788 = vmul.f32 %v4774, 0.00390625
  %v4789 = vmul.f32 %v4777, 0.00390625
  %v4790 = vmul.f32 %v4780, 0.00390625
  %v4791 = vmul.f32 %v4783, 0.00390625
  %v4792 = vmax.f32 %v4744, %v4745
  %4793 = vmax.xlane.f32.xlu0 %v4792
  %v4794 = vpop.xlane.xlu0 %4793
  %v4795 = vmax.f32 %v4746, %v4747
  %4796 = vmax.xlane.f32.xlu0 %v4795
  %v4797 = vpop.xlane.xlu0 %4796
  %v4798 = vmax.f32 %v4748, %v4749
  %4799 = vmax.xlane.f32.xlu0 %v4798
  %v4800 = vpop.xlane.xlu0 %4799
  %v4801 = vmax.f32 %v4750, %v4751
  %4802 = vmax.xlane.f32.xlu0 %v4801
  %v4803 = vpop.xlane.xlu0 %4802
  %v4804 = vmax.f32 %v4752, %v4753
  %4805 = vmax.xlane.f32.xlu0 %v4804
  %v4806 = vpop.xlane.xlu0 %4805
  %v4807 = vmax.f32 %v4754, %v4755
  %4808 = vmax.xlane.f32.xlu0 %v4807
  %v4809 = vpop.xlane.xlu0 %4808
  %v4810 = vmax.f32 %v4756, %v4757
  %4811 = vmax.xlane.f32.xlu0 %v4810
  %v4812 = vpop.xlane.xlu0 %4811
  %v4813 = vmax.f32 %v4758, %v4759
  %4814 = vmax.xlane.f32.xlu0 %v4813
  %v4815 = vpop.xlane.xlu0 %4814
  %v4816 = vld [vmem:[#allocation2 + $0x60] sm:$0xff]
  %v4817 = vld [vmem:[#allocation2 + $0x68] sm:$0xff]
  %v4818 = vld [vmem:[#allocation2 + $0xe0] sm:$0xff]
  %v4819 = vld [vmem:[#allocation2 + $0xe8] sm:$0xff]
  %v4820 = vld [vmem:[#allocation2 + $0x160] sm:$0xff]
  %v4821 = vld [vmem:[#allocation2 + $0x168] sm:$0xff]
  %v4822 = vld [vmem:[#allocation2 + $0x1e0] sm:$0xff]
  %v4823 = vld [vmem:[#allocation2 + $0x1e8] sm:$0xff]
  %v4824 = vld [vmem:[#allocation2 + $0x260] sm:$0xff]
  %v4825 = vld [vmem:[#allocation2 + $0x268] sm:$0xff]
  %v4826 = vld [vmem:[#allocation2 + $0x2e0] sm:$0xff]
  %v4827 = vld [vmem:[#allocation2 + $0x2e8] sm:$0xff]
  %v4828 = vld [vmem:[#allocation2 + $0x360] sm:$0xff]
  %v4829 = vld [vmem:[#allocation2 + $0x368] sm:$0xff]
  %v4830 = vld [vmem:[#allocation2 + $0x3e0] sm:$0xff]
  %v4831 = vld [vmem:[#allocation2 + $0x3e8] sm:$0xff]
  %v4832 = vadd.f32 %v4816, %v4817
  %4833 = vadd.xlane.f32.xlu0 %v4832
  %v4834 = vpop.xlane.xlu0 %4833
  %v4835 = vadd.f32 %v4818, %v4819
  %4836 = vadd.xlane.f32.xlu0 %v4835
  %v4837 = vpop.xlane.xlu0 %4836
  %v4838 = vadd.f32 %v4820, %v4821
  %4839 = vadd.xlane.f32.xlu0 %v4838
  %v4840 = vpop.xlane.xlu0 %4839
  %v4841 = vadd.f32 %v4822, %v4823
  %4842 = vadd.xlane.f32.xlu0 %v4841
  %v4843 = vpop.xlane.xlu0 %4842
  %v4844 = vadd.f32 %v4824, %v4825
  %4845 = vadd.xlane.f32.xlu0 %v4844
  %v4846 = vpop.xlane.xlu0 %4845
  %v4847 = vadd.f32 %v4826, %v4827
  %4848 = vadd.xlane.f32.xlu0 %v4847
  %v4849 = vpop.xlane.xlu0 %4848
  %v4850 = vadd.f32 %v4828, %v4829
  %4851 = vadd.xlane.f32.xlu0 %v4850
  %v4852 = vpop.xlane.xlu0 %4851
  %v4853 = vadd.f32 %v4830, %v4831
  %4854 = vadd.xlane.f32.xlu0 %v4853
  %v4855 = vpop.xlane.xlu0 %4854
  %v4856 = vmul.f32 %v4834, 0.00390625
  %v4857 = vmul.f32 %v4837, 0.00390625
  %v4858 = vmul.f32 %v4840, 0.00390625
  %v4859 = vmul.f32 %v4843, 0.00390625
  %v4860 = vmul.f32 %v4846, 0.00390625
  %v4861 = vmul.f32 %v4849, 0.00390625
  %v4862 = vmul.f32 %v4852, 0.00390625
  %v4863 = vmul.f32 %v4855, 0.00390625
  %v4864 = vmax.f32 %v4816, %v4817
  %4865 = vmax.xlane.f32.xlu0 %v4864
  %v4866 = vpop.xlane.xlu0 %4865
  %v4867 = vmax.f32 %v4818, %v4819
  %4868 = vmax.xlane.f32.xlu0 %v4867
  %v4869 = vpop.xlane.xlu0 %4868
  %v4870 = vmax.f32 %v4820, %v4821
  %4871 = vmax.xlane.f32.xlu0 %v4870
  %v4872 = vpop.xlane.xlu0 %4871
  %v4873 = vmax.f32 %v4822, %v4823
  %4874 = vmax.xlane.f32.xlu0 %v4873
  %v4875 = vpop.xlane.xlu0 %4874
  %v4876 = vmax.f32 %v4824, %v4825
  %4877 = vmax.xlane.f32.xlu0 %v4876
  %v4878 = vpop.xlane.xlu0 %4877
  %v4879 = vmax.f32 %v4826, %v4827
  %4880 = vmax.xlane.f32.xlu0 %v4879
  %v4881 = vpop.xlane.xlu0 %4880
  %v4882 = vmax.f32 %v4828, %v4829
  %4883 = vmax.xlane.f32.xlu0 %v4882
  %v4884 = vpop.xlane.xlu0 %4883
  %v4885 = vmax.f32 %v4830, %v4831
  %4886 = vmax.xlane.f32.xlu0 %v4885
  %v4887 = vpop.xlane.xlu0 %4886
  %v4888 = vld [vmem:[#allocation2 + $0x70] sm:$0xff]
  %v4889 = vld [vmem:[#allocation2 + $0x78] sm:$0xff]
  %v4890 = vld [vmem:[#allocation2 + $0xf0] sm:$0xff]
  %v4891 = vld [vmem:[#allocation2 + $0xf8] sm:$0xff]
  %v4892 = vld [vmem:[#allocation2 + $0x170] sm:$0xff]
  %v4893 = vld [vmem:[#allocation2 + $0x178] sm:$0xff]
  %v4894 = vld [vmem:[#allocation2 + $0x1f0] sm:$0xff]
  %v4895 = vld [vmem:[#allocation2 + $0x1f8] sm:$0xff]
  %v4896 = vld [vmem:[#allocation2 + $0x270] sm:$0xff]
  %v4897 = vld [vmem:[#allocation2 + $0x278] sm:$0xff]
  %v4898 = vld [vmem:[#allocation2 + $0x2f0] sm:$0xff]
  %v4899 = vld [vmem:[#allocation2 + $0x2f8] sm:$0xff]
  %v4900 = vld [vmem:[#allocation2 + $0x370] sm:$0xff]
  %v4901 = vld [vmem:[#allocation2 + $0x378] sm:$0xff]
  %v4902 = vld [vmem:[#allocation2 + $0x3f0] sm:$0xff]
  %v4903 = vld [vmem:[#allocation2 + $0x3f8] sm:$0xff]
  %v4904 = vadd.f32 %v4888, %v4889
  %4905 = vadd.xlane.f32.xlu0 %v4904
  %v4906 = vpop.xlane.xlu0 %4905
  %v4907 = vadd.f32 %v4890, %v4891
  %4908 = vadd.xlane.f32.xlu0 %v4907
  %v4909 = vpop.xlane.xlu0 %4908
  %v4910 = vadd.f32 %v4892, %v4893
  %4911 = vadd.xlane.f32.xlu0 %v4910
  %v4912 = vpop.xlane.xlu0 %4911
  %v4913 = vadd.f32 %v4894, %v4895
  %4914 = vadd.xlane.f32.xlu0 %v4913
  %v4915 = vpop.xlane.xlu0 %4914
  %v4916 = vadd.f32 %v4896, %v4897
  %4917 = vadd.xlane.f32.xlu0 %v4916
  %v4918 = vpop.xlane.xlu0 %4917
  %v4919 = vadd.f32 %v4898, %v4899
  %4920 = vadd.xlane.f32.xlu0 %v4919
  %v4921 = vpop.xlane.xlu0 %4920
  %v4922 = vadd.f32 %v4900, %v4901
  %4923 = vadd.xlane.f32.xlu0 %v4922
  %v4924 = vpop.xlane.xlu0 %4923
  %v4925 = vadd.f32 %v4902, %v4903
  %4926 = vadd.xlane.f32.xlu0 %v4925
  %v4927 = vpop.xlane.xlu0 %4926
  %v4928 = vmul.f32 %v4906, 0.00390625
  %v4929 = vmul.f32 %v4909, 0.00390625
  %v4930 = vmul.f32 %v4912, 0.00390625
  %v4931 = vmul.f32 %v4915, 0.00390625
  %v4932 = vmul.f32 %v4918, 0.00390625
  %v4933 = vmul.f32 %v4921, 0.00390625
  %v4934 = vmul.f32 %v4924, 0.00390625
  %v4935 = vmul.f32 %v4927, 0.00390625
  %v4936 = vmax.f32 %v4888, %v4889
  %4937 = vmax.xlane.f32.xlu0 %v4936
  %v4938 = vpop.xlane.xlu0 %4937
  %v4939 = vmax.f32 %v4890, %v4891
  %4940 = vmax.xlane.f32.xlu0 %v4939
  %v4941 = vpop.xlane.xlu0 %4940
  %v4942 = vmax.f32 %v4892, %v4893
  %4943 = vmax.xlane.f32.xlu0 %v4942
  %v4944 = vpop.xlane.xlu0 %4943
  %v4945 = vmax.f32 %v4894, %v4895
  %4946 = vmax.xlane.f32.xlu0 %v4945
  %v4947 = vpop.xlane.xlu0 %4946
  %v4948 = vmax.f32 %v4896, %v4897
  %4949 = vmax.xlane.f32.xlu0 %v4948
  %v4950 = vpop.xlane.xlu0 %4949
  %v4951 = vmax.f32 %v4898, %v4899
  %4952 = vmax.xlane.f32.xlu0 %v4951
  %v4953 = vpop.xlane.xlu0 %4952
  %v4954 = vmax.f32 %v4900, %v4901
  %4955 = vmax.xlane.f32.xlu0 %v4954
  %v4956 = vpop.xlane.xlu0 %4955
  %v4957 = vmax.f32 %v4902, %v4903
  %4958 = vmax.xlane.f32.xlu0 %v4957
  %v4959 = vpop.xlane.xlu0 %4958
  %vm4960 = vcmask 7168
  %v4961 = vsel %vm4960, %v4424, %v4496
  %v4962 = vsel %vm4960, %v4425, %v4497
  %v4963 = vsel %vm4960, %v4426, %v4498
  %v4964 = vsel %vm4960, %v4427, %v4499
  %v4965 = vsel %vm4960, %v4428, %v4500
  %v4966 = vsel %vm4960, %v4429, %v4501
  %v4967 = vsel %vm4960, %v4430, %v4502
  %v4968 = vsel %vm4960, %v4431, %v4503
  %vm4969 = vcmask 15360
  %v4970 = vsel %vm4969, %v4961, %v4568
  %v4971 = vsel %vm4969, %v4962, %v4569
  %v4972 = vsel %vm4969, %v4963, %v4570
  %v4973 = vsel %vm4969, %v4964, %v4571
  %v4974 = vsel %vm4969, %v4965, %v4572
  %v4975 = vsel %vm4969, %v4966, %v4573
  %v4976 = vsel %vm4969, %v4967, %v4574
  %v4977 = vsel %vm4969, %v4968, %v4575
  %vm4978 = vcmask 23552
  %v4979 = vsel %vm4978, %v4970, %v4640
  %v4980 = vsel %vm4978, %v4971, %v4641
  %v4981 = vsel %vm4978, %v4972, %v4642
  %v4982 = vsel %vm4978, %v4973, %v4643
  %v4983 = vsel %vm4978, %v4974, %v4644
  %v4984 = vsel %vm4978, %v4975, %v4645
  %v4985 = vsel %vm4978, %v4976, %v4646
  %v4986 = vsel %vm4978, %v4977, %v4647
  %vm4987 = vcmask 31744
  %v4988 = vsel %vm4987, %v4979, %v4712
  %v4989 = vsel %vm4987, %v4980, %v4713
  %v4990 = vsel %vm4987, %v4981, %v4714
  %v4991 = vsel %vm4987, %v4982, %v4715
  %v4992 = vsel %vm4987, %v4983, %v4716
  %v4993 = vsel %vm4987, %v4984, %v4717
  %v4994 = vsel %vm4987, %v4985, %v4718
  %v4995 = vsel %vm4987, %v4986, %v4719
  %vm4996 = vcmask 39936
  %v4997 = vsel %vm4996, %v4988, %v4784
  %v4998 = vsel %vm4996, %v4989, %v4785
  %v4999 = vsel %vm4996, %v4990, %v4786
  %v5000 = vsel %vm4996, %v4991, %v4787
  %v5001 = vsel %vm4996, %v4992, %v4788
  %v5002 = vsel %vm4996, %v4993, %v4789
  %v5003 = vsel %vm4996, %v4994, %v4790
  %v5004 = vsel %vm4996, %v4995, %v4791
  %vm5005 = vcmask 48128
  %v5006 = vsel %vm5005, %v4997, %v4856
  %v5007 = vsel %vm5005, %v4998, %v4857
  %v5008 = vsel %vm5005, %v4999, %v4858
  %v5009 = vsel %vm5005, %v5000, %v4859
  %v5010 = vsel %vm5005, %v5001, %v4860
  %v5011 = vsel %vm5005, %v5002, %v4861
  %v5012 = vsel %vm5005, %v5003, %v4862
  %v5013 = vsel %vm5005, %v5004, %v4863
  %vm5014 = vcmask 56320
  %v5015 = vsel %vm5014, %v5006, %v4928
  %v5016 = vsel %vm5014, %v5007, %v4929
  %v5017 = vsel %vm5014, %v5008, %v4930
  %v5018 = vsel %vm5014, %v5009, %v4931
  %v5019 = vsel %vm5014, %v5010, %v4932
  %v5020 = vsel %vm5014, %v5011, %v4933
  %v5021 = vsel %vm5014, %v5012, %v4934
  %v5022 = vsel %vm5014, %v5013, %v4935
  %vm5023 = vcmask 64512
  %v5024 = vsel %vm5023, %v5015, %v4434
  %v5025 = vsel %vm5023, %v5016, %v4437
  %v5026 = vsel %vm5023, %v5017, %v4440
  %v5027 = vsel %vm5023, %v5018, %v4443
  %v5028 = vsel %vm5023, %v5019, %v4446
  %v5029 = vsel %vm5023, %v5020, %v4449
  %v5030 = vsel %vm5023, %v5021, %v4452
  %v5031 = vsel %vm5023, %v5022, %v4455
  %vm5032 = vcmask 72704
  %v5033 = vsel %vm5032, %v5024, %v4506
  %v5034 = vsel %vm5032, %v5025, %v4509
  %v5035 = vsel %vm5032, %v5026, %v4512
  %v5036 = vsel %vm5032, %v5027, %v4515
  %v5037 = vsel %vm5032, %v5028, %v4518
  %v5038 = vsel %vm5032, %v5029, %v4521
  %v5039 = vsel %vm5032, %v5030, %v4524
  %v5040 = vsel %vm5032, %v5031, %v4527
  %vm5041 = vcmask 80896
  %v5042 = vsel %vm5041, %v5033, %v4578
  %v5043 = vsel %vm5041, %v5034, %v4581
  %v5044 = vsel %vm5041, %v5035, %v4584
  %v5045 = vsel %vm5041, %v5036, %v4587
  %v5046 = vsel %vm5041, %v5037, %v4590
  %v5047 = vsel %vm5041, %v5038, %v4593
  %v5048 = vsel %vm5041, %v5039, %v4596
  %v5049 = vsel %vm5041, %v5040, %v4599
  %vm5050 = vcmask 89088
  %v5051 = vsel %vm5050, %v5042, %v4650
  %v5052 = vsel %vm5050, %v5043, %v4653
  %v5053 = vsel %vm5050, %v5044, %v4656
  %v5054 = vsel %vm5050, %v5045, %v4659
  %v5055 = vsel %vm5050, %v5046, %v4662
  %v5056 = vsel %vm5050, %v5047, %v4665
  %v5057 = vsel %vm5050, %v5048, %v4668
  %v5058 = vsel %vm5050, %v5049, %v4671
  %vm5059 = vcmask 97280
  %v5060 = vsel %vm5059, %v5051, %v4722
  %v5061 = vsel %vm5059, %v5052, %v4725
  %v5062 = vsel %vm5059, %v5053, %v4728
  %v5063 = vsel %vm5059, %v5054, %v4731
  %v5064 = vsel %vm5059, %v5055, %v4734
  %v5065 = vsel %vm5059, %v5056, %v4737
  %v5066 = vsel %vm5059, %v5057, %v4740
  %v5067 = vsel %vm5059, %v5058, %v4743
  %vm5068 = vcmask 105472
  %v5069 = vsel %vm5068, %v5060, %v4794
  %v5070 = vsel %vm5068, %v5061, %v4797
  %v5071 = vsel %vm5068, %v5062, %v4800
  %v5072 = vsel %vm5068, %v5063, %v4803
  %v5073 = vsel %vm5068, %v5064, %v4806
  %v5074 = vsel %vm5068, %v5065, %v4809
  %v5075 = vsel %vm5068, %v5066, %v4812
  %v5076 = vsel %vm5068, %v5067, %v4815
  %vm5077 = vcmask 113664
  %v5078 = vsel %vm5077, %v5069, %v4866
  %v5079 = vsel %vm5077, %v5070, %v4869
  %v5080 = vsel %vm5077, %v5071, %v4872
  %v5081 = vsel %vm5077, %v5072, %v4875
  %v5082 = vsel %vm5077, %v5073, %v4878
  %v5083 = vsel %vm5077, %v5074, %v4881
  %v5084 = vsel %vm5077, %v5075, %v4884
  %v5085 = vsel %vm5077, %v5076, %v4887
  %vm5086 = vcmask 121856
  %v5087 = vsel %vm5086, %v5078, %v4938
  %v5088 = vsel %vm5086, %v5079, %v4941
  %v5089 = vsel %vm5086, %v5080, %v4944
  %v5090 = vsel %vm5086, %v5081, %v4947
  %v5091 = vsel %vm5086, %v5082, %v4950
  %v5092 = vsel %vm5086, %v5083, %v4953
  %v5093 = vsel %vm5086, %v5084, %v4956
  %v5094 = vsel %vm5086, %v5085, %v4959
  %v5095 = vld [vmem:[%s2] sm:$0xff]
  %v5096 = vld [vmem:[%s2 + $0x8] sm:$0xff]
  %v5097 = vld [vmem:[%s2 + $0x10] sm:$0xff]
  %v5098 = vld [vmem:[%s2 + $0x18] sm:$0xff]
  %v5099 = vld [vmem:[%s2 + $0x20] sm:$0xff]
  %v5100 = vld [vmem:[%s2 + $0x28] sm:$0xff]
  %v5101 = vld [vmem:[%s2 + $0x30] sm:$0xff]
  %v5102 = vld [vmem:[%s2 + $0x38] sm:$0xff]
  %5104 = vset.pattern.permute.xlu0 0
  %5105 = vperm.xlu0 %5104, %v5095
  %v5106 = vpop.permute.xlu0 %5105
  %5109 = vset.pattern.permute.xlu0 0
  %5110 = vperm.xlu0 %5109, %v5096
  %v5111 = vpop.permute.xlu0 %5110
  %5114 = vset.pattern.permute.xlu0 0
  %5115 = vperm.xlu0 %5114, %v5097
  %v5116 = vpop.permute.xlu0 %5115
  %5119 = vset.pattern.permute.xlu0 0
  %5120 = vperm.xlu0 %5119, %v5098
  %v5121 = vpop.permute.xlu0 %5120
  %5124 = vset.pattern.permute.xlu0 0
  %5125 = vperm.xlu0 %5124, %v5099
  %v5126 = vpop.permute.xlu0 %5125
  %5129 = vset.pattern.permute.xlu0 0
  %5130 = vperm.xlu0 %5129, %v5100
  %v5131 = vpop.permute.xlu0 %5130
  %5134 = vset.pattern.permute.xlu0 0
  %5135 = vperm.xlu0 %5134, %v5101
  %v5136 = vpop.permute.xlu0 %5135
  %5139 = vset.pattern.permute.xlu0 0
  %5140 = vperm.xlu0 %5139, %v5102
  %v5141 = vpop.permute.xlu0 %5140
  %v5143 = vadd.f32 %v5087, %v5106
  %v5144 = vadd.f32 %v5088, %v5111
  %v5145 = vadd.f32 %v5089, %v5116
  %v5146 = vadd.f32 %v5090, %v5121
  %v5147 = vadd.f32 %v5091, %v5126
  %v5148 = vadd.f32 %v5092, %v5131
  %v5149 = vadd.f32 %v5093, %v5136
  %v5150 = vadd.f32 %v5094, %v5141
  %vm5151 = vcmask 130048
  %5152 = vst.msk [vmem:[%s3] sm:$0xff] %vm5151, %v5143
  %5153 = vst.msk [vmem:[%s3 + $0x8] sm:$0xff] %vm5151, %v5144
  %5154 = vst.msk [vmem:[%s3 + $0x10] sm:$0xff] %vm5151, %v5145
  %5155 = vst.msk [vmem:[%s3 + $0x18] sm:$0xff] %vm5151, %v5146
  %5156 = vst.msk [vmem:[%s3 + $0x20] sm:$0xff] %vm5151, %v5147
  %5157 = vst.msk [vmem:[%s3 + $0x28] sm:$0xff] %vm5151, %v5148
  %5158 = vst.msk [vmem:[%s3 + $0x30] sm:$0xff] %vm5151, %v5149
  %5159 = vst.msk [vmem:[%s3 + $0x38] sm:$0xff] %vm5151, %v5150
  // Predicated region
  $region14: #{combine_last3d_forward.1} parent=0 // pred_check
    _
  $region15: #{combine_last3d_forward.1} parent=0 // pred_check_branch
    %5161 = sbr.rel (0) target = $region17
  $region16: #{combine_last3d_forward.1} parent=0 // pred_region
    _
  $region17: #{combine_last3d_forward.1} parent=0 // pred_fallthru
    _
  // Predicated region
  $region18: #{combine_last3d_forward.1} parent=0 // pred_check
    _
  $region19: #{combine_last3d_forward.1} parent=0 // pred_check_branch
    %5163 = sbr.rel (0) target = $region21
  $region20: #{combine_last3d_forward.1} parent=0 // pred_region
    _
  $region21: #{combine_last3d_forward.1} parent=0 // pred_fallthru
    _

</llo_original>
